<compile_context>
chip_gen: v6e
topology: v6e:2x2x1
jax: 0.10.0
libtpu: 0.0.40
codegen_flags: <defaults>
</compile_context>

<pallas_src>
import math
import jax
import jax.numpy as jnp
from jax.experimental import pallas as pl
from jax.experimental.pallas import tpu as pltpu

# ---- model hyper-parameters (GRNVAE defaults, small synthetic scale) ----
N_GENE = 16              # G
N_CELL = 64              # O (total cells)
CELL_TILE = 16           # cells per grid step -> CELL_TILE * G = 256 lanes / step
HIDDEN = 32              # hidden_dim
Z_DIM = 1
A_DIM = 1
DA_P = 0.05
DA_TYPE = "enhance"      # 'enhance' matches no branch -> plain bernoulli mask
POS_WEIGHT = (1.0 - DA_P) / DA_P

OG_TILE = CELL_TILE * N_GENE    # 256 lanes per grid step


def _softplus(v):
  return jnp.maximum(v, 0.0) + jnp.log(1.0 + jnp.exp(-jnp.abs(v)))


def _grnvae_kernel(data_ref, bd_ref, wmlp_ref, wcol_ref, scal_ref, out_ref):
  f32, bf16 = jnp.float32, jnp.bfloat16
  H = HIDDEN
  T = OG_TILE

  # ---- per-tile data rows (cell-major flattened (cell, gene) lanes) ----
  x = data_ref[0:1, :]          # raw expression
  u = data_ref[1:2, :]          # uniform [0, 1)
  eps = data_ref[2:3, :]        # standard normal
  bias_mu = data_ref[3:4, :]    # enc_b3[0] folded through mixing (f32)
  bias_lv = data_ref[4:5, :]    # enc_b3[1] folded through mixing (f32)

  # ---- SMEM scalars ----
  gm, gs = scal_ref[0], scal_ref[1]
  dw1, db1 = scal_ref[2], scal_ref[3]
  dw2, db2 = scal_ref[4], scal_ref[5]
  dw3, db3 = scal_ref[6], scal_ref[7]
  gb3 = scal_ref[8]

  # ---- packed bf16 MXU weights (lane-padded to 128; 16-row aligned offsets) ----
  enc_w2 = wmlp_ref[0:H, 0:H]                      # (H, H)
  gen_w2 = wmlp_ref[H:2 * H, 0:H]                  # (H, H)
  enc_w3b = wmlp_ref[2 * H:2 * H + 16, 0:H]        # (16, H): rows 0,1 = enc_w3
  gen_w3b = wmlp_ref[2 * H + 16:2 * H + 32, 0:H]   # (16, H): row 0 = gen_w3

  # ---- packed f32 column vectors (VPU broadcast path) ----
  enc_w1 = wcol_ref[:, 0:1]                        # (H, 1)
  enc_b1 = wcol_ref[:, 1:2]
  enc_b2 = wcol_ref[:, 2:3]
  gen_w1 = wcol_ref[:, 3:4]
  gen_b1 = wcol_ref[:, 4:5]
  gen_b2 = wcol_ref[:, 5:6]

  # ---- block-diagonal gene-mixing matrices (f32, fixed (T,T) per tile) ----
  mix = bd_ref[0:T, :]           # kron(I_CELL_TILE, sum_a (I - A))
  mix_inv = bd_ref[T:2 * T, :]   # kron(I_CELL_TILE, sum_a (I - A)^-1)

  # ---- dropout augmentation (da_type='enhance' -> raw bernoulli mask) ----
  da_mask = (u < DA_P).astype(f32)                 # (1, T)
  x_aug = x * (1.0 - da_mask)                      # x + (-x * da_mask)
  x_std = (x_aug - gm) / gs                        # standardized augmented x

  # ---- inference MLP 1 -> H -> H -> 2*z_dim, activations kept as (H, T) ----
  h1 = jnp.tanh(enc_w1 * x_std + enc_b1)                                # (H, T)
  h2 = jnp.tanh(jnp.dot(enc_w2, h1.astype(bf16),
                        preferred_element_type=f32) + enc_b2)           # (H, T)
  zp = jnp.dot(enc_w3b, h2.astype(bf16), preferred_element_type=f32)    # (16, T)

  # ---- mixing with (I - A): f32 block-diagonal matmul, bias added after ----
  mixed = jnp.dot(zp, mix, preferred_element_type=f32)                  # (16, T)
  z_mu = mixed[0:1, :] + bias_mu
  z_lv = mixed[1:2, :] + bias_lv

  # ---- reparameterization (reuse e = exp(0.5*z_lv) for the KL term) ----
  e = jnp.exp(0.5 * z_lv)
  z = z_mu + e * eps                               # (1, T)

  # ---- inverse mixing with (I - A)^-1 (one f32 sublane tile: 8 rows) ----
  z_pad = jnp.concatenate([z, jnp.zeros((7, T), f32)], axis=0)          # (8, T)
  z_inv = jnp.dot(z_pad, mix_inv, preferred_element_type=f32)[0:1, :]   # (1, T)

  # ---- generative MLP z_dim -> H -> H -> 1 ----
  g1 = jnp.tanh(gen_w1 * z_inv + gen_b1)                                # (H, T)
  g2 = jnp.tanh(jnp.dot(gen_w2, g1.astype(bf16),
                        preferred_element_type=f32) + gen_b2)           # (H, T)
  x_rec = jnp.dot(gen_w3b, g2.astype(bf16),
                  preferred_element_type=f32)[0:1, :] + gb3             # (1, T)

  # ---- dropout-augmentation classifier z_dim -> z_dim -> 1 (scalar weights) ----
  d1 = jnp.tanh(z * dw1 + db1)
  d2 = jnp.tanh(d1 * dw2 + db2)
  da_pred = d2 * dw3 + db3                         # (1, T)

  # ---- per-tile loss partial SUMS (eval_mask == ones); wrapper divides ----
  diff = x_std - x_rec
  s_rec = jnp.sum(diff * diff)
  s_kl = -0.5 * jnp.sum(1.0 + z_lv - z_mu * z_mu - e * e)
  log_sig = -_softplus(-da_pred)
  log_1m = -_softplus(da_pred)
  s_da = jnp.sum(-(POS_WEIGHT * da_mask * log_sig + (1.0 - da_mask) * log_1m))

  lane = jax.lax.broadcasted_iota(jnp.int32, (1, T), 1)
  loss_row = (s_rec * (lane == 0).astype(f32)
              + s_kl * (lane == 1).astype(f32)
              + s_da * (lane == 2).astype(f32))

  # ---- single lane-dense (8, T) output slab for this cell tile ----
  out_ref[...] = jnp.concatenate(
      [z_mu, z_lv, z, da_pred, da_mask, loss_row, jnp.zeros((2, T), f32)],
      axis=0)


def init_params(key):
  """Deterministic xavier-normal weights, zero biases, GRNVAE-style adj_A."""
  ks = jax.random.split(key, 10)
  f32 = jnp.float32

  def xavier(k, out_d, in_d):
    std = math.sqrt(2.0 / (in_d + out_d))
    return std * jax.random.normal(k, (out_d, in_d), f32)

  p = {}
  adj = jnp.ones((A_DIM, N_GENE, N_GENE), f32) / (N_GENE - 1)
  adj = adj + jax.random.uniform(ks[0], adj.shape, f32) * 0.0002
  p['adj_A'] = adj
  # inference_zposterior: MLP(1, H, 2*z_dim)
  p['enc_w1'] = xavier(ks[1], HIDDEN, 1);         p['enc_b1'] = jnp.zeros((HIDDEN,), f32)
  p['enc_w2'] = xavier(ks[2], HIDDEN, HIDDEN);    p['enc_b2'] = jnp.zeros((HIDDEN,), f32)
  p['enc_w3'] = xavier(ks[3], 2 * Z_DIM, HIDDEN); p['enc_b3'] = jnp.zeros((2 * Z_DIM,), f32)
  # generative_pxz: MLP(z_dim, H, 1)
  p['gen_w1'] = xavier(ks[4], HIDDEN, Z_DIM);     p['gen_b1'] = jnp.zeros((HIDDEN,), f32)
  p['gen_w2'] = xavier(ks[5], HIDDEN, HIDDEN);    p['gen_b2'] = jnp.zeros((HIDDEN,), f32)
  p['gen_w3'] = xavier(ks[6], 1, HIDDEN);         p['gen_b3'] = jnp.zeros((1,), f32)
  # da_classifier: MLP(z_dim, z_dim, 1)
  p['da_w1'] = xavier(ks[7], Z_DIM, Z_DIM);       p['da_b1'] = jnp.zeros((Z_DIM,), f32)
  p['da_w2'] = xavier(ks[8], Z_DIM, Z_DIM);       p['da_b2'] = jnp.zeros((Z_DIM,), f32)
  p['da_w3'] = xavier(ks[9], 1, Z_DIM);           p['da_b3'] = jnp.zeros((1,), f32)
  return p


def grnvae_forward(params, x, global_mean, global_std, rng_key):
  """GRNVAE.forward(x, global_mean, global_std) — fused Pallas kernel + JAX glue."""
  O, G, H = x.shape[0], x.shape[1], HIDDEN
  assert G == N_GENE and O % CELL_TILE == 0
  n_tiles = O // CELL_TILE
  T = OG_TILE
  OG = O * G
  f32, bf16 = jnp.float32, jnp.bfloat16

  ku, ke = jax.random.split(rng_key)
  u = jax.random.uniform(ku, (O, G), f32)      # torch.rand_like
  eps = jax.random.normal(ke, (O, G), f32)     # torch.randn_like

  # (I - A) and its inverse.  einsum('ogd,agh->ohd', ., M) also sums over a, so
  # the A_dim is folded here; kron(I_CELL_TILE, .) turns the per-cell gene
  # mixing into one block-diagonal 2-D matmul per grid step.  Because the cell
  # axis is tiled by the grid, the mixing matrices stay a fixed (T, T) size
  # regardless of the total cell count (bounded VMEM on v7x).
  eye = jnp.eye(G, dtype=f32)
  I_minus_A = eye - params['adj_A'] * (1.0 - eye)          # (A_DIM, G, G)
  M = jnp.sum(I_minus_A, axis=0)                           # (G, G)
  # TODO(synk): torch.inverse has no Pallas primitive; the (G,G) inverse stays in JAX glue.
  Minv = jnp.sum(jnp.linalg.inv(I_minus_A), axis=0)        # (G, G)
  eye_ct = jnp.eye(CELL_TILE, dtype=f32)
  bd = jnp.concatenate([jnp.kron(eye_ct, M), jnp.kron(eye_ct, Minv)],
                       axis=0).astype(f32)                 # (2T, T), f32 mixing

  # enc_b3 folded through the mixing: (b3_row @ bd)[d, o*G+h] = enc_b3[d]*colsum(M)[h]
  colsum = jnp.sum(M, axis=0)                              # (G,)
  bias_mu_row = jnp.tile(params['enc_b3'][0] * colsum, O)  # (OG,)
  bias_lv_row = jnp.tile(params['enc_b3'][1] * colsum, O)  # (OG,)

  zeros_row = jnp.zeros((OG,), f32)
  data = jnp.stack([x.reshape(OG), u.reshape(OG), eps.reshape(OG),
                    bias_mu_row, bias_lv_row,
                    zeros_row, zeros_row, zeros_row]).astype(f32)   # (8, OG)

  def pad_to(a, rows, cols):
    return jnp.pad(a, ((0, rows - a.shape[0]), (0, cols - a.shape[1])))

  # packed bf16 MXU weights, lane-padded to 128 (unmasked VMEM tiles)
  wmlp = jnp.concatenate([
      pad_to(params['enc_w2'], HIDDEN, 128),   # rows [0, H)
      pad_to(params['gen_w2'], HIDDEN, 128),   # rows [H, 2H)
      pad_to(params['enc_w3'], 16, 128),       # rows [2H, 2H+16), data in first 2
      pad_to(params['gen_w3'], 16, 128),       # rows [2H+16, 2H+32), data in first 1
  ], axis=0).astype(bf16)                      # (96, 128)

  wcol = pad_to(jnp.stack([
      params['enc_w1'][:, 0], params['enc_b1'], params['enc_b2'],
      params['gen_w1'][:, 0], params['gen_b1'], params['gen_b2'],
  ], axis=1), HIDDEN, 128).astype(f32)         # (32, 128)

  scal = jnp.stack([
      jnp.asarray(global_mean, f32), jnp.asarray(global_std, f32),
      params['da_w1'][0, 0], params['da_b1'][0],
      params['da_w2'][0, 0], params['da_b2'][0],
      params['da_w3'][0, 0], params['da_b3'][0],
      params['gen_b3'][0],
  ]).astype(f32)                               # (9,) SMEM scalars

  out = pl.pallas_call(
      _grnvae_kernel,
      out_shape=jax.ShapeDtypeStruct((n_tiles * 8, T), jnp.float32),
      grid=(n_tiles,),
      in_specs=[
          # per-tile data rows (pipelined over the cell-tile grid axis)
          pl.BlockSpec((8, T), lambda i: (0, i)),
          # constants: fetched once, held resident across grid steps
          pl.BlockSpec((2 * T, T), lambda i: (0, 0)),
          pl.BlockSpec((96, 128), lambda i: (0, 0)),
          pl.BlockSpec((HIDDEN, 128), lambda i: (0, 0)),
          pl.BlockSpec(memory_space=pltpu.MemorySpace.SMEM),
      ],
      out_specs=pl.BlockSpec((8, T), lambda i: (i, 0)),
      compiler_params=pltpu.CompilerParams(
          dimension_semantics=("parallel",)),   # shards cell tiles across TCs on v7x
  )(data, bd, wmlp, wcol, scal)

  out = out.reshape(n_tiles, 8, T)
  n_elem = float(OG)                           # Z_DIM == 1
  z_mu = out[:, 0, :].reshape(O, G, Z_DIM)
  z_lv = out[:, 1, :].reshape(O, G, Z_DIM)
  return {
      'loss_rec': jnp.sum(out[:, 5, 0]) / n_elem,
      'loss_kl': jnp.sum(out[:, 5, 1]) / (n_elem * Z_DIM),
      'z_posterior': jnp.concatenate([z_mu, z_lv], axis=-1),   # (O, G, 2*z_dim)
      'z': out[:, 2, :].reshape(O, G, Z_DIM),
      'da_pred': out[:, 3, :].reshape(O, G),
      'da_mask': out[:, 4, :].reshape(O, G),                   # float 0/1
      'loss_da': jnp.sum(out[:, 5, 2]) / n_elem,
  }


# ---- pure-JAX reference (mirrors the PyTorch forward; same precision choices
# ---- as the kernel: bf16-operand MLP matmuls, f32 gene mixing) ----
def grnvae_forward_ref(params, x, gm, gs, u, eps):
  f32, bf16 = jnp.float32, jnp.bfloat16
  hi = jax.lax.Precision.HIGHEST
  da_mask = (u < DA_P).astype(f32)                      # (O, G)
  xs = (x * (1.0 - da_mask) - gm) / gs
  eye = jnp.eye(N_GENE, dtype=f32)
  IMA = eye - params['adj_A'] * (1.0 - eye)             # (A_DIM, G, G)

  def mm(a, b):  # bf16-operand, f32-accumulate (matches kernel MXU usage)
    return jnp.einsum('ogi,ki->ogk', a.astype(bf16), b.astype(bf16),
                      preferred_element_type=f32)

  h = jnp.tanh(xs[..., None] * params['enc_w1'][:, 0] + params['enc_b1'])
  h = jnp.tanh(mm(h, params['enc_w2']) + params['enc_b2'])
  zp = mm(h, params['enc_w3']) + params['enc_b3']                       # (O, G, 2)
  zp = jnp.einsum('ogd,agh->ohd', zp, IMA, precision=hi)                # f32 mixing
  z_mu, z_lv = zp[:, :, :Z_DIM], zp[:, :, Z_DIM:]
  z = z_mu + jnp.exp(0.5 * z_lv) * eps[..., None]
  z_inv = jnp.einsum('ogd,agh->ohd', z, jnp.linalg.inv(IMA), precision=hi)
  g = jnp.tanh(z_inv * params['gen_w1'][:, 0] + params['gen_b1'])
  g = jnp.tanh(mm(g, params['gen_w2']) + params['gen_b2'])
  x_rec = (mm(g, params['gen_w3']) + params['gen_b3'])[..., 0]          # (O, G)
  d1 = jnp.tanh(z * params['da_w1'][0, 0] + params['da_b1'][0])
  d2 = jnp.tanh(d1 * params['da_w2'][0, 0] + params['da_b2'][0])
  da_pred = (d2 * params['da_w3'][0, 0] + params['da_b3'][0])[..., 0]   # (O, G)

  log_sig = jax.nn.log_sigmoid(da_pred)
  log_1m = jax.nn.log_sigmoid(-da_pred)
  loss_da = jnp.mean(-(POS_WEIGHT * da_mask * log_sig + (1.0 - da_mask) * log_1m))
  loss_rec = jnp.mean((xs - x_rec) ** 2)
  loss_kl = -0.5 * jnp.mean(1.0 + z_lv - z_mu ** 2 - jnp.exp(z_lv))
  return {'loss_rec': loss_rec, 'loss_kl': loss_kl, 'z_posterior': zp, 'z': z,
          'da_pred': da_pred, 'da_mask': da_mask, 'loss_da': loss_da}


if __name__ == "__main__":
  key = jax.random.PRNGKey(0)
  kp, kx, kf = jax.random.split(key, 3)
  params = init_params(kp)

  # synthetic non-negative expression matrix (cells x genes)
  x = jax.random.uniform(kx, (N_CELL, N_GENE), jnp.float32) * 3.0
  global_mean = jnp.mean(x)
  global_std = jnp.std(x)

  fwd = jax.jit(grnvae_forward)
  out = fwd(params, x, global_mean, global_std, kf)
  out = jax.tree_util.tree_map(jax.block_until_ready, out)

  # correctness check against a pure-JAX reference using identical random draws
  ku, ke = jax.random.split(kf)
  u = jax.random.uniform(ku, (N_CELL, N_GENE), jnp.float32)
  eps = jax.random.normal(ke, (N_CELL, N_GENE), jnp.float32)
  ref = grnvae_forward_ref(params, x, global_mean, global_std, u, eps)
  for name in ['z_posterior', 'z', 'da_pred', 'da_mask', 'loss_rec', 'loss_kl', 'loss_da']:
    a = jnp.asarray(out[name])
    b = jnp.asarray(ref[name]).reshape(a.shape)
    assert jnp.allclose(a, b, rtol=5e-3, atol=5e-3), name

  print("KERNEL_OK")
</pallas_src>

<mosaic_0001>
module attributes {stable_mosaic.version = 11 : i64} {
  func.func @_grnvae_kernel(%arg0: i32, %arg1: memref<8x256xf32, #tpu.memory_space<vmem>>, %arg2: memref<512x256xf32, #tpu.memory_space<vmem>>, %arg3: memref<96x128xbf16, #tpu.memory_space<vmem>>, %arg4: memref<32x128xf32, #tpu.memory_space<vmem>>, %arg5: memref<9xf32, #tpu.memory_space<smem>>, %arg6: memref<8x256xf32, #tpu.memory_space<vmem>>) attributes {dimension_semantics = [#tpu.dimension_semantics<parallel>], iteration_bounds = array<i64: 4>, scalar_prefetch = 0 : i64, scratch_operands = 0 : i64, tpu.core_type = #tpu.core_type<tc>, window_params = [{transform_indices = @transform_0, window_bounds = array<i64: 8, 256>}, {pipeline_mode = #tpu.pipeline_mode<synchronous>, transform_indices = @transform_1, window_bounds = array<i64: 512, 256>}, {pipeline_mode = #tpu.pipeline_mode<synchronous>, transform_indices = @transform_2, window_bounds = array<i64: 96, 128>}, {pipeline_mode = #tpu.pipeline_mode<synchronous>, transform_indices = @transform_3, window_bounds = array<i64: 32, 128>}, {transform_indices = @transform_4, window_bounds = array<i64: 9>}, {transform_indices = @transform_5, window_bounds = array<i64: 8, 256>}]} {
    %c0 = arith.constant 0 : index
    %c0_0 = arith.constant 0 : index
    %0 = vector.load %arg1[%c0, %c0_0] : memref<8x256xf32, #tpu.memory_space<vmem>>, vector<1x256xf32>
    %c1 = arith.constant 1 : index
    %c0_1 = arith.constant 0 : index
    %1 = vector.load %arg1[%c1, %c0_1] : memref<8x256xf32, #tpu.memory_space<vmem>>, vector<1x256xf32>
    %c2 = arith.constant 2 : index
    %c0_2 = arith.constant 0 : index
    %2 = vector.load %arg1[%c2, %c0_2] : memref<8x256xf32, #tpu.memory_space<vmem>>, vector<1x256xf32>
    %c3 = arith.constant 3 : index
    %c0_3 = arith.constant 0 : index
    %3 = vector.load %arg1[%c3, %c0_3] : memref<8x256xf32, #tpu.memory_space<vmem>>, vector<1x256xf32>
    %c4 = arith.constant 4 : index
    %c0_4 = arith.constant 0 : index
    %4 = vector.load %arg1[%c4, %c0_4] : memref<8x256xf32, #tpu.memory_space<vmem>>, vector<1x256xf32>
    %c0_5 = arith.constant 0 : index
    %5 = memref.load %arg5[%c0_5] : memref<9xf32, #tpu.memory_space<smem>>
    %c1_6 = arith.constant 1 : index
    %6 = memref.load %arg5[%c1_6] : memref<9xf32, #tpu.memory_space<smem>>
    %c2_7 = arith.constant 2 : index
    %7 = memref.load %arg5[%c2_7] : memref<9xf32, #tpu.memory_space<smem>>
    %c3_8 = arith.constant 3 : index
    %8 = memref.load %arg5[%c3_8] : memref<9xf32, #tpu.memory_space<smem>>
    %c4_9 = arith.constant 4 : index
    %9 = memref.load %arg5[%c4_9] : memref<9xf32, #tpu.memory_space<smem>>
    %c5 = arith.constant 5 : index
    %10 = memref.load %arg5[%c5] : memref<9xf32, #tpu.memory_space<smem>>
    %c6 = arith.constant 6 : index
    %11 = memref.load %arg5[%c6] : memref<9xf32, #tpu.memory_space<smem>>
    %c7 = arith.constant 7 : index
    %12 = memref.load %arg5[%c7] : memref<9xf32, #tpu.memory_space<smem>>
    %c8 = arith.constant 8 : index
    %13 = memref.load %arg5[%c8] : memref<9xf32, #tpu.memory_space<smem>>
    %c0_10 = arith.constant 0 : index
    %c0_11 = arith.constant 0 : index
    %14 = vector.load %arg3[%c0_10, %c0_11] : memref<96x128xbf16, #tpu.memory_space<vmem>>, vector<32x32xbf16>
    %c32 = arith.constant 32 : index
    %c0_12 = arith.constant 0 : index
    %15 = vector.load %arg3[%c32, %c0_12] : memref<96x128xbf16, #tpu.memory_space<vmem>>, vector<32x32xbf16>
    %c64 = arith.constant 64 : index
    %c0_13 = arith.constant 0 : index
    %16 = vector.load %arg3[%c64, %c0_13] : memref<96x128xbf16, #tpu.memory_space<vmem>>, vector<16x32xbf16>
    %c80 = arith.constant 80 : index
    %c0_14 = arith.constant 0 : index
    %17 = vector.load %arg3[%c80, %c0_14] : memref<96x128xbf16, #tpu.memory_space<vmem>>, vector<16x32xbf16>
    %c0_15 = arith.constant 0 : index
    %c0_16 = arith.constant 0 : index
    %18 = vector.load %arg4[%c0_15, %c0_16] : memref<32x128xf32, #tpu.memory_space<vmem>>, vector<32x1xf32>
    %c0_17 = arith.constant 0 : index
    %c1_18 = arith.constant 1 : index
    %19 = vector.load %arg4[%c0_17, %c1_18] : memref<32x128xf32, #tpu.memory_space<vmem>>, vector<32x1xf32>
    %c0_19 = arith.constant 0 : index
    %c2_20 = arith.constant 2 : index
    %20 = vector.load %arg4[%c0_19, %c2_20] : memref<32x128xf32, #tpu.memory_space<vmem>>, vector<32x1xf32>
    %c0_21 = arith.constant 0 : index
    %c3_22 = arith.constant 3 : index
    %21 = vector.load %arg4[%c0_21, %c3_22] : memref<32x128xf32, #tpu.memory_space<vmem>>, vector<32x1xf32>
    %c0_23 = arith.constant 0 : index
    %c4_24 = arith.constant 4 : index
    %22 = vector.load %arg4[%c0_23, %c4_24] : memref<32x128xf32, #tpu.memory_space<vmem>>, vector<32x1xf32>
    %c0_25 = arith.constant 0 : index
    %c5_26 = arith.constant 5 : index
    %23 = vector.load %arg4[%c0_25, %c5_26] : memref<32x128xf32, #tpu.memory_space<vmem>>, vector<32x1xf32>
    %c0_27 = arith.constant 0 : index
    %c0_28 = arith.constant 0 : index
    %24 = vector.load %arg2[%c0_27, %c0_28] : memref<512x256xf32, #tpu.memory_space<vmem>>, vector<256x256xf32>
    %c256 = arith.constant 256 : index
    %c0_29 = arith.constant 0 : index
    %25 = vector.load %arg2[%c256, %c0_29] : memref<512x256xf32, #tpu.memory_space<vmem>>, vector<256x256xf32>
    %cst = arith.constant 5.000000e-02 : f32
    %26 = vector.broadcast %cst : f32 to vector<1x256xf32>
    %27 = arith.cmpf olt, %1, %26 : vector<1x256xf32>
    %28 = arith.extui %27 : vector<1x256xi1> to vector<1x256xi32>
    %29 = arith.sitofp %28 : vector<1x256xi32> to vector<1x256xf32>
    %cst_30 = arith.constant 1.000000e+00 : f32
    %30 = vector.broadcast %cst_30 : f32 to vector<1x256xf32>
    %31 = arith.subf %30, %29 : vector<1x256xf32>
    %32 = arith.mulf %0, %31 : vector<1x256xf32>
    %33 = vector.broadcast %5 : f32 to vector<1x256xf32>
    %34 = arith.subf %32, %33 : vector<1x256xf32>
    %35 = vector.broadcast %6 : f32 to vector<1x256xf32>
    %36 = arith.divf %34, %35 : vector<1x256xf32>
    %37 = vector.broadcast %18 : vector<32x1xf32> to vector<32x256xf32>
    %38 = vector.broadcast %36 : vector<1x256xf32> to vector<32x256xf32>
    %39 = arith.mulf %37, %38 : vector<32x256xf32>
    %40 = vector.broadcast %19 : vector<32x1xf32> to vector<32x256xf32>
    %41 = arith.addf %39, %40 : vector<32x256xf32>
    %42 = math.tanh %41 : vector<32x256xf32>
    %43 = arith.truncf %42 : vector<32x256xf32> to vector<32x256xbf16>
    %cst_31 = arith.constant dense<0.000000e+00> : vector<32x256xf32>
    %44 = tpu.matmul %14, %43, %cst_31 {dimension_numbers = #tpu.dot_dimension_numbers<[1], [0], [0], [1], [0, 0, 1, 1], [], []>} : vector<32x32xbf16>, vector<32x256xbf16>, vector<32x256xf32> -> vector<32x256xf32>
    %45 = vector.broadcast %20 : vector<32x1xf32> to vector<32x256xf32>
    %46 = arith.addf %44, %45 : vector<32x256xf32>
    %47 = math.tanh %46 : vector<32x256xf32>
    %48 = arith.truncf %47 : vector<32x256xf32> to vector<32x256xbf16>
    %cst_32 = arith.constant dense<0.000000e+00> : vector<16x256xf32>
    %49 = tpu.matmul %16, %48, %cst_32 {dimension_numbers = #tpu.dot_dimension_numbers<[1], [0], [0], [1], [0, 0, 1, 1], [], []>} : vector<16x32xbf16>, vector<32x256xbf16>, vector<16x256xf32> -> vector<16x256xf32>
    %cst_33 = arith.constant dense<0.000000e+00> : vector<16x256xf32>
    %50 = tpu.matmul %49, %24, %cst_33 {dimension_numbers = #tpu.dot_dimension_numbers<[1], [0], [0], [1], [0, 0, 1, 1], [], []>} : vector<16x256xf32>, vector<256x256xf32>, vector<16x256xf32> -> vector<16x256xf32>
    %51 = vector.extract_strided_slice %50 {offsets = [0, 0], sizes = [1, 256], strides = [1, 1]} : vector<16x256xf32> to vector<1x256xf32>
    %52 = arith.addf %51, %3 : vector<1x256xf32>
    %53 = vector.extract_strided_slice %50 {offsets = [1, 0], sizes = [1, 256], strides = [1, 1]} : vector<16x256xf32> to vector<1x256xf32>
    %54 = arith.addf %53, %4 : vector<1x256xf32>
    %cst_34 = arith.constant 5.000000e-01 : f32
    %55 = vector.broadcast %cst_34 : f32 to vector<1x256xf32>
    %56 = arith.mulf %55, %54 : vector<1x256xf32>
    %57 = math.exp %56 : vector<1x256xf32>
    %58 = arith.mulf %57, %2 : vector<1x256xf32>
    %59 = arith.addf %52, %58 : vector<1x256xf32>
    %cst_35 = arith.constant 0.000000e+00 : f32
    %60 = vector.broadcast %cst_35 : f32 to vector<7x256xf32>
    %61 = tpu.concatenate %59, %60 in 0 : vector<1x256xf32>, vector<7x256xf32> -> vector<8x256xf32>
    %cst_36 = arith.constant dense<0.000000e+00> : vector<8x256xf32>
    %62 = tpu.matmul %61, %25, %cst_36 {dimension_numbers = #tpu.dot_dimension_numbers<[1], [0], [0], [1], [0, 0, 1, 1], [], []>} : vector<8x256xf32>, vector<256x256xf32>, vector<8x256xf32> -> vector<8x256xf32>
    %63 = vector.extract_strided_slice %62 {offsets = [0, 0], sizes = [1, 256], strides = [1, 1]} : vector<8x256xf32> to vector<1x256xf32>
    %64 = vector.broadcast %21 : vector<32x1xf32> to vector<32x256xf32>
    %65 = vector.broadcast %63 : vector<1x256xf32> to vector<32x256xf32>
    %66 = arith.mulf %64, %65 : vector<32x256xf32>
    %67 = vector.broadcast %22 : vector<32x1xf32> to vector<32x256xf32>
    %68 = arith.addf %66, %67 : vector<32x256xf32>
    %69 = math.tanh %68 : vector<32x256xf32>
    %70 = arith.truncf %69 : vector<32x256xf32> to vector<32x256xbf16>
    %cst_37 = arith.constant dense<0.000000e+00> : vector<32x256xf32>
    %71 = tpu.matmul %15, %70, %cst_37 {dimension_numbers = #tpu.dot_dimension_numbers<[1], [0], [0], [1], [0, 0, 1, 1], [], []>} : vector<32x32xbf16>, vector<32x256xbf16>, vector<32x256xf32> -> vector<32x256xf32>
    %72 = vector.broadcast %23 : vector<32x1xf32> to vector<32x256xf32>
    %73 = arith.addf %71, %72 : vector<32x256xf32>
    %74 = math.tanh %73 : vector<32x256xf32>
    %75 = arith.truncf %74 : vector<32x256xf32> to vector<32x256xbf16>
    %cst_38 = arith.constant dense<0.000000e+00> : vector<16x256xf32>
    %76 = tpu.matmul %17, %75, %cst_38 {dimension_numbers = #tpu.dot_dimension_numbers<[1], [0], [0], [1], [0, 0, 1, 1], [], []>} : vector<16x32xbf16>, vector<32x256xbf16>, vector<16x256xf32> -> vector<16x256xf32>
    %77 = vector.extract_strided_slice %76 {offsets = [0, 0], sizes = [1, 256], strides = [1, 1]} : vector<16x256xf32> to vector<1x256xf32>
    %78 = vector.broadcast %13 : f32 to vector<1x256xf32>
    %79 = arith.addf %77, %78 : vector<1x256xf32>
    %80 = vector.broadcast %7 : f32 to vector<1x256xf32>
    %81 = arith.mulf %59, %80 : vector<1x256xf32>
    %82 = vector.broadcast %8 : f32 to vector<1x256xf32>
    %83 = arith.addf %81, %82 : vector<1x256xf32>
    %84 = math.tanh %83 : vector<1x256xf32>
    %85 = vector.broadcast %9 : f32 to vector<1x256xf32>
    %86 = arith.mulf %84, %85 : vector<1x256xf32>
    %87 = vector.broadcast %10 : f32 to vector<1x256xf32>
    %88 = arith.addf %86, %87 : vector<1x256xf32>
    %89 = math.tanh %88 : vector<1x256xf32>
    %90 = vector.broadcast %11 : f32 to vector<1x256xf32>
    %91 = arith.mulf %89, %90 : vector<1x256xf32>
    %92 = vector.broadcast %12 : f32 to vector<1x256xf32>
    %93 = arith.addf %91, %92 : vector<1x256xf32>
    %94 = arith.subf %36, %79 : vector<1x256xf32>
    %95 = arith.mulf %94, %94 : vector<1x256xf32>
    %96 = vector.shape_cast %95 : vector<1x256xf32> to vector<1x1x256xf32>
    %cst_39 = arith.constant dense<0.000000e+00> : vector<1xf32>
    %97 = vector.multi_reduction <add>, %96, %cst_39 [1, 2] : vector<1x1x256xf32> to vector<1xf32>
    %98 = vector.shape_cast %97 : vector<1xf32> to vector<1x1x1xf32>
    %99 = vector.extract %98[0, 0, 0] : f32 from vector<1x1x1xf32>
    %cst_40 = arith.constant 1.000000e+00 : f32
    %100 = vector.broadcast %cst_40 : f32 to vector<1x256xf32>
    %101 = arith.addf %100, %54 : vector<1x256xf32>
    %102 = arith.mulf %52, %52 : vector<1x256xf32>
    %103 = arith.subf %101, %102 : vector<1x256xf32>
    %104 = arith.mulf %57, %57 : vector<1x256xf32>
    %105 = arith.subf %103, %104 : vector<1x256xf32>
    %106 = vector.shape_cast %105 : vector<1x256xf32> to vector<1x1x256xf32>
    %cst_41 = arith.constant dense<0.000000e+00> : vector<1xf32>
    %107 = vector.multi_reduction <add>, %106, %cst_41 [1, 2] : vector<1x1x256xf32> to vector<1xf32>
    %108 = vector.shape_cast %107 : vector<1xf32> to vector<1x1x1xf32>
    %109 = vector.extract %108[0, 0, 0] : f32 from vector<1x1x1xf32>
    %cst_42 = arith.constant -5.000000e-01 : f32
    %110 = arith.mulf %cst_42, %109 : f32
    %cst_43 = arith.constant 0.000000e+00 : f32
    %111 = vector.broadcast %cst_43 : f32 to vector<1x256xf32>
    %112 = arith.subf %111, %93 : vector<1x256xf32>
    %cst_44 = arith.constant 0.000000e+00 : f32
    %113 = vector.broadcast %cst_44 : f32 to vector<1x256xf32>
    %114 = arith.maximumf %112, %113 : vector<1x256xf32>
    %115 = math.absf %112 : vector<1x256xf32>
    %cst_45 = arith.constant 0.000000e+00 : f32
    %116 = vector.broadcast %cst_45 : f32 to vector<1x256xf32>
    %117 = arith.subf %116, %115 : vector<1x256xf32>
    %118 = math.exp %117 : vector<1x256xf32>
    %cst_46 = arith.constant 1.000000e+00 : f32
    %119 = vector.broadcast %cst_46 : f32 to vector<1x256xf32>
    %120 = arith.addf %119, %118 : vector<1x256xf32>
    %121 = math.log %120 : vector<1x256xf32>
    %122 = arith.addf %114, %121 : vector<1x256xf32>
    %cst_47 = arith.constant 0.000000e+00 : f32
    %123 = vector.broadcast %cst_47 : f32 to vector<1x256xf32>
    %124 = arith.subf %123, %122 : vector<1x256xf32>
    %cst_48 = arith.constant 0.000000e+00 : f32
    %125 = vector.broadcast %cst_48 : f32 to vector<1x256xf32>
    %126 = arith.maximumf %93, %125 : vector<1x256xf32>
    %127 = math.absf %93 : vector<1x256xf32>
    %cst_49 = arith.constant 0.000000e+00 : f32
    %128 = vector.broadcast %cst_49 : f32 to vector<1x256xf32>
    %129 = arith.subf %128, %127 : vector<1x256xf32>
    %130 = math.exp %129 : vector<1x256xf32>
    %cst_50 = arith.constant 1.000000e+00 : f32
    %131 = vector.broadcast %cst_50 : f32 to vector<1x256xf32>
    %132 = arith.addf %131, %130 : vector<1x256xf32>
    %133 = math.log %132 : vector<1x256xf32>
    %134 = arith.addf %126, %133 : vector<1x256xf32>
    %cst_51 = arith.constant 0.000000e+00 : f32
    %135 = vector.broadcast %cst_51 : f32 to vector<1x256xf32>
    %136 = arith.subf %135, %134 : vector<1x256xf32>
    %cst_52 = arith.constant 1.900000e+01 : f32
    %137 = vector.broadcast %cst_52 : f32 to vector<1x256xf32>
    %138 = arith.mulf %137, %29 : vector<1x256xf32>
    %139 = arith.mulf %138, %124 : vector<1x256xf32>
    %cst_53 = arith.constant 1.000000e+00 : f32
    %140 = vector.broadcast %cst_53 : f32 to vector<1x256xf32>
    %141 = arith.subf %140, %29 : vector<1x256xf32>
    %142 = arith.mulf %141, %136 : vector<1x256xf32>
    %143 = arith.addf %139, %142 : vector<1x256xf32>
    %cst_54 = arith.constant 0.000000e+00 : f32
    %144 = vector.broadcast %cst_54 : f32 to vector<1x256xf32>
    %145 = arith.subf %144, %143 : vector<1x256xf32>
    %146 = vector.shape_cast %145 : vector<1x256xf32> to vector<1x1x256xf32>
    %cst_55 = arith.constant dense<0.000000e+00> : vector<1xf32>
    %147 = vector.multi_reduction <add>, %146, %cst_55 [1, 2] : vector<1x1x256xf32> to vector<1xf32>
    %148 = vector.shape_cast %147 : vector<1xf32> to vector<1x1x1xf32>
    %149 = vector.extract %148[0, 0, 0] : f32 from vector<1x1x1xf32>
    %150 = tpu.iota {dimensions = array<i32: 1>} : vector<1x256xi32>
    %c0_i32 = arith.constant 0 : i32
    %151 = vector.broadcast %c0_i32 : i32 to vector<1x256xi32>
    %152 = arith.cmpi eq, %150, %151 : vector<1x256xi32>
    %153 = arith.extui %152 : vector<1x256xi1> to vector<1x256xi32>
    %154 = arith.sitofp %153 : vector<1x256xi32> to vector<1x256xf32>
    %155 = vector.broadcast %99 : f32 to vector<1x256xf32>
    %156 = arith.mulf %155, %154 : vector<1x256xf32>
    %c1_i32 = arith.constant 1 : i32
    %157 = vector.broadcast %c1_i32 : i32 to vector<1x256xi32>
    %158 = arith.cmpi eq, %150, %157 : vector<1x256xi32>
    %159 = arith.extui %158 : vector<1x256xi1> to vector<1x256xi32>
    %160 = arith.sitofp %159 : vector<1x256xi32> to vector<1x256xf32>
    %161 = vector.broadcast %110 : f32 to vector<1x256xf32>
    %162 = arith.mulf %161, %160 : vector<1x256xf32>
    %163 = arith.addf %156, %162 : vector<1x256xf32>
    %c2_i32 = arith.constant 2 : i32
    %164 = vector.broadcast %c2_i32 : i32 to vector<1x256xi32>
    %165 = arith.cmpi eq, %150, %164 : vector<1x256xi32>
    %166 = arith.extui %165 : vector<1x256xi1> to vector<1x256xi32>
    %167 = arith.sitofp %166 : vector<1x256xi32> to vector<1x256xf32>
    %168 = vector.broadcast %149 : f32 to vector<1x256xf32>
    %169 = arith.mulf %168, %167 : vector<1x256xf32>
    %170 = arith.addf %163, %169 : vector<1x256xf32>
    %cst_56 = arith.constant 0.000000e+00 : f32
    %171 = vector.broadcast %cst_56 : f32 to vector<2x256xf32>
    %172 = tpu.concatenate %52, %54, %59, %93, %29, %170, %171 in 0 : vector<1x256xf32>, vector<1x256xf32>, vector<1x256xf32>, vector<1x256xf32>, vector<1x256xf32>, vector<1x256xf32>, vector<2x256xf32> -> vector<8x256xf32>
    %c0_57 = arith.constant 0 : index
    %c0_58 = arith.constant 0 : index
    %173 = vector.load %arg6[%c0_57, %c0_58] : memref<8x256xf32, #tpu.memory_space<vmem>>, vector<8x256xf32>
    tpu.vector_store %arg6[%c0_57, %c0_58], %172 {strides = array<i32>} : memref<8x256xf32, #tpu.memory_space<vmem>>, vector<8x256xf32>,
    return
  }
  func.func @transform_0(%arg0: i32) -> (i32, i32) {
    %c0_i32 = arith.constant 0 : i32
    %c0_i32_0 = arith.constant 0 : i32
    return %c0_i32, %arg0 : i32, i32
  }
  func.func @transform_1(%arg0: i32) -> (i32, i32) {
    %c0_i32 = arith.constant 0 : i32
    %c0_i32_0 = arith.constant 0 : i32
    %c0_i32_1 = arith.constant 0 : i32
    return %c0_i32, %c0_i32_0 : i32, i32
  }
  func.func @transform_2(%arg0: i32) -> (i32, i32) {
    %c0_i32 = arith.constant 0 : i32
    %c0_i32_0 = arith.constant 0 : i32
    %c0_i32_1 = arith.constant 0 : i32
    return %c0_i32, %c0_i32_0 : i32, i32
  }
  func.func @transform_3(%arg0: i32) -> (i32, i32) {
    %c0_i32 = arith.constant 0 : i32
    %c0_i32_0 = arith.constant 0 : i32
    %c0_i32_1 = arith.constant 0 : i32
    return %c0_i32, %c0_i32_0 : i32, i32
  }
  func.func @transform_4(%arg0: i32) -> i32 {
    %c0_i32 = arith.constant 0 : i32
    %c0_i32_0 = arith.constant 0 : i32
    return %c0_i32 : i32
  }
  func.func @transform_5(%arg0: i32) -> (i32, i32) {
    %c0_i32 = arith.constant 0 : i32
    %c0_i32_0 = arith.constant 0 : i32
    return %arg0, %c0_i32 : i32, i32
  }
}

</mosaic_0001>

<llo_original>
// kernel: tile.13
$region0: #{tile.13}
  #allocation0 [shape = 's32[1]{0}', space=sflag, size = 0x4, scoped, tag = 'scoped memory for tile.13']
  %s0 = inlined_call_operand.vmem [shape: f32[16], index: 0, kind: input, shape index: {}]
  %s1 = inlined_call_operand.vmem [shape: f32[64,16], index: 1, kind: output, shape index: {}]
  // Predicated region
  $region2: #{tile.13} parent=0 // pred_check
    _
  $region3: #{tile.13} parent=0 // pred_check_branch
    %3 = sbr.rel (0) target = $region5
  $region4: #{tile.13} parent=0 // pred_region
    _
  $region5: #{tile.13} parent=0 // pred_fallthru
    _
  %v4 = vld [vmem:[%s0] ss:$0 sm:$0xff]
  %5 = vst [vmem:[%s1] sm:$0xff] %v4
  %s6 = scalar_lea.vmem %s1, 8
  %7 = vst [vmem:[%s6] sm:$0xff] %v4
  %s8 = scalar_lea.vmem %s1, 16
  %9 = vst [vmem:[%s8] sm:$0xff] %v4
  %s10 = scalar_lea.vmem %s1, 24
  %11 = vst [vmem:[%s10] sm:$0xff] %v4
  %s12 = scalar_lea.vmem %s1, 32
  %13 = vst [vmem:[%s12] sm:$0xff] %v4
  %s14 = scalar_lea.vmem %s1, 40
  %15 = vst [vmem:[%s14] sm:$0xff] %v4
  %s16 = scalar_lea.vmem %s1, 48
  %17 = vst [vmem:[%s16] sm:$0xff] %v4
  %s18 = scalar_lea.vmem %s1, 56
  %19 = vst [vmem:[%s18] sm:$0xff] %v4

// kernel: custom-call.11
$region0: #{custom-call.11}
  %s0 = inlined_call_operand.vmem [shape: f32[16,16], index: 0, kind: input, shape index: {}]
  %s1 = inlined_call_operand.vmem [shape: f32[16,16], index: 1, kind: output, shape index: {0}]
  %s2 = inlined_call_operand.hbm [shape: s32[16], index: 2, kind: output, shape index: {1}]
  %s3 = inlined_call_operand.vmem [shape: s32[16], index: 3, kind: output, shape index: {2}]
  %4 = xla_tuple %s1, %s2, %s3
  $region1: #{custom-call.11} parent=0
    #allocation0 [shape = 'u8[8192]{0}', space=vmem, size = 0x2000, scoped, tag = 'operand span for operand 0']
    #allocation1 [shape = 'u8[8192]{0}', space=vmem, size = 0x2000, scoped, tag = 'operand span for operand 1']
    #allocation2 [shape = 'u8[4096]{0}', space=vmem, size = 0x1000, scoped, tag = 'operand span for operand 2']
    #allocation3 [shape = 'u8[512]{0}', space=vmem, size = 0x400, scoped, tag = 'packed  for operand 2']
    #allocation4 [shape = 's32[1]{0}', space=sflag, size = 0x4, scoped, tag = 'scoped memory for custom-call.11']
    #allocation5 [shape = 'u8[4096]{0}', space=vmem, size = 0x1000, scoped, tag = 'operand span for operand 3']
    #allocation6 [shape = 'u8[512]{0}', space=vmem, size = 0x400, scoped, tag = 'packed  for operand 3']
    #allocation7 [shape = 's32[16,128]{1,0}', space=vmem, size = 0x2000, scoped, tag = 'scratch for permutations']
    %5 = vsyncpa [#allocation4], 0
    %p7 = scmp.gt.s32.totalorder 16, 0
    // Predicated region
    $region2: #{custom-call.11} parent=1 // pred_check
      %p8 = pneg %p7
    $region3: #{custom-call.11} parent=1 // pred_check_branch
      %10 = sbr.rel (%p8) target = $region5
    $region4: #{custom-call.11} parent=1 // pred_region
      %s11 = sshra.s32 16, 3
      %p12 = scmp.gt.s32.totalorder %s11, 0
      // Predicated region
      $region6: #{custom-call.11} parent=4 // pred_check
        %p13 = pneg %p12
      $region7: #{custom-call.11} parent=4 // pred_check_branch
        %15 = sbr.rel (%p13) target = $region9
      $region8: #{custom-call.11} parent=4 // pred_region
        %s16 = ssub.s32 %s11, 1
        %s17 = smul.u32 %s16, 128
        %s18 = sshra.s32 %s17, 4
        %s19 = scalar_lea.vmem %s0, %s18
        %v20 = vld [vmem:[%s0] sm:$0xff]
        // While loop
        $region10: #{custom-call.11} parent=8 // loop_pre_header
          _
        $region11: #{custom-call.11} parent=8 // loop_header
          %s21 = sphi %s0, %s43
          %s22 = sphi [#allocation0], %s44
          %v23 = vphi %v20, %v45
          %s24 = ssub.s32 %s19, 64
          %p25 = scmp.gt.s32.totalorder %s21, %s24
        $region12: #{custom-call.11} parent=8 // loop_header_branch
          %27 = sbr.rel (%p25) target = $region16
        $region13: #{custom-call.11} parent=8 // loop_body
          %28 = vst [vmem:[%s22] sm:$0xff] %v23
          %v29 = vld [vmem:[%s21 + $0x8] sm:$0xff]
          %30 = vst [vmem:[%s22 + $0x8] sm:$0xff] %v29
          %v31 = vld [vmem:[%s21 + $0x10] sm:$0xff]
          %32 = vst [vmem:[%s22 + $0x10] sm:$0xff] %v31
          %v33 = vld [vmem:[%s21 + $0x18] sm:$0xff]
          %34 = vst [vmem:[%s22 + $0x18] sm:$0xff] %v33
          %v35 = vld [vmem:[%s21 + $0x20] sm:$0xff]
          %36 = vst [vmem:[%s22 + $0x20] sm:$0xff] %v35
          %v37 = vld [vmem:[%s21 + $0x28] sm:$0xff]
          %38 = vst [vmem:[%s22 + $0x28] sm:$0xff] %v37
          %v39 = vld [vmem:[%s21 + $0x30] sm:$0xff]
          %40 = vst [vmem:[%s22 + $0x30] sm:$0xff] %v39
          %v41 = vld [vmem:[%s21 + $0x38] sm:$0xff]
          %42 = vst [vmem:[%s22 + $0x38] sm:$0xff] %v41
        $region14: #{custom-call.11} parent=8 // loop_footer
          %s43 = scalar_lea.vmem %s21, 64
          %s44 = scalar_lea.vmem %s22, 64
          %v45 = vld [vmem:[%s21 + $0x40] sm:$0xff]
        $region15: #{custom-call.11} parent=8 // loop_footer_branch
          %46 = sbr.rel target = $region11
        $region16: #{custom-call.11} parent=8 // loop_exit
          _
        // While loop
        $region17: #{custom-call.11} parent=8 // loop_pre_header
          _
        $region18: #{custom-call.11} parent=8 // loop_header
          %s47 = sphi %s21, %s55
          %s48 = sphi %s22, %s56
          %v49 = vphi %v23, %v49
          %p50 = scmp.gt.s32.totalorder %s47, %s19
        $region19: #{custom-call.11} parent=8 // loop_header_branch
          %52 = sbr.rel (%p50) target = $region23
        $region20: #{custom-call.11} parent=8 // loop_body
          %v53 = vld [vmem:[%s47] sm:$0xff]
          %54 = vst [vmem:[%s48] sm:$0xff] %v53
        $region21: #{custom-call.11} parent=8 // loop_footer
          %s55 = scalar_lea.vmem %s47, 8
          %s56 = scalar_lea.vmem %s48, 8
        $region22: #{custom-call.11} parent=8 // loop_footer_branch
          %57 = sbr.rel target = $region18
        $region23: #{custom-call.11} parent=8 // loop_exit
          _
      $region9: #{custom-call.11} parent=4 // pred_fallthru
        _
      %s58 = sand.u32 16, 7
      %s59 = sshll.u32 1, %s58
      %s60 = ssub.s32 %s59, 1
      %s61 = smul.u32 %s11, 128
      %s62 = sshra.s32 %s61, 4
      %s63 = scalar_lea.vmem [#allocation0], %s62
      %s64 = smul.u32 %s11, 128
      %s65 = sshra.s32 %s64, 4
      %s66 = scalar_lea.vmem %s0, %s65
      %v67 = vld [vmem:[%s66] sm:%s60]
      %68 = vst [vmem:[%s63] sm:%s60] %v67
    $region5: #{custom-call.11} parent=1 // pred_fallthru
      _
    %v69 = vld [vmem:[#allocation0] sm:$0xff]
    %70 = vst [vmem:[#allocation1] sm:$0xff] %v69
    %s71 = scalar_lea.vmem [#allocation1], 8
    %s72 = scalar_lea.vmem [#allocation0], 8
    %v73 = vld [vmem:[%s72] sm:$0xff]
    %74 = vst [vmem:[%s71] sm:$0xff] %v73
    %75 = vst [vmem:[#allocation2] sm:$0x1] 0
    %v76 = vlaneseq
    %v77 = vshrl.u32 %v76, 7
    %v78 = vmov %v77
    loop: start=0, step=1, limit=2
    $region24: #{custom-call.11} parent=1 // loop_pre_header
      _
    $region25: #{custom-call.11} parent=1 // loop_header
      %s80 = sphi 0, %s84
      %p81 = scmp.ge.s32.totalorder %s80, 2
    $region26: #{custom-call.11} parent=1 // loop_header_branch
      %83 = sbr.rel (%p81) target = $region30
    $region27: #{custom-call.11} parent=1 // loop_body
      %s85 = smul.addr %s80, 8
      %s86 = scalar_lea.vmem [#allocation7], %s85
      %s87 = smul.u32 %s80, 8
      %v88 = vstv %s87
      %v89 = vadd.s32 %v78, %v88
      %90 = vst [vmem:[%s86] sm:$0xff] %v89
    $region28: #{custom-call.11} parent=1 // loop_footer
      %s84 = sadd.s32 1, %s80
    $region29: #{custom-call.11} parent=1 // loop_footer_branch
      %79 = sbr.rel target = $region25
    $region30: #{custom-call.11} parent=1 // loop_exit
      _
    loop: start=0, step=1, limit=16
    $region31: #{custom-call.11} parent=1 // loop_pre_header
      _
    $region32: #{custom-call.11} parent=1 // loop_header
      %s92 = sphi 0, %s96
      %p93 = scmp.ge.s32.totalorder %s92, 16
    $region33: #{custom-call.11} parent=1 // loop_header_branch
      %95 = sbr.rel (%p93) target = $region37
    $region34: #{custom-call.11} parent=1 // loop_body
      %v97 = vstv %s92
      %v98 = vlaneseq
      %v99 = vshrl.u32 %v98, 7
      %v100 = vmov %v99
      %v101 = vld [vmem:[#allocation1] sm:$0xff]
      %v102 = vand.u32 2147483647, %v101
      %v104 = vstv %s92
      %vm105 = vcmp.ge.s32.totalorder %v100, %v104
      %vm106 = vcmp.lt.s32.totalorder %v100, 16
      %vm107 = vmand %vm105, %vm106
      %vm108 = vcmp.lt.f32.partialorder -inf, %v102
      %vm109 = vmand %vm107, %vm108
      %v110 = vsel %vm109, %v100, %v97
      %v111 = vsel %vm109, %v102, -inf
      %s112 = scalar_lea.vmem [#allocation1], 8
      %v113 = vld [vmem:[%s112] sm:$0xff]
      %v114 = vand.u32 2147483647, %v113
      %v115 = vadd.s32 %v100, 8
      %v116 = vstv %s92
      %vm117 = vcmp.ge.s32.totalorder %v115, %v116
      %vm118 = vcmp.lt.s32.totalorder %v115, 16
      %vm119 = vmand %vm117, %vm118
      %vm120 = vcmp.lt.f32.partialorder %v111, %v114
      %vm121 = vmand %vm119, %vm120
      %v122 = vsel %vm121, %v115, %v110
      %v123 = vsel %vm121, %v114, %v111
      %v124 = vrot.slane %v123, 1
      %v125 = vrot.slane %v122, 1
      %vm126 = vcmp.ge.f32.partialorder %v124, %v123
      %v127 = vsel %vm126, %v124, %v123
      %v128 = vsel %vm126, %v125, %v122
      %v129 = vrot.slane %v124, 1
      %v130 = vrot.slane %v125, 1
      %vm131 = vcmp.ge.f32.partialorder %v129, %v127
      %v132 = vsel %vm131, %v129, %v127
      %v133 = vsel %vm131, %v130, %v128
      %v134 = vrot.slane %v129, 1
      %v135 = vrot.slane %v130, 1
      %vm136 = vcmp.ge.f32.partialorder %v134, %v132
      %v137 = vsel %vm136, %v134, %v132
      %v138 = vsel %vm136, %v135, %v133
      %v139 = vrot.slane %v134, 1
      %v140 = vrot.slane %v135, 1
      %vm141 = vcmp.ge.f32.partialorder %v139, %v137
      %v142 = vsel %vm141, %v139, %v137
      %v143 = vsel %vm141, %v140, %v138
      %v144 = vrot.slane %v139, 1
      %v145 = vrot.slane %v140, 1
      %vm146 = vcmp.ge.f32.partialorder %v144, %v142
      %v147 = vsel %vm146, %v144, %v142
      %v148 = vsel %vm146, %v145, %v143
      %v149 = vrot.slane %v144, 1
      %v150 = vrot.slane %v145, 1
      %vm151 = vcmp.ge.f32.partialorder %v149, %v147
      %v152 = vsel %vm151, %v149, %v147
      %v153 = vsel %vm151, %v150, %v148
      %v154 = vrot.slane %v149, 1
      %v155 = vrot.slane %v150, 1
      %vm156 = vcmp.ge.f32.partialorder %v154, %v152
      %v157 = vsel %vm156, %v154, %v152
      %v158 = vsel %vm156, %v155, %v153
      %s159 = ssub.s32 128, %s92
      %160 = vrot.lane.b32.xlu0 %v158, %s159
      %v161 = vpop.permute.xlu0 %160
      %s162 = vtos %v161
      %v163 = vstv %s92
      %v164 = vlaneseq
      %v165 = vand.u32 %v164, 127
      %vm166 = vcmp.eq.s32.totalorder %v165, %v163
      %v167 = vstv %s162
      %v168 = vld [vmem:[#allocation2] ss:$0 sm:$0xff]
      %v169 = vsel %vm166, %v167, %v168
      %170 = vst [vmem:[#allocation2] sm:$0x1] %v169
      %s171 = scalar_lea.vmem [#allocation1], %s92
      %s172 = scalar_lea.vmem [#allocation1], %s162
      %v173 = vld [vmem:[%s171] ss:$0 sm:$0xff]
      %v174 = vld [vmem:[%s172] ss:$0 sm:$0xff]
      %175 = vst [vmem:[%s172] sm:$0x1] %v173
      %176 = vst [vmem:[%s171] sm:$0x1] %v174
      %s177 = scalar_lea.vmem [#allocation7], %s92
      %s178 = scalar_lea.vmem [#allocation7], %s162
      %v179 = vld [vmem:[%s177] ss:$0 sm:$0xff]
      %v180 = vld [vmem:[%s178] ss:$0 sm:$0xff]
      %181 = vst [vmem:[%s178] sm:$0x1] %v179
      %182 = vst [vmem:[%s177] sm:$0x1] %v180
      %vm183 = vcmp.ne.f32.partialorder %v174, 0.0
      %vm184 = vmand %vm166, %vm183
      %v185 = vsel %vm184, %v174, 1.0
      %v186 = vlaneseq
      %v187 = vand.u32 %v186, 127
      %v188 = vstv %s92
      %vm189 = vcmp.gt.s32.totalorder %v187, %v188
      %v190 = vsel %vm189, %v174, 0.0
      %v191 = vlaneseq
      %v192 = vshrl.u32 %v191, 7
      %v193 = vmov %v192
      %v194 = vld [vmem:[#allocation1] sm:$0xff]
      %v196 = vstv %s92
      %vm197 = vcmp.gt.s32.totalorder %v193, %v196
      %v198 = vsel %vm197, %v185, 1.0
      %v199 = vrcp.pop %v198
      %v200 = vmul.f32 %v194, %v199
      %vm201 = vmand %vm197, %vm166
      %v202 = vsel %vm201, %v200, 0.0
      %203 = vadd.xlane.f32.xlu0 %v202
      %v204 = vpop.xlane.xlu0 %203
      %v205 = vmul.f32 %v204, %v190
      %v206 = vsub.f32 %v200, %v205
      %207 = vst [vmem:[#allocation1] sm:$0xff] %v206
      %s208 = scalar_lea.vmem [#allocation1], 8
      %v209 = vld [vmem:[%s208] sm:$0xff]
      %v210 = vadd.s32 %v193, 8
      %v211 = vstv %s92
      %vm212 = vcmp.gt.s32.totalorder %v210, %v211
      %v213 = vsel %vm212, %v185, 1.0
      %v214 = vrcp.pop %v213
      %v215 = vmul.f32 %v209, %v214
      %vm216 = vmand %vm212, %vm166
      %v217 = vsel %vm216, %v215, 0.0
      %218 = vadd.xlane.f32.xlu0 %v217
      %v219 = vpop.xlane.xlu0 %218
      %v220 = vmul.f32 %v219, %v190
      %v221 = vsub.f32 %v215, %v220
      %222 = vst [vmem:[%s208] sm:$0xff] %v221
    $region35: #{custom-call.11} parent=1 // loop_footer
      %s96 = sadd.s32 1, %s92
    $region36: #{custom-call.11} parent=1 // loop_footer_branch
      %91 = sbr.rel target = $region32
    $region37: #{custom-call.11} parent=1 // loop_exit
      _
    %v223 = vld [vmem:[#allocation7] sm:$0xff]
    %s224 = scalar_lea.vmem [#allocation7], 8
    %v225 = vld [vmem:[%s224] sm:$0xff]
    %s226 = scalar_lea.vmem [#allocation7], 16
    %s227 = scalar_lea.vmem [#allocation7], 24
    %s228 = scalar_lea.vmem [#allocation7], 32
    %s229 = scalar_lea.vmem [#allocation7], 40
    %s230 = scalar_lea.vmem [#allocation7], 48
    %s231 = scalar_lea.vmem [#allocation7], 56
    %s232 = scalar_lea.vmem [#allocation7], 64
    %s233 = scalar_lea.vmem [#allocation7], 72
    %s234 = scalar_lea.vmem [#allocation7], 80
    %s235 = scalar_lea.vmem [#allocation7], 88
    %s236 = scalar_lea.vmem [#allocation7], 96
    %s237 = scalar_lea.vmem [#allocation7], 104
    %s238 = scalar_lea.vmem [#allocation7], 112
    %s239 = scalar_lea.vmem [#allocation7], 120
    %240 = vxpose.xlu0.b32.start [1/16] %v223, 128
    %241 = vxpose.xlu0.b32.cont [2/16] %v225, 128
    %242 = vxpose.xlu0.b32.cont [3/16] 0, 128
    %243 = vxpose.xlu0.b32.cont [4/16] 0, 128
    %244 = vxpose.xlu0.b32.cont [5/16] 0, 128
    %245 = vxpose.xlu0.b32.cont [6/16] 0, 128
    %246 = vxpose.xlu0.b32.cont [7/16] 0, 128
    %247 = vxpose.xlu0.b32.cont [8/16] 0, 128
    %248 = vxpose.xlu0.b32.cont [9/16] 0, 128
    %249 = vxpose.xlu0.b32.cont [10/16] 0, 128
    %250 = vxpose.xlu0.b32.cont [11/16] 0, 128
    %251 = vxpose.xlu0.b32.cont [12/16] 0, 128
    %252 = vxpose.xlu0.b32.cont [13/16] 0, 128
    %253 = vxpose.xlu0.b32.cont [14/16] 0, 128
    %254 = vxpose.xlu0.b32.cont [15/16] 0, 128
    %255 = vxpose.xlu0.b32.end [16/16] 0, 128
    %v256 = vpop.trf.xlu0
    %v257 = vpop.trf.xlu0
    %v258 = vpop.trf.xlu0
    %v259 = vpop.trf.xlu0
    %v260 = vpop.trf.xlu0
    %v261 = vpop.trf.xlu0
    %v262 = vpop.trf.xlu0
    %v263 = vpop.trf.xlu0
    %v264 = vpop.trf.xlu0
    %v265 = vpop.trf.xlu0
    %v266 = vpop.trf.xlu0
    %v267 = vpop.trf.xlu0
    %v268 = vpop.trf.xlu0
    %v269 = vpop.trf.xlu0
    %v270 = vpop.trf.xlu0
    %v271 = vpop.trf.xlu0
    %272 = vst [vmem:[#allocation5] sm:$0x1] %v256
    %s274 = sshll.u32 1, 1
    %s275 = ssub.s32 %s274, 1
    %v277 = vld [vmem:[#allocation2] sm:%s275]
    %s278 = sshll.u32 1, 1
    %s279 = ssub.s32 %s278, 1
    %280 = vst [vmem:[#allocation3] sm:%s279] %v277
    %s282 = sshll.u32 1, 1
    %s283 = ssub.s32 %s282, 1
    %v285 = vld [vmem:[#allocation5] sm:%s283]
    %s286 = sshll.u32 1, 1
    %s287 = ssub.s32 %s286, 1
    %288 = vst [vmem:[#allocation6] sm:%s287] %v285
    %p290 = scmp.gt.s32.totalorder 16, 0
    // Predicated region
    $region38: #{custom-call.11} parent=1 // pred_check
      %p291 = pneg %p290
    $region39: #{custom-call.11} parent=1 // pred_check_branch
      %293 = sbr.rel (%p291) target = $region41
    $region40: #{custom-call.11} parent=1 // pred_region
      %s294 = sshra.s32 16, 3
      %p295 = scmp.gt.s32.totalorder %s294, 0
      // Predicated region
      $region42: #{custom-call.11} parent=40 // pred_check
        %p296 = pneg %p295
      $region43: #{custom-call.11} parent=40 // pred_check_branch
        %298 = sbr.rel (%p296) target = $region45
      $region44: #{custom-call.11} parent=40 // pred_region
        %s299 = ssub.s32 %s294, 1
        %s300 = smul.u32 %s299, 128
        %s301 = sshra.s32 %s300, 4
        %s302 = scalar_lea.vmem [#allocation1], %s301
        %v303 = vld [vmem:[#allocation1] sm:$0xff]
        // While loop
        $region46: #{custom-call.11} parent=44 // loop_pre_header
          _
        $region47: #{custom-call.11} parent=44 // loop_header
          %s304 = sphi [#allocation1], %s326
          %s305 = sphi %s1, %s327
          %v306 = vphi %v303, %v328
          %s307 = ssub.s32 %s302, 64
          %p308 = scmp.gt.s32.totalorder %s304, %s307
        $region48: #{custom-call.11} parent=44 // loop_header_branch
          %310 = sbr.rel (%p308) target = $region52
        $region49: #{custom-call.11} parent=44 // loop_body
          %311 = vst [vmem:[%s305] sm:$0xff] %v306
          %v312 = vld [vmem:[%s304 + $0x8] sm:$0xff]
          %313 = vst [vmem:[%s305 + $0x8] sm:$0xff] %v312
          %v314 = vld [vmem:[%s304 + $0x10] sm:$0xff]
          %315 = vst [vmem:[%s305 + $0x10] sm:$0xff] %v314
          %v316 = vld [vmem:[%s304 + $0x18] sm:$0xff]
          %317 = vst [vmem:[%s305 + $0x18] sm:$0xff] %v316
          %v318 = vld [vmem:[%s304 + $0x20] sm:$0xff]
          %319 = vst [vmem:[%s305 + $0x20] sm:$0xff] %v318
          %v320 = vld [vmem:[%s304 + $0x28] sm:$0xff]
          %321 = vst [vmem:[%s305 + $0x28] sm:$0xff] %v320
          %v322 = vld [vmem:[%s304 + $0x30] sm:$0xff]
          %323 = vst [vmem:[%s305 + $0x30] sm:$0xff] %v322
          %v324 = vld [vmem:[%s304 + $0x38] sm:$0xff]
          %325 = vst [vmem:[%s305 + $0x38] sm:$0xff] %v324
        $region50: #{custom-call.11} parent=44 // loop_footer
          %s326 = scalar_lea.vmem %s304, 64
          %s327 = scalar_lea.vmem %s305, 64
          %v328 = vld [vmem:[%s304 + $0x40] sm:$0xff]
        $region51: #{custom-call.11} parent=44 // loop_footer_branch
          %329 = sbr.rel target = $region47
        $region52: #{custom-call.11} parent=44 // loop_exit
          _
        // While loop
        $region53: #{custom-call.11} parent=44 // loop_pre_header
          _
        $region54: #{custom-call.11} parent=44 // loop_header
          %s330 = sphi %s304, %s338
          %s331 = sphi %s305, %s339
          %v332 = vphi %v306, %v332
          %p333 = scmp.gt.s32.totalorder %s330, %s302
        $region55: #{custom-call.11} parent=44 // loop_header_branch
          %335 = sbr.rel (%p333) target = $region59
        $region56: #{custom-call.11} parent=44 // loop_body
          %v336 = vld [vmem:[%s330] sm:$0xff]
          %337 = vst [vmem:[%s331] sm:$0xff] %v336
        $region57: #{custom-call.11} parent=44 // loop_footer
          %s338 = scalar_lea.vmem %s330, 8
          %s339 = scalar_lea.vmem %s331, 8
        $region58: #{custom-call.11} parent=44 // loop_footer_branch
          %340 = sbr.rel target = $region54
        $region59: #{custom-call.11} parent=44 // loop_exit
          _
      $region45: #{custom-call.11} parent=40 // pred_fallthru
        _
      %s341 = sand.u32 16, 7
      %s342 = sshll.u32 1, %s341
      %s343 = ssub.s32 %s342, 1
      %s344 = smul.u32 %s294, 128
      %s345 = sshra.s32 %s344, 4
      %s346 = scalar_lea.vmem %s1, %s345
      %s347 = smul.u32 %s294, 128
      %s348 = sshra.s32 %s347, 4
      %s349 = scalar_lea.vmem [#allocation1], %s348
      %v350 = vld [vmem:[%s349] sm:%s343]
      %351 = vst [vmem:[%s346] sm:%s343] %v350
    $region41: #{custom-call.11} parent=1 // pred_fallthru
      _
    // Predicated region
    $region60: #{custom-call.11} parent=1 // pred_check
      _
    $region61: #{custom-call.11} parent=1 // pred_check_branch
      %353 = sbr.rel (0) target = $region63
    $region62: #{custom-call.11} parent=1 // pred_region
      %s355 = ssub.s32 16, 16
      %356 = vsyncadd [#allocation4], %s355
      %s357 = sshll.u32 [#allocation3], 4
      %s358 = int_to_ptr.vmem [resolvable:$true] %s357
      %360 = dma.vmem_to_hbm [thread:$0]  %s358, 16, %s2, [#allocation4]
    $region63: #{custom-call.11} parent=1 // pred_fallthru
      _
    // Predicated region
    $region64: #{custom-call.11} parent=1 // pred_check
      _
    $region65: #{custom-call.11} parent=1 // pred_check_branch
      %362 = sbr.rel (0) target = $region67
    $region66: #{custom-call.11} parent=1 // pred_region
      %p364 = scmp.gt.s32.totalorder 1, 0
      // Predicated region
      $region68: #{custom-call.11} parent=66 // pred_check
        %p365 = pneg %p364
      $region69: #{custom-call.11} parent=66 // pred_check_branch
        %367 = sbr.rel (%p365) target = $region71
      $region70: #{custom-call.11} parent=66 // pred_region
        %s368 = sshra.s32 1, 3
        %p369 = scmp.gt.s32.totalorder %s368, 0
        // Predicated region
        $region72: #{custom-call.11} parent=70 // pred_check
          %p370 = pneg %p369
        $region73: #{custom-call.11} parent=70 // pred_check_branch
          %372 = sbr.rel (%p370) target = $region75
        $region74: #{custom-call.11} parent=70 // pred_region
          %s373 = ssub.s32 %s368, 1
          %s374 = smul.u32 %s373, 128
          %s375 = sshra.s32 %s374, 4
          %s376 = scalar_lea.vmem [#allocation6], %s375
          %v377 = vld [vmem:[#allocation6] sm:$0xff]
          // While loop
          $region76: #{custom-call.11} parent=74 // loop_pre_header
            _
          $region77: #{custom-call.11} parent=74 // loop_header
            %s378 = sphi [#allocation6], %s400
            %s379 = sphi %s3, %s401
            %v380 = vphi %v377, %v402
            %s381 = ssub.s32 %s376, 64
            %p382 = scmp.gt.s32.totalorder %s378, %s381
          $region78: #{custom-call.11} parent=74 // loop_header_branch
            %384 = sbr.rel (%p382) target = $region82
          $region79: #{custom-call.11} parent=74 // loop_body
            %385 = vst [vmem:[%s379] sm:$0xff] %v380
            %v386 = vld [vmem:[%s378 + $0x8] sm:$0xff]
            %387 = vst [vmem:[%s379 + $0x8] sm:$0xff] %v386
            %v388 = vld [vmem:[%s378 + $0x10] sm:$0xff]
            %389 = vst [vmem:[%s379 + $0x10] sm:$0xff] %v388
            %v390 = vld [vmem:[%s378 + $0x18] sm:$0xff]
            %391 = vst [vmem:[%s379 + $0x18] sm:$0xff] %v390
            %v392 = vld [vmem:[%s378 + $0x20] sm:$0xff]
            %393 = vst [vmem:[%s379 + $0x20] sm:$0xff] %v392
            %v394 = vld [vmem:[%s378 + $0x28] sm:$0xff]
            %395 = vst [vmem:[%s379 + $0x28] sm:$0xff] %v394
            %v396 = vld [vmem:[%s378 + $0x30] sm:$0xff]
            %397 = vst [vmem:[%s379 + $0x30] sm:$0xff] %v396
            %v398 = vld [vmem:[%s378 + $0x38] sm:$0xff]
            %399 = vst [vmem:[%s379 + $0x38] sm:$0xff] %v398
          $region80: #{custom-call.11} parent=74 // loop_footer
            %s400 = scalar_lea.vmem %s378, 64
            %s401 = scalar_lea.vmem %s379, 64
            %v402 = vld [vmem:[%s378 + $0x40] sm:$0xff]
          $region81: #{custom-call.11} parent=74 // loop_footer_branch
            %403 = sbr.rel target = $region77
          $region82: #{custom-call.11} parent=74 // loop_exit
            _
          // While loop
          $region83: #{custom-call.11} parent=74 // loop_pre_header
            _
          $region84: #{custom-call.11} parent=74 // loop_header
            %s404 = sphi %s378, %s412
            %s405 = sphi %s379, %s413
            %v406 = vphi %v380, %v406
            %p407 = scmp.gt.s32.totalorder %s404, %s376
          $region85: #{custom-call.11} parent=74 // loop_header_branch
            %409 = sbr.rel (%p407) target = $region89
          $region86: #{custom-call.11} parent=74 // loop_body
            %v410 = vld [vmem:[%s404] sm:$0xff]
            %411 = vst [vmem:[%s405] sm:$0xff] %v410
          $region87: #{custom-call.11} parent=74 // loop_footer
            %s412 = scalar_lea.vmem %s404, 8
            %s413 = scalar_lea.vmem %s405, 8
          $region88: #{custom-call.11} parent=74 // loop_footer_branch
            %414 = sbr.rel target = $region84
          $region89: #{custom-call.11} parent=74 // loop_exit
            _
        $region75: #{custom-call.11} parent=70 // pred_fallthru
          _
        %s415 = sand.u32 1, 7
        %s416 = sshll.u32 1, %s415
        %s417 = ssub.s32 %s416, 1
        %s418 = smul.u32 %s368, 128
        %s419 = sshra.s32 %s418, 4
        %s420 = scalar_lea.vmem %s3, %s419
        %s421 = smul.u32 %s368, 128
        %s422 = sshra.s32 %s421, 4
        %s423 = scalar_lea.vmem [#allocation6], %s422
        %v424 = vld [vmem:[%s423] sm:%s417]
        %425 = vst [vmem:[%s420] sm:%s417] %v424
      $region71: #{custom-call.11} parent=66 // pred_fallthru
        _
    $region67: #{custom-call.11} parent=1 // pred_fallthru
      _
    // Predicated region
    $region90: #{custom-call.11} parent=1 // pred_check
      _
    $region91: #{custom-call.11} parent=1 // pred_check_branch
      %427 = sbr.rel (0) target = $region93
    $region92: #{custom-call.11} parent=1 // pred_region
      %428 = dma.done [#allocation4], 16
    $region93: #{custom-call.11} parent=1 // pred_fallthru
      _
    // Predicated region
    $region94: #{custom-call.11} parent=1 // pred_check
      _
    $region95: #{custom-call.11} parent=1 // pred_check_branch
      %430 = sbr.rel (0) target = $region97
    $region96: #{custom-call.11} parent=1 // pred_region
      _
    $region97: #{custom-call.11} parent=1 // pred_fallthru
      _
    %431 = vsyncpa [#allocation4], 1

// kernel: custom-call.13
$region0: #{custom-call.13}
  %s0 = inlined_call_operand.vmem [shape: f32[1,16,16], index: 0, kind: input, shape index: {}]
  %s1 = inlined_call_operand.vmem [shape: f32[1,16,16], index: 1, kind: output, shape index: {}]
  $region1: #{custom-call.13} parent=0
    #allocation0 [shape = 'u8[8192]{0}', space=vmem, size = 0x2000, scoped, tag = 'operand span for operand 0']
    #allocation1 [shape = 'u8[8192]{0}', space=vmem, size = 0x2000, scoped, tag = 'operand span for operand 1']
    #allocation2 [shape = 'f32[16,16]{1,0}', space=vmem, size = 0x2000, scoped, tag = 'rescaled input a']
    // Predicated region
    $region2: #{custom-call.13} parent=1 // pred_check
      _
    $region3: #{custom-call.13} parent=1 // pred_check_branch
      %3 = sbr.rel (0) target = $region5
    $region4: #{custom-call.13} parent=1 // pred_region
      // Predicated region
      $region6: #{custom-call.13} parent=4 // pred_check
        _
      $region7: #{custom-call.13} parent=4 // pred_check_branch
        %5 = sbr.rel (0) target = $region9
      $region8: #{custom-call.13} parent=4 // pred_region
        // Predicated region
        $region21: #{custom-call.13} parent=8 // pred_check
          _
        $region22: #{custom-call.13} parent=8 // pred_check_branch
          %23 = sbr.rel (0) target = $region24
        $region23: #{custom-call.13} parent=8 // pred_region
          loop: start=0, step=1, limit=1
          $region25: #{custom-call.13} parent=23 // loop_pre_header
            _
          $region26: #{custom-call.13} parent=23 // loop_header
            %s25 = sphi 0, %s29
            %p26 = scmp.ge.s32.totalorder %s25, 1
            %s30 = sphi %s0, %s0
            %s31 = sphi [#allocation0], [#allocation0]
          $region27: #{custom-call.13} parent=23 // loop_header_branch
            %28 = sbr.rel (%p26) target = $region31
          $region28: #{custom-call.13} parent=23 // loop_body
            %v32 = vld [vmem:[%s30] sm:$0xff]
            %33 = vst [vmem:[%s31] sm:$0xff] %v32
            %v34 = vld [vmem:[%s30 + $0x8] sm:$0xff]
            %35 = vst [vmem:[%s31 + $0x8] sm:$0xff] %v34
          $region29: #{custom-call.13} parent=23 // loop_footer
            %s29 = sadd.s32 1, %s25
          $region30: #{custom-call.13} parent=23 // loop_footer_branch
            %24 = sbr.rel target = $region26
          $region31: #{custom-call.13} parent=23 // loop_exit
            _
        $region24: #{custom-call.13} parent=8 // pred_fallthru
          _
        // Predicated region
        $region32: #{custom-call.13} parent=8 // pred_check
          _
        $region33: #{custom-call.13} parent=8 // pred_check_branch
          %37 = sbr.rel target = $region35
        $region34: #{custom-call.13} parent=8 // pred_region
          _
        $region35: #{custom-call.13} parent=8 // pred_fallthru
          _
      $region9: #{custom-call.13} parent=4 // pred_fallthru
        _
      // Predicated region
      $region10: #{custom-call.13} parent=4 // pred_check
        _
      $region11: #{custom-call.13} parent=4 // pred_check_branch
        %7 = sbr.rel target = $region13
      $region12: #{custom-call.13} parent=4 // pred_region
        %s9 = ssub.s32 256, 1
        loop: start=0, step=1, limit=1
        $region14: #{custom-call.13} parent=12 // loop_pre_header
          _
        $region15: #{custom-call.13} parent=12 // loop_header
          %s11 = sphi 0, %s15
          %p12 = scmp.ge.s32.totalorder %s11, 1
          %s16 = sphi %s0, %s0
          %s17 = sphi [#allocation0], [#allocation0]
        $region16: #{custom-call.13} parent=12 // loop_header_branch
          %14 = sbr.rel (%p12) target = $region20
        $region17: #{custom-call.13} parent=12 // loop_body
          %v18 = vld [vmem:[%s16] sm:%s9]
          %19 = vst [vmem:[%s17] sm:%s9] %v18
          %v20 = vld [vmem:[%s16 + $0x8] sm:%s9]
          %21 = vst [vmem:[%s17 + $0x8] sm:%s9] %v20
        $region18: #{custom-call.13} parent=12 // loop_footer
          %s15 = sadd.s32 1, %s11
        $region19: #{custom-call.13} parent=12 // loop_footer_branch
          %10 = sbr.rel target = $region15
        $region20: #{custom-call.13} parent=12 // loop_exit
          _
      $region13: #{custom-call.13} parent=4 // pred_fallthru
        _
    $region5: #{custom-call.13} parent=1 // pred_fallthru
      _
    %38 = vnop
    %v39 = vlaneseq
    %v40 = vand.u32 %v39, 127
    %vm41 = vcmp.lt.s32.totalorder %v40, 16
    %v42 = vlaneseq
    %v43 = vshrl.u32 %v42, 7
    %vm45 = vcmp.eq.s32.totalorder %v43, %v40
    %v46 = vld [vmem:[#allocation0] sm:$0xff]
    %v47 = vsel %vm45, %v46, 0.0
    %48 = vadd.xlane.f32.xlu0 %v47
    %v49 = vpop.xlane.xlu0 %48
    %vm50 = vcmp.ge.s32.totalorder %v43, %v40
    %vm51 = vmand %vm50, %vm41
    %v52 = vsel %vm51, %v46, 0.0
    %v53 = vrcp.pop %v49
    %v54 = vmul.f32 %v52, %v53
    %55 = vst [vmem:[#allocation2] sm:$0xff] %v54
    %s56 = scalar_lea.vmem [#allocation0], 8
    %s57 = scalar_lea.vmem [#allocation2], 8
    %v58 = vlaneseq
    %v59 = vshrl.u32 %v58, 7
    %v60 = vadd.s32 %v59, 8
    %vm61 = vcmp.eq.s32.totalorder %v60, %v40
    %v62 = vld [vmem:[%s56] sm:$0xff]
    %v63 = vsel %vm61, %v62, 0.0
    %64 = vadd.xlane.f32.xlu0 %v63
    %v65 = vpop.xlane.xlu0 %64
    %vm66 = vcmp.ge.s32.totalorder %v60, %v40
    %vm67 = vmand %vm66, %vm41
    %v68 = vsel %vm67, %v62, 0.0
    %v69 = vrcp.pop %v65
    %v70 = vmul.f32 %v68, %v69
    %71 = vst [vmem:[%s57] sm:$0xff] %v70
    %v72 = vlaneseq
    %v73 = vand.u32 %v72, 127
    %v74 = vlaneseq
    %v75 = vshrl.u32 %v74, 7
    %vm77 = vcmp.eq.s32.totalorder %v73, %v75
    %v78 = vlaneseq
    %v79 = vand.u32 %v78, 127
    %vm80 = vcmp.eq.s32.totalorder %v79, 0
    %v81 = vsel %vm80, 1.0, -1.0
    %v82 = vsel %vm77, %v81, 0.0
    %v83 = vlaneseq
    %v84 = vand.u32 %v83, 127
    %v85 = vlaneseq
    %v86 = vshrl.u32 %v85, 7
    %v87 = vadd.s32 %v86, 8
    %vm88 = vcmp.eq.s32.totalorder %v84, %v87
    %v89 = vsel %vm88, -1.0, 0.0
    %s90 = scalar_lea.vmem [#allocation2], 1
    %v91 = vld [vmem:[%s90] ss:$0 sm:$0xff]
    %v92 = vxor.u32 %v91, 2147483648
    %v93 = vlaneseq
    %v94 = vand.u32 %v93, 127
    %vm95 = vcmp.eq.s32.totalorder %v94, 1
    %v96 = vmul.f32 %v92, %v82
    %97 = vadd.xlane.f32.xlu0 %v96
    %v98 = vpop.xlane.xlu0 %97
    %v99 = vsel %vm95, %v98, %v82
    %s100 = scalar_lea.vmem [#allocation2], 2
    %v101 = vld [vmem:[%s100] ss:$0 sm:$0xff]
    %v102 = vxor.u32 %v101, 2147483648
    %v103 = vlaneseq
    %v104 = vand.u32 %v103, 127
    %vm105 = vcmp.eq.s32.totalorder %v104, 2
    %v106 = vmul.f32 %v102, %v99
    %107 = vadd.xlane.f32.xlu0 %v106
    %v108 = vpop.xlane.xlu0 %107
    %v109 = vsel %vm105, %v108, %v99
    %s110 = scalar_lea.vmem [#allocation2], 3
    %v111 = vld [vmem:[%s110] ss:$0 sm:$0xff]
    %v112 = vxor.u32 %v111, 2147483648
    %v113 = vlaneseq
    %v114 = vand.u32 %v113, 127
    %vm115 = vcmp.eq.s32.totalorder %v114, 3
    %v116 = vmul.f32 %v112, %v109
    %117 = vadd.xlane.f32.xlu0 %v116
    %v118 = vpop.xlane.xlu0 %117
    %v119 = vsel %vm115, %v118, %v109
    %s120 = scalar_lea.vmem [#allocation2], 4
    %v121 = vld [vmem:[%s120] ss:$0 sm:$0xff]
    %v122 = vxor.u32 %v121, 2147483648
    %v123 = vlaneseq
    %v124 = vand.u32 %v123, 127
    %vm125 = vcmp.eq.s32.totalorder %v124, 4
    %v126 = vmul.f32 %v122, %v119
    %127 = vadd.xlane.f32.xlu0 %v126
    %v128 = vpop.xlane.xlu0 %127
    %v129 = vsel %vm125, %v128, %v119
    %s130 = scalar_lea.vmem [#allocation2], 5
    %v131 = vld [vmem:[%s130] ss:$0 sm:$0xff]
    %v132 = vxor.u32 %v131, 2147483648
    %v133 = vlaneseq
    %v134 = vand.u32 %v133, 127
    %vm135 = vcmp.eq.s32.totalorder %v134, 5
    %v136 = vmul.f32 %v132, %v129
    %137 = vadd.xlane.f32.xlu0 %v136
    %v138 = vpop.xlane.xlu0 %137
    %v139 = vsel %vm135, %v138, %v129
    %s140 = scalar_lea.vmem [#allocation2], 6
    %v141 = vld [vmem:[%s140] ss:$0 sm:$0xff]
    %v142 = vxor.u32 %v141, 2147483648
    %v143 = vlaneseq
    %v144 = vand.u32 %v143, 127
    %vm145 = vcmp.eq.s32.totalorder %v144, 6
    %v146 = vmul.f32 %v142, %v139
    %147 = vadd.xlane.f32.xlu0 %v146
    %v148 = vpop.xlane.xlu0 %147
    %v149 = vsel %vm145, %v148, %v139
    %s150 = scalar_lea.vmem [#allocation2], 7
    %v151 = vld [vmem:[%s150] ss:$0 sm:$0xff]
    %v152 = vxor.u32 %v151, 2147483648
    %v153 = vlaneseq
    %v154 = vand.u32 %v153, 127
    %vm155 = vcmp.eq.s32.totalorder %v154, 7
    %v156 = vmul.f32 %v152, %v149
    %157 = vadd.xlane.f32.xlu0 %v156
    %v158 = vpop.xlane.xlu0 %157
    %v159 = vsel %vm155, %v158, %v149
    %s160 = scalar_lea.vmem [#allocation2], 8
    %v161 = vld [vmem:[%s160] ss:$0 sm:$0xff]
    %v162 = vxor.u32 %v161, 2147483648
    %v163 = vlaneseq
    %v164 = vand.u32 %v163, 127
    %vm165 = vcmp.eq.s32.totalorder %v164, 8
    %v166 = vmul.f32 %v162, %v159
    %167 = vadd.xlane.f32.xlu0 %v166
    %v168 = vpop.xlane.xlu0 %167
    %v169 = vsel %vm165, %v168, %v159
    %v170 = vmul.f32 %v162, %v89
    %171 = vadd.xlane.f32.xlu0 %v170
    %v172 = vpop.xlane.xlu0 %171
    %v173 = vsel %vm165, %v172, %v89
    %s174 = scalar_lea.vmem [#allocation2], 9
    %v175 = vld [vmem:[%s174] ss:$0 sm:$0xff]
    %v176 = vxor.u32 %v175, 2147483648
    %v177 = vlaneseq
    %v178 = vand.u32 %v177, 127
    %vm179 = vcmp.eq.s32.totalorder %v178, 9
    %v180 = vmul.f32 %v176, %v169
    %181 = vadd.xlane.f32.xlu0 %v180
    %v182 = vpop.xlane.xlu0 %181
    %v183 = vsel %vm179, %v182, %v169
    %v184 = vmul.f32 %v176, %v173
    %185 = vadd.xlane.f32.xlu0 %v184
    %v186 = vpop.xlane.xlu0 %185
    %v187 = vsel %vm179, %v186, %v173
    %s188 = scalar_lea.vmem [#allocation2], 10
    %v189 = vld [vmem:[%s188] ss:$0 sm:$0xff]
    %v190 = vxor.u32 %v189, 2147483648
    %v191 = vlaneseq
    %v192 = vand.u32 %v191, 127
    %vm193 = vcmp.eq.s32.totalorder %v192, 10
    %v194 = vmul.f32 %v190, %v183
    %195 = vadd.xlane.f32.xlu0 %v194
    %v196 = vpop.xlane.xlu0 %195
    %v197 = vsel %vm193, %v196, %v183
    %v198 = vmul.f32 %v190, %v187
    %199 = vadd.xlane.f32.xlu0 %v198
    %v200 = vpop.xlane.xlu0 %199
    %v201 = vsel %vm193, %v200, %v187
    %s202 = scalar_lea.vmem [#allocation2], 11
    %v203 = vld [vmem:[%s202] ss:$0 sm:$0xff]
    %v204 = vxor.u32 %v203, 2147483648
    %v205 = vlaneseq
    %v206 = vand.u32 %v205, 127
    %vm207 = vcmp.eq.s32.totalorder %v206, 11
    %v208 = vmul.f32 %v204, %v197
    %209 = vadd.xlane.f32.xlu0 %v208
    %v210 = vpop.xlane.xlu0 %209
    %v211 = vsel %vm207, %v210, %v197
    %v212 = vmul.f32 %v204, %v201
    %213 = vadd.xlane.f32.xlu0 %v212
    %v214 = vpop.xlane.xlu0 %213
    %v215 = vsel %vm207, %v214, %v201
    %s216 = scalar_lea.vmem [#allocation2], 12
    %v217 = vld [vmem:[%s216] ss:$0 sm:$0xff]
    %v218 = vxor.u32 %v217, 2147483648
    %v219 = vlaneseq
    %v220 = vand.u32 %v219, 127
    %vm221 = vcmp.eq.s32.totalorder %v220, 12
    %v222 = vmul.f32 %v218, %v211
    %223 = vadd.xlane.f32.xlu0 %v222
    %v224 = vpop.xlane.xlu0 %223
    %v225 = vsel %vm221, %v224, %v211
    %v226 = vmul.f32 %v218, %v215
    %227 = vadd.xlane.f32.xlu0 %v226
    %v228 = vpop.xlane.xlu0 %227
    %v229 = vsel %vm221, %v228, %v215
    %s230 = scalar_lea.vmem [#allocation2], 13
    %v231 = vld [vmem:[%s230] ss:$0 sm:$0xff]
    %v232 = vxor.u32 %v231, 2147483648
    %v233 = vlaneseq
    %v234 = vand.u32 %v233, 127
    %vm235 = vcmp.eq.s32.totalorder %v234, 13
    %v236 = vmul.f32 %v232, %v225
    %237 = vadd.xlane.f32.xlu0 %v236
    %v238 = vpop.xlane.xlu0 %237
    %v239 = vsel %vm235, %v238, %v225
    %v240 = vmul.f32 %v232, %v229
    %241 = vadd.xlane.f32.xlu0 %v240
    %v242 = vpop.xlane.xlu0 %241
    %v243 = vsel %vm235, %v242, %v229
    %s244 = scalar_lea.vmem [#allocation2], 14
    %v245 = vld [vmem:[%s244] ss:$0 sm:$0xff]
    %v246 = vxor.u32 %v245, 2147483648
    %v247 = vlaneseq
    %v248 = vand.u32 %v247, 127
    %vm249 = vcmp.eq.s32.totalorder %v248, 14
    %v250 = vmul.f32 %v246, %v239
    %251 = vadd.xlane.f32.xlu0 %v250
    %v252 = vpop.xlane.xlu0 %251
    %v253 = vsel %vm249, %v252, %v239
    %v254 = vmul.f32 %v246, %v243
    %255 = vadd.xlane.f32.xlu0 %v254
    %v256 = vpop.xlane.xlu0 %255
    %v257 = vsel %vm249, %v256, %v243
    %s258 = scalar_lea.vmem [#allocation2], 15
    %v259 = vld [vmem:[%s258] ss:$0 sm:$0xff]
    %v260 = vxor.u32 %v259, 2147483648
    %v261 = vlaneseq
    %v262 = vand.u32 %v261, 127
    %vm263 = vcmp.eq.s32.totalorder %v262, 15
    %v264 = vmul.f32 %v260, %v253
    %265 = vadd.xlane.f32.xlu0 %v264
    %v266 = vpop.xlane.xlu0 %265
    %v267 = vsel %vm263, %v266, %v253
    %v268 = vmul.f32 %v260, %v257
    %269 = vadd.xlane.f32.xlu0 %v268
    %v270 = vpop.xlane.xlu0 %269
    %v271 = vsel %vm263, %v270, %v257
    %v272 = vrcp.pop %v49
    %v273 = vmul.f32 %v267, %v272
    %vm274 = vweird.f32 %v49
    %v275 = vsel %vm274, %v267, %v273
    %276 = vst [vmem:[#allocation1] sm:$0xff] %v275
    %v277 = vrcp.pop %v65
    %v278 = vmul.f32 %v271, %v277
    %vm279 = vweird.f32 %v65
    %v280 = vsel %vm279, %v271, %v278
    %s281 = scalar_lea.vmem [#allocation1], 8
    %282 = vst [vmem:[%s281] sm:$0xff] %v280
    // Predicated region
    $region36: #{custom-call.13} parent=1 // pred_check
      _
    $region37: #{custom-call.13} parent=1 // pred_check_branch
      %284 = sbr.rel (0) target = $region39
    $region38: #{custom-call.13} parent=1 // pred_region
      // Predicated region
      $region40: #{custom-call.13} parent=38 // pred_check
        _
      $region41: #{custom-call.13} parent=38 // pred_check_branch
        %286 = sbr.rel (0) target = $region43
      $region42: #{custom-call.13} parent=38 // pred_region
        // Predicated region
        $region55: #{custom-call.13} parent=42 // pred_check
          _
        $region56: #{custom-call.13} parent=42 // pred_check_branch
          %304 = sbr.rel (0) target = $region58
        $region57: #{custom-call.13} parent=42 // pred_region
          loop: start=0, step=1, limit=1
          $region59: #{custom-call.13} parent=57 // loop_pre_header
            _
          $region60: #{custom-call.13} parent=57 // loop_header
            %s306 = sphi 0, %s310
            %p307 = scmp.ge.s32.totalorder %s306, 1
            %s311 = sphi [#allocation1], [#allocation1]
            %s312 = sphi %s1, %s1
          $region61: #{custom-call.13} parent=57 // loop_header_branch
            %309 = sbr.rel (%p307) target = $region65
          $region62: #{custom-call.13} parent=57 // loop_body
            %v313 = vld [vmem:[%s311] sm:$0xff]
            %314 = vst [vmem:[%s312] sm:$0xff] %v313
            %v315 = vld [vmem:[%s311 + $0x8] sm:$0xff]
            %316 = vst [vmem:[%s312 + $0x8] sm:$0xff] %v315
          $region63: #{custom-call.13} parent=57 // loop_footer
            %s310 = sadd.s32 1, %s306
          $region64: #{custom-call.13} parent=57 // loop_footer_branch
            %305 = sbr.rel target = $region60
          $region65: #{custom-call.13} parent=57 // loop_exit
            _
        $region58: #{custom-call.13} parent=42 // pred_fallthru
          _
        // Predicated region
        $region66: #{custom-call.13} parent=42 // pred_check
          _
        $region67: #{custom-call.13} parent=42 // pred_check_branch
          %318 = sbr.rel target = $region69
        $region68: #{custom-call.13} parent=42 // pred_region
          _
        $region69: #{custom-call.13} parent=42 // pred_fallthru
          _
      $region43: #{custom-call.13} parent=38 // pred_fallthru
        _
      // Predicated region
      $region44: #{custom-call.13} parent=38 // pred_check
        _
      $region45: #{custom-call.13} parent=38 // pred_check_branch
        %288 = sbr.rel target = $region47
      $region46: #{custom-call.13} parent=38 // pred_region
        %s290 = ssub.s32 256, 1
        loop: start=0, step=1, limit=1
        $region48: #{custom-call.13} parent=46 // loop_pre_header
          _
        $region49: #{custom-call.13} parent=46 // loop_header
          %s292 = sphi 0, %s296
          %p293 = scmp.ge.s32.totalorder %s292, 1
          %s297 = sphi [#allocation1], [#allocation1]
          %s298 = sphi %s1, %s1
        $region50: #{custom-call.13} parent=46 // loop_header_branch
          %295 = sbr.rel (%p293) target = $region54
        $region51: #{custom-call.13} parent=46 // loop_body
          %v299 = vld [vmem:[%s297] sm:%s290]
          %300 = vst [vmem:[%s298] sm:%s290] %v299
          %v301 = vld [vmem:[%s297 + $0x8] sm:%s290]
          %302 = vst [vmem:[%s298 + $0x8] sm:%s290] %v301
        $region52: #{custom-call.13} parent=46 // loop_footer
          %s296 = sadd.s32 1, %s292
        $region53: #{custom-call.13} parent=46 // loop_footer_branch
          %291 = sbr.rel target = $region49
        $region54: #{custom-call.13} parent=46 // loop_exit
          _
      $region47: #{custom-call.13} parent=38 // pred_fallthru
        _
    $region39: #{custom-call.13} parent=1 // pred_fallthru
      _
    %319 = vnop

// kernel: custom-call.12
$region0: #{custom-call.12}
  %s0 = inlined_call_operand.vmem [shape: f32[1,16,16], index: 0, kind: input, shape index: {}]
  %s1 = inlined_call_operand.vmem [shape: f32[1,16,16], index: 1, kind: output, shape index: {}]
  $region1: #{custom-call.12} parent=0
    #allocation0 [shape = 'u8[8192]{0}', space=vmem, size = 0x2000, scoped, tag = 'operand span for operand 0']
    #allocation1 [shape = 'u8[8192]{0}', space=vmem, size = 0x2000, scoped, tag = 'operand span for operand 1']
    #allocation2 [shape = 'f32[16,16]{1,0}', space=vmem, size = 0x2000, scoped, tag = 'rescaled input a']
    // Predicated region
    $region2: #{custom-call.12} parent=1 // pred_check
      _
    $region3: #{custom-call.12} parent=1 // pred_check_branch
      %3 = sbr.rel (0) target = $region5
    $region4: #{custom-call.12} parent=1 // pred_region
      // Predicated region
      $region6: #{custom-call.12} parent=4 // pred_check
        _
      $region7: #{custom-call.12} parent=4 // pred_check_branch
        %5 = sbr.rel (0) target = $region9
      $region8: #{custom-call.12} parent=4 // pred_region
        // Predicated region
        $region21: #{custom-call.12} parent=8 // pred_check
          _
        $region22: #{custom-call.12} parent=8 // pred_check_branch
          %23 = sbr.rel (0) target = $region24
        $region23: #{custom-call.12} parent=8 // pred_region
          loop: start=0, step=1, limit=1
          $region25: #{custom-call.12} parent=23 // loop_pre_header
            _
          $region26: #{custom-call.12} parent=23 // loop_header
            %s25 = sphi 0, %s29
            %p26 = scmp.ge.s32.totalorder %s25, 1
            %s30 = sphi %s0, %s0
            %s31 = sphi [#allocation0], [#allocation0]
          $region27: #{custom-call.12} parent=23 // loop_header_branch
            %28 = sbr.rel (%p26) target = $region31
          $region28: #{custom-call.12} parent=23 // loop_body
            %v32 = vld [vmem:[%s30] sm:$0xff]
            %33 = vst [vmem:[%s31] sm:$0xff] %v32
            %v34 = vld [vmem:[%s30 + $0x8] sm:$0xff]
            %35 = vst [vmem:[%s31 + $0x8] sm:$0xff] %v34
          $region29: #{custom-call.12} parent=23 // loop_footer
            %s29 = sadd.s32 1, %s25
          $region30: #{custom-call.12} parent=23 // loop_footer_branch
            %24 = sbr.rel target = $region26
          $region31: #{custom-call.12} parent=23 // loop_exit
            _
        $region24: #{custom-call.12} parent=8 // pred_fallthru
          _
        // Predicated region
        $region32: #{custom-call.12} parent=8 // pred_check
          _
        $region33: #{custom-call.12} parent=8 // pred_check_branch
          %37 = sbr.rel target = $region35
        $region34: #{custom-call.12} parent=8 // pred_region
          _
        $region35: #{custom-call.12} parent=8 // pred_fallthru
          _
      $region9: #{custom-call.12} parent=4 // pred_fallthru
        _
      // Predicated region
      $region10: #{custom-call.12} parent=4 // pred_check
        _
      $region11: #{custom-call.12} parent=4 // pred_check_branch
        %7 = sbr.rel target = $region13
      $region12: #{custom-call.12} parent=4 // pred_region
        %s9 = ssub.s32 256, 1
        loop: start=0, step=1, limit=1
        $region14: #{custom-call.12} parent=12 // loop_pre_header
          _
        $region15: #{custom-call.12} parent=12 // loop_header
          %s11 = sphi 0, %s15
          %p12 = scmp.ge.s32.totalorder %s11, 1
          %s16 = sphi %s0, %s0
          %s17 = sphi [#allocation0], [#allocation0]
        $region16: #{custom-call.12} parent=12 // loop_header_branch
          %14 = sbr.rel (%p12) target = $region20
        $region17: #{custom-call.12} parent=12 // loop_body
          %v18 = vld [vmem:[%s16] sm:%s9]
          %19 = vst [vmem:[%s17] sm:%s9] %v18
          %v20 = vld [vmem:[%s16 + $0x8] sm:%s9]
          %21 = vst [vmem:[%s17 + $0x8] sm:%s9] %v20
        $region18: #{custom-call.12} parent=12 // loop_footer
          %s15 = sadd.s32 1, %s11
        $region19: #{custom-call.12} parent=12 // loop_footer_branch
          %10 = sbr.rel target = $region15
        $region20: #{custom-call.12} parent=12 // loop_exit
          _
      $region13: #{custom-call.12} parent=4 // pred_fallthru
        _
    $region5: #{custom-call.12} parent=1 // pred_fallthru
      _
    %38 = vnop
    %v39 = vlaneseq
    %v40 = vand.u32 %v39, 127
    %vm41 = vcmp.lt.s32.totalorder %v40, 16
    %v42 = vlaneseq
    %v43 = vshrl.u32 %v42, 7
    %vm45 = vcmp.eq.s32.totalorder %v43, %v40
    %v46 = vld [vmem:[#allocation0] sm:$0xff]
    %v47 = vsel %vm45, %v46, 0.0
    %48 = vadd.xlane.f32.xlu0 %v47
    %v49 = vpop.xlane.xlu0 %48
    %vm50 = vcmp.le.s32.totalorder %v43, %v40
    %vm51 = vmand %vm50, %vm41
    %v52 = vsel %vm51, %v46, 0.0
    %v53 = vrcp.pop %v49
    %v54 = vmul.f32 %v52, %v53
    %55 = vst [vmem:[#allocation2] sm:$0xff] %v54
    %s56 = scalar_lea.vmem [#allocation0], 8
    %s57 = scalar_lea.vmem [#allocation2], 8
    %v58 = vlaneseq
    %v59 = vshrl.u32 %v58, 7
    %v60 = vadd.s32 %v59, 8
    %vm61 = vcmp.eq.s32.totalorder %v60, %v40
    %v62 = vld [vmem:[%s56] sm:$0xff]
    %v63 = vsel %vm61, %v62, 0.0
    %64 = vadd.xlane.f32.xlu0 %v63
    %v65 = vpop.xlane.xlu0 %64
    %vm66 = vcmp.le.s32.totalorder %v60, %v40
    %vm67 = vmand %vm66, %vm41
    %v68 = vsel %vm67, %v62, 0.0
    %v69 = vrcp.pop %v65
    %v70 = vmul.f32 %v68, %v69
    %71 = vst [vmem:[%s57] sm:$0xff] %v70
    %v72 = vlaneseq
    %v73 = vand.u32 %v72, 127
    %v74 = vlaneseq
    %v75 = vshrl.u32 %v74, 7
    %vm77 = vcmp.eq.s32.totalorder %v73, %v75
    %v78 = vsel %vm77, -1.0, 0.0
    %v79 = vlaneseq
    %v80 = vand.u32 %v79, 127
    %v81 = vlaneseq
    %v82 = vshrl.u32 %v81, 7
    %v83 = vadd.s32 %v82, 8
    %vm84 = vcmp.eq.s32.totalorder %v80, %v83
    %v85 = vlaneseq
    %v86 = vand.u32 %v85, 127
    %vm87 = vcmp.eq.s32.totalorder %v86, 15
    %v88 = vsel %vm87, 1.0, -1.0
    %v89 = vsel %vm84, %v88, 0.0
    %s90 = scalar_lea.vmem [#allocation2], 14
    %v91 = vld [vmem:[%s90] ss:$0 sm:$0xff]
    %v92 = vxor.u32 %v91, 2147483648
    %v93 = vlaneseq
    %v94 = vand.u32 %v93, 127
    %vm95 = vcmp.eq.s32.totalorder %v94, 14
    %v96 = vmul.f32 %v92, %v89
    %97 = vadd.xlane.f32.xlu0 %v96
    %v98 = vpop.xlane.xlu0 %97
    %v99 = vsel %vm95, %v98, %v89
    %s100 = scalar_lea.vmem [#allocation2], 13
    %v101 = vld [vmem:[%s100] ss:$0 sm:$0xff]
    %v102 = vxor.u32 %v101, 2147483648
    %v103 = vlaneseq
    %v104 = vand.u32 %v103, 127
    %vm105 = vcmp.eq.s32.totalorder %v104, 13
    %v106 = vmul.f32 %v102, %v99
    %107 = vadd.xlane.f32.xlu0 %v106
    %v108 = vpop.xlane.xlu0 %107
    %v109 = vsel %vm105, %v108, %v99
    %s110 = scalar_lea.vmem [#allocation2], 12
    %v111 = vld [vmem:[%s110] ss:$0 sm:$0xff]
    %v112 = vxor.u32 %v111, 2147483648
    %v113 = vlaneseq
    %v114 = vand.u32 %v113, 127
    %vm115 = vcmp.eq.s32.totalorder %v114, 12
    %v116 = vmul.f32 %v112, %v109
    %117 = vadd.xlane.f32.xlu0 %v116
    %v118 = vpop.xlane.xlu0 %117
    %v119 = vsel %vm115, %v118, %v109
    %s120 = scalar_lea.vmem [#allocation2], 11
    %v121 = vld [vmem:[%s120] ss:$0 sm:$0xff]
    %v122 = vxor.u32 %v121, 2147483648
    %v123 = vlaneseq
    %v124 = vand.u32 %v123, 127
    %vm125 = vcmp.eq.s32.totalorder %v124, 11
    %v126 = vmul.f32 %v122, %v119
    %127 = vadd.xlane.f32.xlu0 %v126
    %v128 = vpop.xlane.xlu0 %127
    %v129 = vsel %vm125, %v128, %v119
    %s130 = scalar_lea.vmem [#allocation2], 10
    %v131 = vld [vmem:[%s130] ss:$0 sm:$0xff]
    %v132 = vxor.u32 %v131, 2147483648
    %v133 = vlaneseq
    %v134 = vand.u32 %v133, 127
    %vm135 = vcmp.eq.s32.totalorder %v134, 10
    %v136 = vmul.f32 %v132, %v129
    %137 = vadd.xlane.f32.xlu0 %v136
    %v138 = vpop.xlane.xlu0 %137
    %v139 = vsel %vm135, %v138, %v129
    %s140 = scalar_lea.vmem [#allocation2], 9
    %v141 = vld [vmem:[%s140] ss:$0 sm:$0xff]
    %v142 = vxor.u32 %v141, 2147483648
    %v143 = vlaneseq
    %v144 = vand.u32 %v143, 127
    %vm145 = vcmp.eq.s32.totalorder %v144, 9
    %v146 = vmul.f32 %v142, %v139
    %147 = vadd.xlane.f32.xlu0 %v146
    %v148 = vpop.xlane.xlu0 %147
    %v149 = vsel %vm145, %v148, %v139
    %s150 = scalar_lea.vmem [#allocation2], 8
    %v151 = vld [vmem:[%s150] ss:$0 sm:$0xff]
    %v152 = vxor.u32 %v151, 2147483648
    %v153 = vlaneseq
    %v154 = vand.u32 %v153, 127
    %vm155 = vcmp.eq.s32.totalorder %v154, 8
    %v156 = vmul.f32 %v152, %v149
    %157 = vadd.xlane.f32.xlu0 %v156
    %v158 = vpop.xlane.xlu0 %157
    %v159 = vsel %vm155, %v158, %v149
    %s160 = scalar_lea.vmem [#allocation2], 7
    %v161 = vld [vmem:[%s160] ss:$0 sm:$0xff]
    %v162 = vxor.u32 %v161, 2147483648
    %v163 = vlaneseq
    %v164 = vand.u32 %v163, 127
    %vm165 = vcmp.eq.s32.totalorder %v164, 7
    %v166 = vmul.f32 %v162, %v78
    %167 = vadd.xlane.f32.xlu0 %v166
    %v168 = vpop.xlane.xlu0 %167
    %v169 = vsel %vm165, %v168, %v78
    %v170 = vmul.f32 %v162, %v159
    %171 = vadd.xlane.f32.xlu0 %v170
    %v172 = vpop.xlane.xlu0 %171
    %v173 = vsel %vm165, %v172, %v159
    %s174 = scalar_lea.vmem [#allocation2], 6
    %v175 = vld [vmem:[%s174] ss:$0 sm:$0xff]
    %v176 = vxor.u32 %v175, 2147483648
    %v177 = vlaneseq
    %v178 = vand.u32 %v177, 127
    %vm179 = vcmp.eq.s32.totalorder %v178, 6
    %v180 = vmul.f32 %v176, %v169
    %181 = vadd.xlane.f32.xlu0 %v180
    %v182 = vpop.xlane.xlu0 %181
    %v183 = vsel %vm179, %v182, %v169
    %v184 = vmul.f32 %v176, %v173
    %185 = vadd.xlane.f32.xlu0 %v184
    %v186 = vpop.xlane.xlu0 %185
    %v187 = vsel %vm179, %v186, %v173
    %s188 = scalar_lea.vmem [#allocation2], 5
    %v189 = vld [vmem:[%s188] ss:$0 sm:$0xff]
    %v190 = vxor.u32 %v189, 2147483648
    %v191 = vlaneseq
    %v192 = vand.u32 %v191, 127
    %vm193 = vcmp.eq.s32.totalorder %v192, 5
    %v194 = vmul.f32 %v190, %v183
    %195 = vadd.xlane.f32.xlu0 %v194
    %v196 = vpop.xlane.xlu0 %195
    %v197 = vsel %vm193, %v196, %v183
    %v198 = vmul.f32 %v190, %v187
    %199 = vadd.xlane.f32.xlu0 %v198
    %v200 = vpop.xlane.xlu0 %199
    %v201 = vsel %vm193, %v200, %v187
    %s202 = scalar_lea.vmem [#allocation2], 4
    %v203 = vld [vmem:[%s202] ss:$0 sm:$0xff]
    %v204 = vxor.u32 %v203, 2147483648
    %v205 = vlaneseq
    %v206 = vand.u32 %v205, 127
    %vm207 = vcmp.eq.s32.totalorder %v206, 4
    %v208 = vmul.f32 %v204, %v197
    %209 = vadd.xlane.f32.xlu0 %v208
    %v210 = vpop.xlane.xlu0 %209
    %v211 = vsel %vm207, %v210, %v197
    %v212 = vmul.f32 %v204, %v201
    %213 = vadd.xlane.f32.xlu0 %v212
    %v214 = vpop.xlane.xlu0 %213
    %v215 = vsel %vm207, %v214, %v201
    %s216 = scalar_lea.vmem [#allocation2], 3
    %v217 = vld [vmem:[%s216] ss:$0 sm:$0xff]
    %v218 = vxor.u32 %v217, 2147483648
    %v219 = vlaneseq
    %v220 = vand.u32 %v219, 127
    %vm221 = vcmp.eq.s32.totalorder %v220, 3
    %v222 = vmul.f32 %v218, %v211
    %223 = vadd.xlane.f32.xlu0 %v222
    %v224 = vpop.xlane.xlu0 %223
    %v225 = vsel %vm221, %v224, %v211
    %v226 = vmul.f32 %v218, %v215
    %227 = vadd.xlane.f32.xlu0 %v226
    %v228 = vpop.xlane.xlu0 %227
    %v229 = vsel %vm221, %v228, %v215
    %s230 = scalar_lea.vmem [#allocation2], 2
    %v231 = vld [vmem:[%s230] ss:$0 sm:$0xff]
    %v232 = vxor.u32 %v231, 2147483648
    %v233 = vlaneseq
    %v234 = vand.u32 %v233, 127
    %vm235 = vcmp.eq.s32.totalorder %v234, 2
    %v236 = vmul.f32 %v232, %v225
    %237 = vadd.xlane.f32.xlu0 %v236
    %v238 = vpop.xlane.xlu0 %237
    %v239 = vsel %vm235, %v238, %v225
    %v240 = vmul.f32 %v232, %v229
    %241 = vadd.xlane.f32.xlu0 %v240
    %v242 = vpop.xlane.xlu0 %241
    %v243 = vsel %vm235, %v242, %v229
    %s244 = scalar_lea.vmem [#allocation2], 1
    %v245 = vld [vmem:[%s244] ss:$0 sm:$0xff]
    %v246 = vxor.u32 %v245, 2147483648
    %v247 = vlaneseq
    %v248 = vand.u32 %v247, 127
    %vm249 = vcmp.eq.s32.totalorder %v248, 1
    %v250 = vmul.f32 %v246, %v239
    %251 = vadd.xlane.f32.xlu0 %v250
    %v252 = vpop.xlane.xlu0 %251
    %v253 = vsel %vm249, %v252, %v239
    %v254 = vmul.f32 %v246, %v243
    %255 = vadd.xlane.f32.xlu0 %v254
    %v256 = vpop.xlane.xlu0 %255
    %v257 = vsel %vm249, %v256, %v243
    %v258 = vld [vmem:[#allocation2] ss:$0 sm:$0xff]
    %v259 = vxor.u32 %v258, 2147483648
    %v260 = vlaneseq
    %v261 = vand.u32 %v260, 127
    %vm262 = vcmp.eq.s32.totalorder %v261, 0
    %v263 = vmul.f32 %v259, %v253
    %264 = vadd.xlane.f32.xlu0 %v263
    %v265 = vpop.xlane.xlu0 %264
    %v266 = vsel %vm262, %v265, %v253
    %v267 = vmul.f32 %v259, %v257
    %268 = vadd.xlane.f32.xlu0 %v267
    %v269 = vpop.xlane.xlu0 %268
    %v270 = vsel %vm262, %v269, %v257
    %v271 = vrcp.pop %v49
    %v272 = vmul.f32 %v266, %v271
    %vm273 = vweird.f32 %v49
    %v274 = vsel %vm273, %v266, %v272
    %275 = vst [vmem:[#allocation1] sm:$0xff] %v274
    %v276 = vrcp.pop %v65
    %v277 = vmul.f32 %v270, %v276
    %vm278 = vweird.f32 %v65
    %v279 = vsel %vm278, %v270, %v277
    %s280 = scalar_lea.vmem [#allocation1], 8
    %281 = vst [vmem:[%s280] sm:$0xff] %v279
    // Predicated region
    $region36: #{custom-call.12} parent=1 // pred_check
      _
    $region37: #{custom-call.12} parent=1 // pred_check_branch
      %283 = sbr.rel (0) target = $region39
    $region38: #{custom-call.12} parent=1 // pred_region
      // Predicated region
      $region40: #{custom-call.12} parent=38 // pred_check
        _
      $region41: #{custom-call.12} parent=38 // pred_check_branch
        %285 = sbr.rel (0) target = $region43
      $region42: #{custom-call.12} parent=38 // pred_region
        // Predicated region
        $region55: #{custom-call.12} parent=42 // pred_check
          _
        $region56: #{custom-call.12} parent=42 // pred_check_branch
          %303 = sbr.rel (0) target = $region58
        $region57: #{custom-call.12} parent=42 // pred_region
          loop: start=0, step=1, limit=1
          $region59: #{custom-call.12} parent=57 // loop_pre_header
            _
          $region60: #{custom-call.12} parent=57 // loop_header
            %s305 = sphi 0, %s309
            %p306 = scmp.ge.s32.totalorder %s305, 1
            %s310 = sphi [#allocation1], [#allocation1]
            %s311 = sphi %s1, %s1
          $region61: #{custom-call.12} parent=57 // loop_header_branch
            %308 = sbr.rel (%p306) target = $region65
          $region62: #{custom-call.12} parent=57 // loop_body
            %v312 = vld [vmem:[%s310] sm:$0xff]
            %313 = vst [vmem:[%s311] sm:$0xff] %v312
            %v314 = vld [vmem:[%s310 + $0x8] sm:$0xff]
            %315 = vst [vmem:[%s311 + $0x8] sm:$0xff] %v314
          $region63: #{custom-call.12} parent=57 // loop_footer
            %s309 = sadd.s32 1, %s305
          $region64: #{custom-call.12} parent=57 // loop_footer_branch
            %304 = sbr.rel target = $region60
          $region65: #{custom-call.12} parent=57 // loop_exit
            _
        $region58: #{custom-call.12} parent=42 // pred_fallthru
          _
        // Predicated region
        $region66: #{custom-call.12} parent=42 // pred_check
          _
        $region67: #{custom-call.12} parent=42 // pred_check_branch
          %317 = sbr.rel target = $region69
        $region68: #{custom-call.12} parent=42 // pred_region
          _
        $region69: #{custom-call.12} parent=42 // pred_fallthru
          _
      $region43: #{custom-call.12} parent=38 // pred_fallthru
        _
      // Predicated region
      $region44: #{custom-call.12} parent=38 // pred_check
        _
      $region45: #{custom-call.12} parent=38 // pred_check_branch
        %287 = sbr.rel target = $region47
      $region46: #{custom-call.12} parent=38 // pred_region
        %s289 = ssub.s32 256, 1
        loop: start=0, step=1, limit=1
        $region48: #{custom-call.12} parent=46 // loop_pre_header
          _
        $region49: #{custom-call.12} parent=46 // loop_header
          %s291 = sphi 0, %s295
          %p292 = scmp.ge.s32.totalorder %s291, 1
          %s296 = sphi [#allocation1], [#allocation1]
          %s297 = sphi %s1, %s1
        $region50: #{custom-call.12} parent=46 // loop_header_branch
          %294 = sbr.rel (%p292) target = $region54
        $region51: #{custom-call.12} parent=46 // loop_body
          %v298 = vld [vmem:[%s296] sm:%s289]
          %299 = vst [vmem:[%s297] sm:%s289] %v298
          %v300 = vld [vmem:[%s296 + $0x8] sm:%s289]
          %301 = vst [vmem:[%s297 + $0x8] sm:%s289] %v300
        $region52: #{custom-call.12} parent=46 // loop_footer
          %s295 = sadd.s32 1, %s291
        $region53: #{custom-call.12} parent=46 // loop_footer_branch
          %290 = sbr.rel target = $region49
        $region54: #{custom-call.12} parent=46 // loop_exit
          _
      $region47: #{custom-call.12} parent=38 // pred_fallthru
        _
    $region39: #{custom-call.12} parent=1 // pred_fallthru
      _
    %318 = vnop

// kernel: squeeze.40
$region0: #{squeeze.40}
  %s0 = inlined_call_operand.vmem [shape: f32[4,256], index: 0, kind: input, shape index: {}]
  %s1 = inlined_call_operand.vmem [shape: f32[64,16,1], index: 1, kind: output, shape index: {}]
  $region1: #{squeeze.40} parent=0
    #allocation0 [shape = 'u8[8192]{0}', space=vmem, size = 0x2000, scoped, tag = 'scoped mem for input reshape']
    %s3 = sshll.u32 1, 4
    %s4 = ssub.s32 %s3, 1
    %s5 = scalar_lea.vmem %s0, 4
    %v6 = vld [vmem:[%s5] sm:%s4]
    %s7 = scalar_lea.vmem [#allocation0], 8
    %8 = vst [vmem:[%s7] sm:%s4] %v6
    %v9 = vld [vmem:[%s0] sm:%s4]
    %10 = vst [vmem:[#allocation0] sm:%s4] %v9
    %v11 = vld [vmem:[#allocation0] sm:$0xf]
    %vm12 = vcmask 130048
    %13 = vst.msk [vmem:[%s1] ss:$16 sm:$0x3] %vm12, %v11
    %14 = vst.msk [vmem:[%s1] ss:$16 sm:$0xc] %vm12, %v11
    %s15 = scalar_lea.vmem [#allocation0], 8
    %v16 = vld [vmem:[%s15] sm:$0xf]
    %vm17 = vcmask 130048
    %s18 = scalar_lea.vmem %s1, 8
    %19 = vst.msk [vmem:[%s18] ss:$16 sm:$0x3] %vm17, %v16
    %s20 = scalar_lea.vmem %s1, 8
    %21 = vst.msk [vmem:[%s20] ss:$16 sm:$0xc] %vm17, %v16
    %v22 = vld.sshfl [vmem:[#allocation0] sm:$0xff pattern:$0xb3a29180]
    %23 = vrot.lane.b32.xlu0 %v22, 112
    %v24 = vpop.permute.xlu0 %23
    %vm25 = vcmask 130048
    %s26 = scalar_lea.vmem %s1, 1
    %27 = vst.msk [vmem:[%s26] ss:$8 sm:$0xf] %vm25, %v24
    %s28 = scalar_lea.vmem %s1, 1
    %29 = vst.msk [vmem:[%s28] ss:$8 sm:$0xf0] %vm25, %v24
    %v30 = vld.sshfl [vmem:[#allocation0] sm:$0xff pattern:$0xb3a29180]
    %31 = vrot.lane.b32.xlu0 %v30, 96
    %v32 = vpop.permute.xlu0 %31
    %vm33 = vcmask 130048
    %s34 = scalar_lea.vmem %s1, 2
    %35 = vst.msk [vmem:[%s34] ss:$8 sm:$0xf] %vm33, %v32
    %s36 = scalar_lea.vmem %s1, 2
    %37 = vst.msk [vmem:[%s36] ss:$8 sm:$0xf0] %vm33, %v32
    %v38 = vld.sshfl [vmem:[#allocation0] sm:$0xff pattern:$0xb3a29180]
    %39 = vrot.lane.b32.xlu0 %v38, 80
    %v40 = vpop.permute.xlu0 %39
    %vm41 = vcmask 130048
    %s42 = scalar_lea.vmem %s1, 3
    %43 = vst.msk [vmem:[%s42] ss:$8 sm:$0xf] %vm41, %v40
    %s44 = scalar_lea.vmem %s1, 3
    %45 = vst.msk [vmem:[%s44] ss:$8 sm:$0xf0] %vm41, %v40
    %v46 = vld.sshfl [vmem:[#allocation0] sm:$0xff pattern:$0xb3a29180]
    %47 = vrot.lane.b32.xlu0 %v46, 64
    %v48 = vpop.permute.xlu0 %47
    %vm49 = vcmask 130048
    %s50 = scalar_lea.vmem %s1, 4
    %51 = vst.msk [vmem:[%s50] ss:$8 sm:$0xf] %vm49, %v48
    %s52 = scalar_lea.vmem %s1, 4
    %53 = vst.msk [vmem:[%s52] ss:$8 sm:$0xf0] %vm49, %v48
    %v54 = vld.sshfl [vmem:[#allocation0] sm:$0xff pattern:$0xb3a29180]
    %55 = vrot.lane.b32.xlu0 %v54, 48
    %v56 = vpop.permute.xlu0 %55
    %vm57 = vcmask 130048
    %s58 = scalar_lea.vmem %s1, 5
    %59 = vst.msk [vmem:[%s58] ss:$8 sm:$0xf] %vm57, %v56
    %s60 = scalar_lea.vmem %s1, 5
    %61 = vst.msk [vmem:[%s60] ss:$8 sm:$0xf0] %vm57, %v56
    %v62 = vld.sshfl [vmem:[#allocation0] sm:$0xff pattern:$0xb3a29180]
    %63 = vrot.lane.b32.xlu0 %v62, 32
    %v64 = vpop.permute.xlu0 %63
    %vm65 = vcmask 130048
    %s66 = scalar_lea.vmem %s1, 6
    %67 = vst.msk [vmem:[%s66] ss:$8 sm:$0xf] %vm65, %v64
    %s68 = scalar_lea.vmem %s1, 6
    %69 = vst.msk [vmem:[%s68] ss:$8 sm:$0xf0] %vm65, %v64
    %v70 = vld.sshfl [vmem:[#allocation0] sm:$0xff pattern:$0xb3a29180]
    %71 = vrot.lane.b32.xlu0 %v70, 16
    %v72 = vpop.permute.xlu0 %71
    %vm73 = vcmask 130048
    %s74 = scalar_lea.vmem %s1, 7
    %75 = vst.msk [vmem:[%s74] ss:$8 sm:$0xf] %vm73, %v72
    %s76 = scalar_lea.vmem %s1, 7
    %77 = vst.msk [vmem:[%s76] ss:$8 sm:$0xf0] %vm73, %v72

// kernel: squeeze.46
$region0: #{squeeze.46}
  %s0 = inlined_call_operand.vmem [shape: f32[4,256], index: 0, kind: input, shape index: {}]
  %s1 = inlined_call_operand.vmem [shape: f32[64,16], index: 1, kind: output, shape index: {}]
  $region1: #{squeeze.46} parent=0
    #allocation0 [shape = 'u8[8192]{0}', space=vmem, size = 0x2000, scoped, tag = 'scoped mem for input reshape']
    %s3 = sshll.u32 1, 4
    %s4 = ssub.s32 %s3, 1
    %s5 = scalar_lea.vmem %s0, 4
    %v6 = vld [vmem:[%s5] sm:%s4]
    %s7 = scalar_lea.vmem [#allocation0], 8
    %8 = vst [vmem:[%s7] sm:%s4] %v6
    %v9 = vld [vmem:[%s0] sm:%s4]
    %10 = vst [vmem:[#allocation0] sm:%s4] %v9
    %v11 = vld [vmem:[#allocation0] sm:$0xf]
    %vm12 = vcmask 130048
    %13 = vst.msk [vmem:[%s1] ss:$16 sm:$0x3] %vm12, %v11
    %14 = vst.msk [vmem:[%s1] ss:$16 sm:$0xc] %vm12, %v11
    %s15 = scalar_lea.vmem [#allocation0], 8
    %v16 = vld [vmem:[%s15] sm:$0xf]
    %vm17 = vcmask 130048
    %s18 = scalar_lea.vmem %s1, 8
    %19 = vst.msk [vmem:[%s18] ss:$16 sm:$0x3] %vm17, %v16
    %s20 = scalar_lea.vmem %s1, 8
    %21 = vst.msk [vmem:[%s20] ss:$16 sm:$0xc] %vm17, %v16
    %v22 = vld.sshfl [vmem:[#allocation0] sm:$0xff pattern:$0xb3a29180]
    %23 = vrot.lane.b32.xlu0 %v22, 112
    %v24 = vpop.permute.xlu0 %23
    %vm25 = vcmask 130048
    %s26 = scalar_lea.vmem %s1, 1
    %27 = vst.msk [vmem:[%s26] ss:$8 sm:$0xf] %vm25, %v24
    %s28 = scalar_lea.vmem %s1, 1
    %29 = vst.msk [vmem:[%s28] ss:$8 sm:$0xf0] %vm25, %v24
    %v30 = vld.sshfl [vmem:[#allocation0] sm:$0xff pattern:$0xb3a29180]
    %31 = vrot.lane.b32.xlu0 %v30, 96
    %v32 = vpop.permute.xlu0 %31
    %vm33 = vcmask 130048
    %s34 = scalar_lea.vmem %s1, 2
    %35 = vst.msk [vmem:[%s34] ss:$8 sm:$0xf] %vm33, %v32
    %s36 = scalar_lea.vmem %s1, 2
    %37 = vst.msk [vmem:[%s36] ss:$8 sm:$0xf0] %vm33, %v32
    %v38 = vld.sshfl [vmem:[#allocation0] sm:$0xff pattern:$0xb3a29180]
    %39 = vrot.lane.b32.xlu0 %v38, 80
    %v40 = vpop.permute.xlu0 %39
    %vm41 = vcmask 130048
    %s42 = scalar_lea.vmem %s1, 3
    %43 = vst.msk [vmem:[%s42] ss:$8 sm:$0xf] %vm41, %v40
    %s44 = scalar_lea.vmem %s1, 3
    %45 = vst.msk [vmem:[%s44] ss:$8 sm:$0xf0] %vm41, %v40
    %v46 = vld.sshfl [vmem:[#allocation0] sm:$0xff pattern:$0xb3a29180]
    %47 = vrot.lane.b32.xlu0 %v46, 64
    %v48 = vpop.permute.xlu0 %47
    %vm49 = vcmask 130048
    %s50 = scalar_lea.vmem %s1, 4
    %51 = vst.msk [vmem:[%s50] ss:$8 sm:$0xf] %vm49, %v48
    %s52 = scalar_lea.vmem %s1, 4
    %53 = vst.msk [vmem:[%s52] ss:$8 sm:$0xf0] %vm49, %v48
    %v54 = vld.sshfl [vmem:[#allocation0] sm:$0xff pattern:$0xb3a29180]
    %55 = vrot.lane.b32.xlu0 %v54, 48
    %v56 = vpop.permute.xlu0 %55
    %vm57 = vcmask 130048
    %s58 = scalar_lea.vmem %s1, 5
    %59 = vst.msk [vmem:[%s58] ss:$8 sm:$0xf] %vm57, %v56
    %s60 = scalar_lea.vmem %s1, 5
    %61 = vst.msk [vmem:[%s60] ss:$8 sm:$0xf0] %vm57, %v56
    %v62 = vld.sshfl [vmem:[#allocation0] sm:$0xff pattern:$0xb3a29180]
    %63 = vrot.lane.b32.xlu0 %v62, 32
    %v64 = vpop.permute.xlu0 %63
    %vm65 = vcmask 130048
    %s66 = scalar_lea.vmem %s1, 6
    %67 = vst.msk [vmem:[%s66] ss:$8 sm:$0xf] %vm65, %v64
    %s68 = scalar_lea.vmem %s1, 6
    %69 = vst.msk [vmem:[%s68] ss:$8 sm:$0xf0] %vm65, %v64
    %v70 = vld.sshfl [vmem:[#allocation0] sm:$0xff pattern:$0xb3a29180]
    %71 = vrot.lane.b32.xlu0 %v70, 16
    %v72 = vpop.permute.xlu0 %71
    %vm73 = vcmask 130048
    %s74 = scalar_lea.vmem %s1, 7
    %75 = vst.msk [vmem:[%s74] ss:$8 sm:$0xf] %vm73, %v72
    %s76 = scalar_lea.vmem %s1, 7
    %77 = vst.msk [vmem:[%s76] ss:$8 sm:$0xf0] %vm73, %v72

// kernel: grnvae_forward.3
$region0: #{grnvae_forward.3}
  #allocation0 [shape = 'u32[]', space=smem, size = 0x4, offset = 0x4, fixed_abs, tag = 'smem constant byte address 0x4 - core index']
  #allocation1 [shape = 'u32[144,128]{1,0:T(1,128)}', space=vmem, size = 0x12000, scoped, tag = 'internal scratch']
  %s0 = inlined_call_operand.vmem [shape: f32[8,1024], index: 0, kind: input, shape index: {}]
  %s1 = inlined_call_operand.vmem [shape: f32[512,256], index: 1, kind: input, shape index: {}]
  %s2 = inlined_call_operand.vmem [shape: bf16[96,128], index: 2, kind: input, shape index: {}]
  %s3 = inlined_call_operand.vmem [shape: f32[32,128], index: 3, kind: input, shape index: {}]
  %s4 = inlined_call_operand.vmem [shape: f32[9], index: 4, kind: input, shape index: {}]
  %s5 = inlined_call_operand.vmem [shape: f32[32,256], index: 5, kind: output, shape index: {}]
  %s6 = sld [smem:[#allocation0]]
  $region57: #{grnvae_forward.3} parent=0
    _
  %s8 = ssub.s32 1, %s6
  %s9 = scalar_select 0, %s8, %s6
  $region1: #{grnvae_forward.3} parent=0
    #allocation2 [shape = 'u8[512]{0}', space=smem, size = 0x200, scoped, tag = 'input window, operand 4, single buffered']
    #allocation3 [shape = 's32[2]{0}', space=sflag, size = 0x8, scoped, tag = 'scoped memory for grnvae_forward.3']
    %10 = vsyncpa [#allocation3], 0
    loop: start=0, step=1, limit=6
    $region2: #{grnvae_forward.3} parent=1 // loop_pre_header
      _
    $region3: #{grnvae_forward.3} parent=1 // loop_header
      %s12 = sphi 0, %s16
      %p13 = scmp.ge.s32.totalorder %s12, 6
      %s22 = sphi 0, %s24
      %s25 = sphi 0, %s22
      %s26 = sphi 0, %s25
      %s42 = sphi 0, %s26
      %s46 = sphi 0, %s46
      %s48 = sphi 0, %s46
      %s49 = sphi 0, %s48
      %s63 = sphi 0, %s49
      %s67 = sphi 0, %s67
      %s69 = sphi 0, %s67
      %s70 = sphi 0, %s69
      %s84 = sphi 0, %s70
      %s88 = sphi 0, %s88
      %s90 = sphi 0, %s88
      %s91 = sphi 0, %s90
      %s105 = sphi 0, %s91
      %s109 = sphi 0, %s109
      %s111 = sphi 0, %s109
      %s112 = sphi 0, %s111
      %s126 = sphi 0, %s112
      %s132 = sphi 0, %s134
      %s135 = sphi 0, %s132
      %s136 = sphi 0, %s135
      %s152 = sphi 0, %s136
    $region4: #{grnvae_forward.3} parent=1 // loop_header_branch
      %15 = sbr.rel (%p13) target = $region8
    $region5: #{grnvae_forward.3} parent=1 // loop_body
      %s17 = ssub.s32 %s12, 1
      %s18 = ssub.s32 %s12, 2
      %s19 = sadd.s32 %s12, 1
      %s20 = ssub.s32 %s12, %s19
      %p21 = scmp.eq.s32.totalorder %s20, 0
      %s23 = sadd.s32 %s22, 1
      %s24 = scalar_select %p21, %s22, %s23
      %p27 = pneg %p21
      %p28 = scmp.eq.s32.totalorder %s12, 3
      %p29 = por %p27, %p28
      %p30 = scmp.ne.s32.totalorder %s22, %s25
      %p31 = scmp.eq.s32.totalorder %s12, 0
      %p32 = por %p30, %p31
      %p33 = scmp.ne.s32.totalorder %s22, %s25
      %p34 = scmp.eq.s32.totalorder %s17, 3
      %p35 = por %p33, %p34
      %p36 = scmp.ne.s32.totalorder %s25, %s26
      %p37 = scmp.eq.s32.totalorder %s17, 0
      %p38 = por %p36, %p37
      %p39 = scmp.ne.s32.totalorder %s25, %s26
      %p40 = scmp.eq.s32.totalorder %s18, 3
      %p41 = por %p39, %p40
      %p43 = scmp.ne.s32.totalorder %s26, %s42
      %p44 = scmp.eq.s32.totalorder %s18, 0
      %p45 = por %p43, %p44
      %s47 = sadd.s32 %s46, 1
      %p50 = scmp.eq.s32.totalorder %s12, 3
      %p51 = scmp.ne.s32.totalorder %s46, %s48
      %p52 = scmp.eq.s32.totalorder %s12, 0
      %p53 = por %p51, %p52
      %p54 = scmp.ne.s32.totalorder %s46, %s48
      %p55 = scmp.eq.s32.totalorder %s17, 3
      %p56 = por %p54, %p55
      %p57 = scmp.ne.s32.totalorder %s48, %s49
      %p58 = scmp.eq.s32.totalorder %s17, 0
      %p59 = por %p57, %p58
      %p60 = scmp.ne.s32.totalorder %s48, %s49
      %p61 = scmp.eq.s32.totalorder %s18, 3
      %p62 = por %p60, %p61
      %p64 = scmp.ne.s32.totalorder %s49, %s63
      %p65 = scmp.eq.s32.totalorder %s18, 0
      %p66 = por %p64, %p65
      %s68 = sadd.s32 %s67, 1
      %p71 = scmp.eq.s32.totalorder %s12, 3
      %p72 = scmp.ne.s32.totalorder %s67, %s69
      %p73 = scmp.eq.s32.totalorder %s12, 0
      %p74 = por %p72, %p73
      %p75 = scmp.ne.s32.totalorder %s67, %s69
      %p76 = scmp.eq.s32.totalorder %s17, 3
      %p77 = por %p75, %p76
      %p78 = scmp.ne.s32.totalorder %s69, %s70
      %p79 = scmp.eq.s32.totalorder %s17, 0
      %p80 = por %p78, %p79
      %p81 = scmp.ne.s32.totalorder %s69, %s70
      %p82 = scmp.eq.s32.totalorder %s18, 3
      %p83 = por %p81, %p82
      %p85 = scmp.ne.s32.totalorder %s70, %s84
      %p86 = scmp.eq.s32.totalorder %s18, 0
      %p87 = por %p85, %p86
      %s89 = sadd.s32 %s88, 1
      %p92 = scmp.eq.s32.totalorder %s12, 3
      %p93 = scmp.ne.s32.totalorder %s88, %s90
      %p94 = scmp.eq.s32.totalorder %s12, 0
      %p95 = por %p93, %p94
      %p96 = scmp.ne.s32.totalorder %s88, %s90
      %p97 = scmp.eq.s32.totalorder %s17, 3
      %p98 = por %p96, %p97
      %p99 = scmp.ne.s32.totalorder %s90, %s91
      %p100 = scmp.eq.s32.totalorder %s17, 0
      %p101 = por %p99, %p100
      %p102 = scmp.ne.s32.totalorder %s90, %s91
      %p103 = scmp.eq.s32.totalorder %s18, 3
      %p104 = por %p102, %p103
      %p106 = scmp.ne.s32.totalorder %s91, %s105
      %p107 = scmp.eq.s32.totalorder %s18, 0
      %p108 = por %p106, %p107
      %s110 = sadd.s32 %s109, 1
      %p113 = scmp.eq.s32.totalorder %s12, 3
      %p114 = scmp.ne.s32.totalorder %s109, %s111
      %p115 = scmp.eq.s32.totalorder %s12, 0
      %p116 = por %p114, %p115
      %p117 = scmp.ne.s32.totalorder %s109, %s111
      %p118 = scmp.eq.s32.totalorder %s17, 3
      %p119 = por %p117, %p118
      %p120 = scmp.ne.s32.totalorder %s111, %s112
      %p121 = scmp.eq.s32.totalorder %s17, 0
      %p122 = por %p120, %p121
      %p123 = scmp.ne.s32.totalorder %s111, %s112
      %p124 = scmp.eq.s32.totalorder %s18, 3
      %p125 = por %p123, %p124
      %p127 = scmp.ne.s32.totalorder %s112, %s126
      %p128 = scmp.eq.s32.totalorder %s18, 0
      %p129 = por %p127, %p128
      %s130 = ssub.s32 %s12, %s19
      %p131 = scmp.eq.s32.totalorder %s130, 0
      %s133 = sadd.s32 %s132, 1
      %s134 = scalar_select %p131, %s132, %s133
      %p137 = pneg %p131
      %p138 = scmp.eq.s32.totalorder %s12, 3
      %p139 = por %p137, %p138
      %p140 = scmp.ne.s32.totalorder %s132, %s135
      %p141 = scmp.eq.s32.totalorder %s12, 0
      %p142 = por %p140, %p141
      %p143 = scmp.ne.s32.totalorder %s132, %s135
      %p144 = scmp.eq.s32.totalorder %s17, 3
      %p145 = por %p143, %p144
      %p146 = scmp.ne.s32.totalorder %s135, %s136
      %p147 = scmp.eq.s32.totalorder %s17, 0
      %p148 = por %p146, %p147
      %p149 = scmp.ne.s32.totalorder %s135, %s136
      %p150 = scmp.eq.s32.totalorder %s18, 3
      %p151 = por %p149, %p150
      %p153 = scmp.ne.s32.totalorder %s136, %s152
      %p154 = scmp.eq.s32.totalorder %s18, 0
      %p155 = por %p153, %p154
      %p156 = scmp.le.s32.totalorder 1, %s12
      %p157 = scmp.lt.s32.totalorder %s12, 5
      %p158 = pnand %p156, %p157
      %p159 = pneg %p158
      // Predicated region
      $region9: #{grnvae_forward.3} parent=5 // pred_check
        _
      $region10: #{grnvae_forward.3} parent=5 // pred_check_branch
        %161 = sbr.rel (%p158) target = $region12
      $region11: #{grnvae_forward.3} parent=5 // pred_region
        %s162 = ssub.s32 %s12, 1
        // Predicated region
        $region13: #{grnvae_forward.3} parent=11 // pred_check
          %p163 = pneg %p59
        $region14: #{grnvae_forward.3} parent=11 // pred_check_branch
          %165 = sbr.rel (%p163) target = $region16
        $region15: #{grnvae_forward.3} parent=11 // pred_region
          _
        $region16: #{grnvae_forward.3} parent=11 // pred_fallthru
          _
        // Predicated region
        $region17: #{grnvae_forward.3} parent=11 // pred_check
          %p166 = pneg %p80
        $region18: #{grnvae_forward.3} parent=11 // pred_check_branch
          %168 = sbr.rel (%p166) target = $region20
        $region19: #{grnvae_forward.3} parent=11 // pred_region
          _
        $region20: #{grnvae_forward.3} parent=11 // pred_fallthru
          _
        // Predicated region
        $region21: #{grnvae_forward.3} parent=11 // pred_check
          %p169 = pneg %p101
        $region22: #{grnvae_forward.3} parent=11 // pred_check_branch
          %171 = sbr.rel (%p169) target = $region24
        $region23: #{grnvae_forward.3} parent=11 // pred_region
          _
        $region24: #{grnvae_forward.3} parent=11 // pred_fallthru
          _
        // Predicated region
        $region25: #{grnvae_forward.3} parent=11 // pred_check
          %p172 = pneg %p122
        $region26: #{grnvae_forward.3} parent=11 // pred_check_branch
          %174 = sbr.rel (%p172) target = $region28
        $region27: #{grnvae_forward.3} parent=11 // pred_region
          %s176 = ssub.s32 16, 16
          %177 = vsyncadd [#allocation3], %s176
          %s179 = sshll.u32 %s4, 4
          %s180 = int_to_ptr.vmem [resolvable:$true] %s179
          %182 = dma.vmem_to_smem %s180, 16, [#allocation2], [#allocation3]
        $region28: #{grnvae_forward.3} parent=11 // pred_fallthru
          _
      $region12: #{grnvae_forward.3} parent=5 // pred_fallthru
        _
      %p183 = scmp.lt.s32.totalorder %s12, 4
      // Predicated region
      $region29: #{grnvae_forward.3} parent=5 // pred_check
        %p184 = pneg %p183
      $region30: #{grnvae_forward.3} parent=5 // pred_check_branch
        %186 = sbr.rel (%p184) target = $region32
      $region31: #{grnvae_forward.3} parent=5 // pred_region
        // Predicated region
        $region33: #{grnvae_forward.3} parent=31 // pred_check
          %p187 = pneg %p32
        $region34: #{grnvae_forward.3} parent=31 // pred_check_branch
          %189 = sbr.rel (%p187) target = $region36
        $region35: #{grnvae_forward.3} parent=31 // pred_region
          %s190 = smul.u32 2, %s12
          %p191 = scmp.lt.s32.totalorder %s190, 7
          %s192 = scalar_select %p191, %s190, 7
          %s193 = smul.addr %s192, 8
          %s194 = scalar_lea.vmem %s0, %s193
          %s195 = smul.u32 2, %s12
        $region36: #{grnvae_forward.3} parent=31 // pred_fallthru
          _
      $region32: #{grnvae_forward.3} parent=5 // pred_fallthru
        _
      %p196 = scmp.le.s32.totalorder 1, %s12
      %p197 = scmp.lt.s32.totalorder %s12, 5
      %p198 = pnand %p196, %p197
      %p199 = pneg %p198
      // Predicated region
      $region37: #{grnvae_forward.3} parent=5 // pred_check
        _
      $region38: #{grnvae_forward.3} parent=5 // pred_check_branch
        %201 = sbr.rel (%p198) target = $region40
      $region39: #{grnvae_forward.3} parent=5 // pred_region
        %s202 = ssub.s32 %s12, 1
        // Predicated region
        $region41: #{grnvae_forward.3} parent=39 // pred_check
          %p203 = pneg %p122
        $region42: #{grnvae_forward.3} parent=39 // pred_check_branch
          %205 = sbr.rel (%p203) target = $region44
        $region43: #{grnvae_forward.3} parent=39 // pred_region
          %206 = dma.done [#allocation3], 16
        $region44: #{grnvae_forward.3} parent=39 // pred_fallthru
          _
        %207 = sfence
        %s208 = smul.u32 2, %s17
        %p209 = scmp.lt.s32.totalorder %s208, 7
        %s210 = scalar_select %p209, %s208, 7
        %s211 = smul.addr %s210, 8
        %s212 = scalar_lea.vmem %s0, %s211
        %p213 = pneg %p38
        %p214 = pneg %p35
        %p215 = pneg %p59
        %p216 = pneg %p56
        %p217 = pneg %p80
        %p218 = pneg %p77
        %p219 = pneg %p101
        %p220 = pneg %p98
        %p221 = pneg %p122
        %p222 = pneg %p119
        %p223 = pneg %p148
        %p224 = pneg %p145
        %p225 = scmp.lt.s32.totalorder %s17, 3
        %s226 = scalar_select %p225, %s17, 3
        %s227 = smul.addr %s226, 2
        %s228 = smul.addr %s227, 8
        %s229 = scalar_lea.vmem %s5, %s228
        %s230 = smul.u32 2, %s17
        %p231 = scmp.lt.s32.totalorder %s230, 7
        %s232 = scalar_select %p231, %s230, 7
        %s233 = smul.addr %s232, 8
        %s234 = scalar_lea.vmem %s0, %s233
        %s235 = smul.u32 2, %s17
        %p236 = scmp.lt.s32.totalorder %s17, 3
        %s237 = scalar_select %p236, %s17, 3
        %s238 = smul.addr %s237, 2
        %s239 = smul.addr %s238, 8
        %s240 = scalar_lea.vmem %s5, %s239
        %v242 = vld [vmem:[%s234] ss:$8 sm:$0x3]
        %s243 = scalar_lea.vmem %s234, 1
        %v244 = vld [vmem:[%s243] ss:$8 sm:$0x3]
        %s245 = scalar_lea.vmem %s234, 2
        %v246 = vld [vmem:[%s245] ss:$8 sm:$0x3]
        %s247 = scalar_lea.vmem %s234, 3
        %v248 = vld [vmem:[%s247] ss:$8 sm:$0x3]
        %s249 = scalar_lea.vmem %s234, 4
        %v250 = vld [vmem:[%s249] ss:$8 sm:$0x3]
        %s251 = sld [smem:[#allocation2]]
        %s252 = sld [smem:[#allocation2 + $0x1]]
        %s253 = sld [smem:[#allocation2 + $0x2]]
        %s254 = sld [smem:[#allocation2 + $0x3]]
        %s255 = sld [smem:[#allocation2 + $0x4]]
        %s256 = sld [smem:[#allocation2 + $0x5]]
        %s257 = sld [smem:[#allocation2 + $0x6]]
        %s258 = sld [smem:[#allocation2 + $0x7]]
        %s259 = sld [smem:[#allocation2 + $0x8]]
        %v260 = vld [vmem:[%s2] sm:$0xf]
        %v261 = vld [vmem:[%s2 + $0x4] sm:$0xf]
        %v262 = vld [vmem:[%s2 + $0x8] sm:$0xf]
        %v263 = vld [vmem:[%s2 + $0xc] sm:$0xf]
        %v264 = vld [vmem:[%s2 + $0x10] sm:$0xf]
        %v265 = vld [vmem:[%s2 + $0x14] sm:$0xf]
        %v266 = vld [vmem:[%s2 + $0x18] sm:$0xf]
        %v267 = vld [vmem:[%s2 + $0x1c] sm:$0xf]
        %v268 = vld [vmem:[%s2 + $0x20] sm:$0xf]
        %v269 = vld [vmem:[%s2 + $0x24] sm:$0xf]
        %v270 = vld [vmem:[%s2 + $0x28] sm:$0xf]
        %v271 = vld [vmem:[%s2 + $0x2c] sm:$0xf]
        %v272 = vld [vmem:[%s3] sm:$0xff]
        %v273 = vld [vmem:[%s3 + $0x8] sm:$0xff]
        %v274 = vld [vmem:[%s3 + $0x10] sm:$0xff]
        %v275 = vld [vmem:[%s3 + $0x18] sm:$0xff]
        %v276 = vld [vmem:[%s1] sm:$0xff]
        %v277 = vld [vmem:[%s1 + $0x8] sm:$0xff]
        %v278 = vld [vmem:[%s1 + $0x10] sm:$0xff]
        %v279 = vld [vmem:[%s1 + $0x18] sm:$0xff]
        %v280 = vld [vmem:[%s1 + $0x20] sm:$0xff]
        %v281 = vld [vmem:[%s1 + $0x28] sm:$0xff]
        %v282 = vld [vmem:[%s1 + $0x30] sm:$0xff]
        %v283 = vld [vmem:[%s1 + $0x38] sm:$0xff]
        %v284 = vld [vmem:[%s1 + $0x40] sm:$0xff]
        %v285 = vld [vmem:[%s1 + $0x48] sm:$0xff]
        %v286 = vld [vmem:[%s1 + $0x50] sm:$0xff]
        %v287 = vld [vmem:[%s1 + $0x58] sm:$0xff]
        %v288 = vld [vmem:[%s1 + $0x60] sm:$0xff]
        %v289 = vld [vmem:[%s1 + $0x68] sm:$0xff]
        %v290 = vld [vmem:[%s1 + $0x70] sm:$0xff]
        %v291 = vld [vmem:[%s1 + $0x78] sm:$0xff]
        %v292 = vld [vmem:[%s1 + $0x80] sm:$0xff]
        %v293 = vld [vmem:[%s1 + $0x88] sm:$0xff]
        %v294 = vld [vmem:[%s1 + $0x90] sm:$0xff]
        %v295 = vld [vmem:[%s1 + $0x98] sm:$0xff]
        %v296 = vld [vmem:[%s1 + $0xa0] sm:$0xff]
        %v297 = vld [vmem:[%s1 + $0xa8] sm:$0xff]
        %v298 = vld [vmem:[%s1 + $0xb0] sm:$0xff]
        %v299 = vld [vmem:[%s1 + $0xb8] sm:$0xff]
        %v300 = vld [vmem:[%s1 + $0xc0] sm:$0xff]
        %v301 = vld [vmem:[%s1 + $0xc8] sm:$0xff]
        %v302 = vld [vmem:[%s1 + $0xd0] sm:$0xff]
        %v303 = vld [vmem:[%s1 + $0xd8] sm:$0xff]
        %v304 = vld [vmem:[%s1 + $0xe0] sm:$0xff]
        %v305 = vld [vmem:[%s1 + $0xe8] sm:$0xff]
        %v306 = vld [vmem:[%s1 + $0xf0] sm:$0xff]
        %v307 = vld [vmem:[%s1 + $0xf8] sm:$0xff]
        %v308 = vld [vmem:[%s1 + $0x100] sm:$0xff]
        %v309 = vld [vmem:[%s1 + $0x108] sm:$0xff]
        %v310 = vld [vmem:[%s1 + $0x110] sm:$0xff]
        %v311 = vld [vmem:[%s1 + $0x118] sm:$0xff]
        %v312 = vld [vmem:[%s1 + $0x120] sm:$0xff]
        %v313 = vld [vmem:[%s1 + $0x128] sm:$0xff]
        %v314 = vld [vmem:[%s1 + $0x130] sm:$0xff]
        %v315 = vld [vmem:[%s1 + $0x138] sm:$0xff]
        %v316 = vld [vmem:[%s1 + $0x140] sm:$0xff]
        %v317 = vld [vmem:[%s1 + $0x148] sm:$0xff]
        %v318 = vld [vmem:[%s1 + $0x150] sm:$0xff]
        %v319 = vld [vmem:[%s1 + $0x158] sm:$0xff]
        %v320 = vld [vmem:[%s1 + $0x160] sm:$0xff]
        %v321 = vld [vmem:[%s1 + $0x168] sm:$0xff]
        %v322 = vld [vmem:[%s1 + $0x170] sm:$0xff]
        %v323 = vld [vmem:[%s1 + $0x178] sm:$0xff]
        %v324 = vld [vmem:[%s1 + $0x180] sm:$0xff]
        %v325 = vld [vmem:[%s1 + $0x188] sm:$0xff]
        %v326 = vld [vmem:[%s1 + $0x190] sm:$0xff]
        %v327 = vld [vmem:[%s1 + $0x198] sm:$0xff]
        %v328 = vld [vmem:[%s1 + $0x1a0] sm:$0xff]
        %v329 = vld [vmem:[%s1 + $0x1a8] sm:$0xff]
        %v330 = vld [vmem:[%s1 + $0x1b0] sm:$0xff]
        %v331 = vld [vmem:[%s1 + $0x1b8] sm:$0xff]
        %v332 = vld [vmem:[%s1 + $0x1c0] sm:$0xff]
        %v333 = vld [vmem:[%s1 + $0x1c8] sm:$0xff]
        %v334 = vld [vmem:[%s1 + $0x1d0] sm:$0xff]
        %v335 = vld [vmem:[%s1 + $0x1d8] sm:$0xff]
        %v336 = vld [vmem:[%s1 + $0x1e0] sm:$0xff]
        %v337 = vld [vmem:[%s1 + $0x1e8] sm:$0xff]
        %v338 = vld [vmem:[%s1 + $0x1f0] sm:$0xff]
        %v339 = vld [vmem:[%s1 + $0x1f8] sm:$0xff]
        %v340 = vld [vmem:[%s1 + $0x200] sm:$0xff]
        %v341 = vld [vmem:[%s1 + $0x208] sm:$0xff]
        %v342 = vld [vmem:[%s1 + $0x210] sm:$0xff]
        %v343 = vld [vmem:[%s1 + $0x218] sm:$0xff]
        %v344 = vld [vmem:[%s1 + $0x220] sm:$0xff]
        %v345 = vld [vmem:[%s1 + $0x228] sm:$0xff]
        %v346 = vld [vmem:[%s1 + $0x230] sm:$0xff]
        %v347 = vld [vmem:[%s1 + $0x238] sm:$0xff]
        %v348 = vld [vmem:[%s1 + $0x240] sm:$0xff]
        %v349 = vld [vmem:[%s1 + $0x248] sm:$0xff]
        %v350 = vld [vmem:[%s1 + $0x250] sm:$0xff]
        %v351 = vld [vmem:[%s1 + $0x258] sm:$0xff]
        %v352 = vld [vmem:[%s1 + $0x260] sm:$0xff]
        %v353 = vld [vmem:[%s1 + $0x268] sm:$0xff]
        %v354 = vld [vmem:[%s1 + $0x270] sm:$0xff]
        %v355 = vld [vmem:[%s1 + $0x278] sm:$0xff]
        %v356 = vld [vmem:[%s1 + $0x280] sm:$0xff]
        %v357 = vld [vmem:[%s1 + $0x288] sm:$0xff]
        %v358 = vld [vmem:[%s1 + $0x290] sm:$0xff]
        %v359 = vld [vmem:[%s1 + $0x298] sm:$0xff]
        %v360 = vld [vmem:[%s1 + $0x2a0] sm:$0xff]
        %v361 = vld [vmem:[%s1 + $0x2a8] sm:$0xff]
        %v362 = vld [vmem:[%s1 + $0x2b0] sm:$0xff]
        %v363 = vld [vmem:[%s1 + $0x2b8] sm:$0xff]
        %v364 = vld [vmem:[%s1 + $0x2c0] sm:$0xff]
        %v365 = vld [vmem:[%s1 + $0x2c8] sm:$0xff]
        %v366 = vld [vmem:[%s1 + $0x2d0] sm:$0xff]
        %v367 = vld [vmem:[%s1 + $0x2d8] sm:$0xff]
        %v368 = vld [vmem:[%s1 + $0x2e0] sm:$0xff]
        %v369 = vld [vmem:[%s1 + $0x2e8] sm:$0xff]
        %v370 = vld [vmem:[%s1 + $0x2f0] sm:$0xff]
        %v371 = vld [vmem:[%s1 + $0x2f8] sm:$0xff]
        %v372 = vld [vmem:[%s1 + $0x300] sm:$0xff]
        %v373 = vld [vmem:[%s1 + $0x308] sm:$0xff]
        %v374 = vld [vmem:[%s1 + $0x310] sm:$0xff]
        %v375 = vld [vmem:[%s1 + $0x318] sm:$0xff]
        %v376 = vld [vmem:[%s1 + $0x320] sm:$0xff]
        %v377 = vld [vmem:[%s1 + $0x328] sm:$0xff]
        %v378 = vld [vmem:[%s1 + $0x330] sm:$0xff]
        %v379 = vld [vmem:[%s1 + $0x338] sm:$0xff]
        %v380 = vld [vmem:[%s1 + $0x340] sm:$0xff]
        %v381 = vld [vmem:[%s1 + $0x348] sm:$0xff]
        %v382 = vld [vmem:[%s1 + $0x350] sm:$0xff]
        %v383 = vld [vmem:[%s1 + $0x358] sm:$0xff]
        %v384 = vld [vmem:[%s1 + $0x360] sm:$0xff]
        %v385 = vld [vmem:[%s1 + $0x368] sm:$0xff]
        %v386 = vld [vmem:[%s1 + $0x370] sm:$0xff]
        %v387 = vld [vmem:[%s1 + $0x378] sm:$0xff]
        %v388 = vld [vmem:[%s1 + $0x380] sm:$0xff]
        %v389 = vld [vmem:[%s1 + $0x388] sm:$0xff]
        %v390 = vld [vmem:[%s1 + $0x390] sm:$0xff]
        %v391 = vld [vmem:[%s1 + $0x398] sm:$0xff]
        %v392 = vld [vmem:[%s1 + $0x3a0] sm:$0xff]
        %v393 = vld [vmem:[%s1 + $0x3a8] sm:$0xff]
        %v394 = vld [vmem:[%s1 + $0x3b0] sm:$0xff]
        %v395 = vld [vmem:[%s1 + $0x3b8] sm:$0xff]
        %v396 = vld [vmem:[%s1 + $0x3c0] sm:$0xff]
        %v397 = vld [vmem:[%s1 + $0x3c8] sm:$0xff]
        %v398 = vld [vmem:[%s1 + $0x3d0] sm:$0xff]
        %v399 = vld [vmem:[%s1 + $0x3d8] sm:$0xff]
        %v400 = vld [vmem:[%s1 + $0x3e0] sm:$0xff]
        %v401 = vld [vmem:[%s1 + $0x3e8] sm:$0xff]
        %v402 = vld [vmem:[%s1 + $0x3f0] sm:$0xff]
        %v403 = vld [vmem:[%s1 + $0x3f8] sm:$0xff]
        %vm404 = vcmp.lt.f32.partialorder %v244, 0.05
        %v405 = vsel %vm404, 1, 0
        %v406 = vcvt.s32.f32 %v405
        %v407 = vsub.f32 1.0, %v406
        %v408 = vmul.f32 %v242, %v407
        %v409 = vstv %s251
        %v410 = vsub.f32 %v408, %v409
        %v411 = vstv %s252
        %v412 = vrcp.pop %v411
        %v413 = vmul.f32 %v410, %v412
        %415 = vset.pattern.permute.xlu0 0
        %416 = vperm.xlu0 %415, %v272
        %v417 = vpop.permute.xlu0 %416
        %420 = vset.pattern.permute.xlu0 0
        %421 = vperm.xlu0 %420, %v273
        %v422 = vpop.permute.xlu0 %421
        %425 = vset.pattern.permute.xlu0 0
        %426 = vperm.xlu0 %425, %v274
        %v427 = vpop.permute.xlu0 %426
        %430 = vset.pattern.permute.xlu0 0
        %431 = vperm.xlu0 %430, %v275
        %v432 = vpop.permute.xlu0 %431
        %v435 = vlaneseq
        %v436 = vshrl.u32 %v435, 7
        %v437 = vsub.s32 0, %v436
        %v438 = vrot.slane %v413, %v437
        %v439 = vlaneseq
        %v440 = vshrl.u32 %v439, 7
        %v441 = vsub.s32 1, %v440
        %v442 = vrot.slane %v413, %v441
        %v445 = vmul.f32 %v417, %v438
        %v446 = vmul.f32 %v417, %v442
        %v447 = vmul.f32 %v422, %v438
        %v448 = vmul.f32 %v422, %v442
        %v449 = vmul.f32 %v427, %v438
        %v450 = vmul.f32 %v427, %v442
        %v451 = vmul.f32 %v432, %v438
        %v452 = vmul.f32 %v432, %v442
        %453 = vset.pattern.permute.xlu0 1
        %454 = vperm.xlu0 %453, %v272
        %v455 = vpop.permute.xlu0 %454
        %457 = vset.pattern.permute.xlu0 1
        %458 = vperm.xlu0 %457, %v273
        %v459 = vpop.permute.xlu0 %458
        %461 = vset.pattern.permute.xlu0 1
        %462 = vperm.xlu0 %461, %v274
        %v463 = vpop.permute.xlu0 %462
        %465 = vset.pattern.permute.xlu0 1
        %466 = vperm.xlu0 %465, %v275
        %v467 = vpop.permute.xlu0 %466
        %v469 = vadd.f32 %v445, %v455
        %v470 = vadd.f32 %v446, %v455
        %v471 = vadd.f32 %v447, %v459
        %v472 = vadd.f32 %v448, %v459
        %v473 = vadd.f32 %v449, %v463
        %v474 = vadd.f32 %v450, %v463
        %v475 = vadd.f32 %v451, %v467
        %v476 = vadd.f32 %v452, %v467
        %v477 = vtanh.pop %v469
        %v478 = vtanh.pop %v470
        %v479 = vtanh.pop %v471
        %v480 = vtanh.pop %v472
        %v481 = vtanh.pop %v473
        %v482 = vtanh.pop %v474
        %v483 = vtanh.pop %v475
        %v484 = vtanh.pop %v476
        %v485 = vpack.c.bf16 %v479, %v477
        %v486 = vpack.c.bf16 %v480, %v478
        %v487 = vpack.c.bf16 %v483, %v481
        %v488 = vpack.c.bf16 %v484, %v482
        %489 = vset.pattern.permute.xlu0 2
        %490 = vperm.xlu0 %489, %v272
        %v491 = vpop.permute.xlu0 %490
        %493 = vset.pattern.permute.xlu0 2
        %494 = vperm.xlu0 %493, %v273
        %v495 = vpop.permute.xlu0 %494
        %497 = vset.pattern.permute.xlu0 2
        %498 = vperm.xlu0 %497, %v274
        %v499 = vpop.permute.xlu0 %498
        %501 = vset.pattern.permute.xlu0 2
        %502 = vperm.xlu0 %501, %v275
        %v503 = vpop.permute.xlu0 %502
        %v509 = vunpack.c.l.b16 %v260
        %v510 = vunpack.c.l.b16 %v261
        %v511 = vunpack.c.l.b16 %v262
        %v512 = vunpack.c.l.b16 %v263
        %v513 = vpack.c.b16 %v510, %v509
        %v514 = vpack.c.b16 %v512, %v511
        %vm515 = vcmask 261120
        %v517 = vsel %vm515, %v513, 0
        %v520 = vsel %vm515, %v514, 0
        %522 = vmatprep.subr.bf16.mxu0 0
        %523 = vmatpush1.bf16.msra.mxu0 0
        %524 = vmatprep.subr.bf16.mxu0 0
        %525 = vmatpush1.bf16.msra.mxu0 0
        %526 = vmatprep.subr.bf16.mxu0 0
        %527 = vmatpush1.bf16.msra.mxu0 0
        %528 = vmatprep.subr.bf16.mxu0 0
        %529 = vmatpush1.bf16.msra.mxu0 0
        %530 = vmatprep.subr.bf16.mxu0 0
        %531 = vmatpush1.bf16.msra.mxu0 0
        %532 = vmatprep.subr.bf16.mxu0 0
        %533 = vmatpush1.bf16.msra.mxu0 0
        %534 = vmatprep.subr.bf16.mxu0 %v488
        %535 = vmatpush1.bf16.msra.mxu0 %v487
        %536 = vmatprep.subr.bf16.mxu0 %v486
        %537 = vmatpush1.bf16.msra.mxu0 %v485
        %538 = vmatprep.subr.bf16.mxu0 0
        %539 = vmatpush2.bf16.msra.mxu0 0
        %540 = vmatprep.subr.bf16.mxu0 0
        %541 = vmatpush2.bf16.msra.mxu0 0
        %542 = vmatprep.subr.bf16.mxu0 0
        %543 = vmatpush2.bf16.msra.mxu0 0
        %544 = vmatprep.subr.bf16.mxu0 0
        %545 = vmatpush2.bf16.msra.mxu0 0
        %546 = vmatprep.subr.bf16.mxu0 0
        %547 = vmatpush2.bf16.msra.mxu0 0
        %548 = vmatprep.subr.bf16.mxu0 0
        %549 = vmatpush2.bf16.msra.mxu0 0
        %550 = vmatprep.subr.bf16.mxu0 0
        %551 = vmatpush2.bf16.msra.mxu0 0
        %552 = vmatprep.subr.bf16.mxu0 0
        %553 = vmatpush2.bf16.msra.mxu0 0
        %554 = vmatprep.mubr.bf16.mxu0 0
        %555 = vmatmul.mubr.bf16.gmra.mxu0 %v517
        %v556 = vpop.f32.mrf.mxu0
        %v557 = vadd.f32 %v491, %v556
        %v558 = vpop.f32.mrf.mxu0
        %v559 = vadd.f32 %v491, %v558
        %v560 = vpop.f32.mrf.mxu0
        %v561 = vadd.f32 %v495, %v560
        %v562 = vpop.f32.mrf.mxu0
        %v563 = vadd.f32 %v495, %v562
        %564 = vmatprep.mubr.bf16.mxu0 0
        %565 = vmatmul.mubr.bf16.gmra.mxu0 %v520
        %v566 = vpop.f32.mrf.mxu0
        %v567 = vadd.f32 %v499, %v566
        %v568 = vpop.f32.mrf.mxu0
        %v569 = vadd.f32 %v499, %v568
        %v570 = vpop.f32.mrf.mxu0
        %v571 = vadd.f32 %v503, %v570
        %v572 = vpop.f32.mrf.mxu0
        %v573 = vadd.f32 %v503, %v572
        %574 = vdwg.mxu0
        %v575 = vtanh.pop %v557
        %v576 = vtanh.pop %v559
        %v577 = vtanh.pop %v561
        %v578 = vtanh.pop %v563
        %v579 = vtanh.pop %v567
        %v580 = vtanh.pop %v569
        %v581 = vtanh.pop %v571
        %v582 = vtanh.pop %v573
        %v583 = vpack.c.bf16 %v577, %v575
        %v584 = vpack.c.bf16 %v578, %v576
        %v585 = vpack.c.bf16 %v581, %v579
        %v586 = vpack.c.bf16 %v582, %v580
        %v589 = vunpack.c.l.b16 %v268
        %v590 = vunpack.c.l.b16 %v269
        %v591 = vpack.c.b16 %v590, %v589
        %v593 = vsel %vm515, %v591, 0
        %595 = vmatprep.subr.bf16.mxu0 0
        %596 = vmatpush1.bf16.msra.mxu0 0
        %597 = vmatprep.subr.bf16.mxu0 0
        %598 = vmatpush1.bf16.msra.mxu0 0
        %599 = vmatprep.subr.bf16.mxu0 0
        %600 = vmatpush1.bf16.msra.mxu0 0
        %601 = vmatprep.subr.bf16.mxu0 0
        %602 = vmatpush1.bf16.msra.mxu0 0
        %603 = vmatprep.subr.bf16.mxu0 0
        %604 = vmatpush1.bf16.msra.mxu0 0
        %605 = vmatprep.subr.bf16.mxu0 0
        %606 = vmatpush1.bf16.msra.mxu0 0
        %607 = vmatprep.subr.bf16.mxu0 %v586
        %608 = vmatpush1.bf16.msra.mxu0 %v585
        %609 = vmatprep.subr.bf16.mxu0 %v584
        %610 = vmatpush1.bf16.msra.mxu0 %v583
        %611 = vmatprep.subr.bf16.mxu0 0
        %612 = vmatpush2.bf16.msra.mxu0 0
        %613 = vmatprep.subr.bf16.mxu0 0
        %614 = vmatpush2.bf16.msra.mxu0 0
        %615 = vmatprep.subr.bf16.mxu0 0
        %616 = vmatpush2.bf16.msra.mxu0 0
        %617 = vmatprep.subr.bf16.mxu0 0
        %618 = vmatpush2.bf16.msra.mxu0 0
        %619 = vmatprep.subr.bf16.mxu0 0
        %620 = vmatpush2.bf16.msra.mxu0 0
        %621 = vmatprep.subr.bf16.mxu0 0
        %622 = vmatpush2.bf16.msra.mxu0 0
        %623 = vmatprep.subr.bf16.mxu0 0
        %624 = vmatpush2.bf16.msra.mxu0 0
        %625 = vmatprep.subr.bf16.mxu0 0
        %626 = vmatpush2.bf16.msra.mxu0 0
        %627 = vmatprep.mubr.bf16.mxu0 0
        %628 = vmatmul.mubr.bf16.gmra.mxu0 %v593
        %v629 = vpop.f32.mrf.mxu0
        %v630 = vadd.f32 0.0, %v629
        %v631 = vpop.f32.mrf.mxu0
        %v632 = vadd.f32 0.0, %v631
        %v633 = vpop.f32.mrf.mxu0
        %v634 = vadd.f32 0.0, %v633
        %v635 = vpop.f32.mrf.mxu0
        %v636 = vadd.f32 0.0, %v635
        %637 = vdwg.mxu0
        %638 = vmatprep.subr.mxu0 %v307
        %639 = vmatpush1.msra.mxu0 %v306
        %640 = vmatprep.subr.mxu0 %v305
        %641 = vmatpush1.msra.mxu0 %v304
        %642 = vmatprep.subr.mxu0 %v303
        %643 = vmatpush1.msra.mxu0 %v302
        %644 = vmatprep.subr.mxu0 %v301
        %645 = vmatpush1.msra.mxu0 %v300
        %646 = vmatprep.subr.mxu0 %v299
        %647 = vmatpush1.msra.mxu0 %v298
        %648 = vmatprep.subr.mxu0 %v297
        %649 = vmatpush1.msra.mxu0 %v296
        %650 = vmatprep.subr.mxu0 %v295
        %651 = vmatpush1.msra.mxu0 %v294
        %652 = vmatprep.subr.mxu0 %v293
        %653 = vmatpush1.msra.mxu0 %v292
        %654 = vmatprep.subr.mxu0 %v291
        %655 = vmatpush1.msra.mxu0 %v290
        %656 = vmatprep.subr.mxu0 %v289
        %657 = vmatpush1.msra.mxu0 %v288
        %658 = vmatprep.subr.mxu0 %v287
        %659 = vmatpush1.msra.mxu0 %v286
        %660 = vmatprep.subr.mxu0 %v285
        %661 = vmatpush1.msra.mxu0 %v284
        %662 = vmatprep.subr.mxu0 %v283
        %663 = vmatpush1.msra.mxu0 %v282
        %664 = vmatprep.subr.mxu0 %v281
        %665 = vmatpush1.msra.mxu0 %v280
        %666 = vmatprep.subr.mxu0 %v279
        %667 = vmatpush1.msra.mxu0 %v278
        %668 = vmatprep.subr.mxu0 %v277
        %669 = vmatpush1.msra.mxu0 %v276
        %670 = vmatprep.subr.mxu0 %v339
        %671 = vmatpush2.msra.mxu0 %v338
        %672 = vmatprep.subr.mxu0 %v337
        %673 = vmatpush2.msra.mxu0 %v336
        %674 = vmatprep.subr.mxu0 %v335
        %675 = vmatpush2.msra.mxu0 %v334
        %676 = vmatprep.subr.mxu0 %v333
        %677 = vmatpush2.msra.mxu0 %v332
        %678 = vmatprep.subr.mxu0 %v331
        %679 = vmatpush2.msra.mxu0 %v330
        %680 = vmatprep.subr.mxu0 %v329
        %681 = vmatpush2.msra.mxu0 %v328
        %682 = vmatprep.subr.mxu0 %v327
        %683 = vmatpush2.msra.mxu0 %v326
        %684 = vmatprep.subr.mxu0 %v325
        %685 = vmatpush2.msra.mxu0 %v324
        %686 = vmatprep.subr.mxu0 %v323
        %687 = vmatpush2.msra.mxu0 %v322
        %688 = vmatprep.subr.mxu0 %v321
        %689 = vmatpush2.msra.mxu0 %v320
        %690 = vmatprep.subr.mxu0 %v319
        %691 = vmatpush2.msra.mxu0 %v318
        %692 = vmatprep.subr.mxu0 %v317
        %693 = vmatpush2.msra.mxu0 %v316
        %694 = vmatprep.subr.mxu0 %v315
        %695 = vmatpush2.msra.mxu0 %v314
        %696 = vmatprep.subr.mxu0 %v313
        %697 = vmatpush2.msra.mxu0 %v312
        %698 = vmatprep.subr.mxu0 %v311
        %699 = vmatpush2.msra.mxu0 %v310
        %700 = vmatprep.subr.mxu0 %v309
        %701 = vmatpush2.msra.mxu0 %v308
        %702 = vmatprep.mubr.f32.mxu0 %v632
        %703 = vmatmul.mubr.f32.gmra.mxu0 %v630
        %v704 = vpop.f32.mrf.mxu0
        %v705 = vadd.f32 0.0, %v704
        %v706 = vpop.f32.mrf.mxu0
        %v707 = vadd.f32 0.0, %v706
        %708 = vmatprep.mubr.f32.mxu0 %v636
        %709 = vmatmul.mubr.f32.gmra.mxu0 %v634
        %v710 = vpop.f32.mrf.mxu0
        %v711 = vpop.f32.mrf.mxu0
        %712 = vdwg.mxu0
        %v714 = vlaneseq
        %v715 = vshrl.u32 %v714, 7
        %v716 = vsub.s32 0, %v715
        %v717 = vrot.slane %v248, %v716
        %v718 = vlaneseq
        %v719 = vshrl.u32 %v718, 7
        %v720 = vsub.s32 1, %v719
        %v721 = vrot.slane %v248, %v720
        %v724 = vadd.f32 %v705, %v717
        %v725 = vadd.f32 %v707, %v721
        %v727 = vlaneseq
        %v728 = vshrl.u32 %v727, 7
        %v729 = vsub.s32 0, %v728
        %v730 = vrot.slane %v250, %v729
        %v731 = vlaneseq
        %v732 = vshrl.u32 %v731, 7
        %v733 = vsub.s32 1, %v732
        %v734 = vrot.slane %v250, %v733
        %v737 = vadd.f32 %v705, %v730
        %v738 = vadd.f32 %v707, %v734
        %v739 = vmul.f32 %v737, 0.5
        %v740 = vmul.f32 %v738, 0.5
        %v741 = vmul.f32 %v739, 1.442695
        %v742 = vpow.pop %v741
        %v743 = vmul.f32 %v740, 1.442695
        %v744 = vpow.pop %v743
        %v746 = vlaneseq
        %v747 = vshrl.u32 %v746, 7
        %v748 = vsub.s32 0, %v747
        %v749 = vrot.slane %v246, %v748
        %v750 = vlaneseq
        %v751 = vshrl.u32 %v750, 7
        %v752 = vsub.s32 1, %v751
        %v753 = vrot.slane %v246, %v752
        %v756 = vmul.f32 %v742, %v749
        %v757 = vmul.f32 %v744, %v753
        %v760 = vrot.slane %v756, 1
        %v761 = vrot.slane %v757, 1
        %v764 = vadd.f32 %v724, %v760
        %v765 = vadd.f32 %v725, %v761
        %vm766 = vcmask 1040384
        %v767 = vsel %vm766, %v764, 0.0
        %v768 = vsel %vm766, %v765, 0.0
        %769 = vmatprep.subr.mxu0 %v371
        %770 = vmatpush1.msra.mxu0 %v370
        %771 = vmatprep.subr.mxu0 %v369
        %772 = vmatpush1.msra.mxu0 %v368
        %773 = vmatprep.subr.mxu0 %v367
        %774 = vmatpush1.msra.mxu0 %v366
        %775 = vmatprep.subr.mxu0 %v365
        %776 = vmatpush1.msra.mxu0 %v364
        %777 = vmatprep.subr.mxu0 %v363
        %778 = vmatpush1.msra.mxu0 %v362
        %779 = vmatprep.subr.mxu0 %v361
        %780 = vmatpush1.msra.mxu0 %v360
        %781 = vmatprep.subr.mxu0 %v359
        %782 = vmatpush1.msra.mxu0 %v358
        %783 = vmatprep.subr.mxu0 %v357
        %784 = vmatpush1.msra.mxu0 %v356
        %785 = vmatprep.subr.mxu0 %v355
        %786 = vmatpush1.msra.mxu0 %v354
        %787 = vmatprep.subr.mxu0 %v353
        %788 = vmatpush1.msra.mxu0 %v352
        %789 = vmatprep.subr.mxu0 %v351
        %790 = vmatpush1.msra.mxu0 %v350
        %791 = vmatprep.subr.mxu0 %v349
        %792 = vmatpush1.msra.mxu0 %v348
        %793 = vmatprep.subr.mxu0 %v347
        %794 = vmatpush1.msra.mxu0 %v346
        %795 = vmatprep.subr.mxu0 %v345
        %796 = vmatpush1.msra.mxu0 %v344
        %797 = vmatprep.subr.mxu0 %v343
        %798 = vmatpush1.msra.mxu0 %v342
        %799 = vmatprep.subr.mxu0 %v341
        %800 = vmatpush1.msra.mxu0 %v340
        %801 = vmatprep.subr.mxu0 %v403
        %802 = vmatpush2.msra.mxu0 %v402
        %803 = vmatprep.subr.mxu0 %v401
        %804 = vmatpush2.msra.mxu0 %v400
        %805 = vmatprep.subr.mxu0 %v399
        %806 = vmatpush2.msra.mxu0 %v398
        %807 = vmatprep.subr.mxu0 %v397
        %808 = vmatpush2.msra.mxu0 %v396
        %809 = vmatprep.subr.mxu0 %v395
        %810 = vmatpush2.msra.mxu0 %v394
        %811 = vmatprep.subr.mxu0 %v393
        %812 = vmatpush2.msra.mxu0 %v392
        %813 = vmatprep.subr.mxu0 %v391
        %814 = vmatpush2.msra.mxu0 %v390
        %815 = vmatprep.subr.mxu0 %v389
        %816 = vmatpush2.msra.mxu0 %v388
        %817 = vmatprep.subr.mxu0 %v387
        %818 = vmatpush2.msra.mxu0 %v386
        %819 = vmatprep.subr.mxu0 %v385
        %820 = vmatpush2.msra.mxu0 %v384
        %821 = vmatprep.subr.mxu0 %v383
        %822 = vmatpush2.msra.mxu0 %v382
        %823 = vmatprep.subr.mxu0 %v381
        %824 = vmatpush2.msra.mxu0 %v380
        %825 = vmatprep.subr.mxu0 %v379
        %826 = vmatpush2.msra.mxu0 %v378
        %827 = vmatprep.subr.mxu0 %v377
        %828 = vmatpush2.msra.mxu0 %v376
        %829 = vmatprep.subr.mxu0 %v375
        %830 = vmatpush2.msra.mxu0 %v374
        %831 = vmatprep.subr.mxu0 %v373
        %832 = vmatpush2.msra.mxu0 %v372
        %833 = vmatprep.mubr.f32.mxu0 %v768
        %834 = vmatmul.mubr.f32.gmra.mxu0 %v767
        %v835 = vpop.f32.mrf.mxu0
        %v836 = vadd.f32 0.0, %v835
        %v837 = vpop.f32.mrf.mxu0
        %v838 = vadd.f32 0.0, %v837
        %839 = vdwg.mxu0
        %840 = vset.pattern.permute.xlu0 3
        %841 = vperm.xlu0 %840, %v272
        %v842 = vpop.permute.xlu0 %841
        %844 = vset.pattern.permute.xlu0 3
        %845 = vperm.xlu0 %844, %v273
        %v846 = vpop.permute.xlu0 %845
        %848 = vset.pattern.permute.xlu0 3
        %849 = vperm.xlu0 %848, %v274
        %v850 = vpop.permute.xlu0 %849
        %852 = vset.pattern.permute.xlu0 3
        %853 = vperm.xlu0 %852, %v275
        %v854 = vpop.permute.xlu0 %853
        %v856 = vlaneseq
        %v857 = vshrl.u32 %v856, 7
        %v858 = vsub.s32 0, %v857
        %v859 = vrot.slane %v836, %v858
        %v860 = vlaneseq
        %v861 = vshrl.u32 %v860, 7
        %v862 = vsub.s32 0, %v861
        %v863 = vrot.slane %v838, %v862
        %v864 = vmul.f32 %v842, %v859
        %v865 = vmul.f32 %v842, %v863
        %v866 = vmul.f32 %v846, %v859
        %v867 = vmul.f32 %v846, %v863
        %v868 = vmul.f32 %v850, %v859
        %v869 = vmul.f32 %v850, %v863
        %v870 = vmul.f32 %v854, %v859
        %v871 = vmul.f32 %v854, %v863
        %872 = vset.pattern.permute.xlu0 4
        %873 = vperm.xlu0 %872, %v272
        %v874 = vpop.permute.xlu0 %873
        %876 = vset.pattern.permute.xlu0 4
        %877 = vperm.xlu0 %876, %v273
        %v878 = vpop.permute.xlu0 %877
        %880 = vset.pattern.permute.xlu0 4
        %881 = vperm.xlu0 %880, %v274
        %v882 = vpop.permute.xlu0 %881
        %884 = vset.pattern.permute.xlu0 4
        %885 = vperm.xlu0 %884, %v275
        %v886 = vpop.permute.xlu0 %885
        %v888 = vadd.f32 %v864, %v874
        %v889 = vadd.f32 %v865, %v874
        %v890 = vadd.f32 %v866, %v878
        %v891 = vadd.f32 %v867, %v878
        %v892 = vadd.f32 %v868, %v882
        %v893 = vadd.f32 %v869, %v882
        %v894 = vadd.f32 %v870, %v886
        %v895 = vadd.f32 %v871, %v886
        %v896 = vtanh.pop %v888
        %v897 = vtanh.pop %v889
        %v898 = vtanh.pop %v890
        %v899 = vtanh.pop %v891
        %v900 = vtanh.pop %v892
        %v901 = vtanh.pop %v893
        %v902 = vtanh.pop %v894
        %v903 = vtanh.pop %v895
        %v904 = vpack.c.bf16 %v898, %v896
        %v905 = vpack.c.bf16 %v899, %v897
        %v906 = vpack.c.bf16 %v902, %v900
        %v907 = vpack.c.bf16 %v903, %v901
        %908 = vset.pattern.permute.xlu0 5
        %909 = vperm.xlu0 %908, %v272
        %v910 = vpop.permute.xlu0 %909
        %912 = vset.pattern.permute.xlu0 5
        %913 = vperm.xlu0 %912, %v273
        %v914 = vpop.permute.xlu0 %913
        %916 = vset.pattern.permute.xlu0 5
        %917 = vperm.xlu0 %916, %v274
        %v918 = vpop.permute.xlu0 %917
        %920 = vset.pattern.permute.xlu0 5
        %921 = vperm.xlu0 %920, %v275
        %v922 = vpop.permute.xlu0 %921
        %v928 = vunpack.c.l.b16 %v264
        %v929 = vunpack.c.l.b16 %v265
        %v930 = vunpack.c.l.b16 %v266
        %v931 = vunpack.c.l.b16 %v267
        %v932 = vpack.c.b16 %v929, %v928
        %v933 = vpack.c.b16 %v931, %v930
        %v935 = vsel %vm515, %v932, 0
        %v938 = vsel %vm515, %v933, 0
        %940 = vmatprep.subr.bf16.mxu0 0
        %941 = vmatpush1.bf16.msra.mxu0 0
        %942 = vmatprep.subr.bf16.mxu0 0
        %943 = vmatpush1.bf16.msra.mxu0 0
        %944 = vmatprep.subr.bf16.mxu0 0
        %945 = vmatpush1.bf16.msra.mxu0 0
        %946 = vmatprep.subr.bf16.mxu0 0
        %947 = vmatpush1.bf16.msra.mxu0 0
        %948 = vmatprep.subr.bf16.mxu0 0
        %949 = vmatpush1.bf16.msra.mxu0 0
        %950 = vmatprep.subr.bf16.mxu0 0
        %951 = vmatpush1.bf16.msra.mxu0 0
        %952 = vmatprep.subr.bf16.mxu0 %v907
        %953 = vmatpush1.bf16.msra.mxu0 %v906
        %954 = vmatprep.subr.bf16.mxu0 %v905
        %955 = vmatpush1.bf16.msra.mxu0 %v904
        %956 = vmatprep.subr.bf16.mxu0 0
        %957 = vmatpush2.bf16.msra.mxu0 0
        %958 = vmatprep.subr.bf16.mxu0 0
        %959 = vmatpush2.bf16.msra.mxu0 0
        %960 = vmatprep.subr.bf16.mxu0 0
        %961 = vmatpush2.bf16.msra.mxu0 0
        %962 = vmatprep.subr.bf16.mxu0 0
        %963 = vmatpush2.bf16.msra.mxu0 0
        %964 = vmatprep.subr.bf16.mxu0 0
        %965 = vmatpush2.bf16.msra.mxu0 0
        %966 = vmatprep.subr.bf16.mxu0 0
        %967 = vmatpush2.bf16.msra.mxu0 0
        %968 = vmatprep.subr.bf16.mxu0 0
        %969 = vmatpush2.bf16.msra.mxu0 0
        %970 = vmatprep.subr.bf16.mxu0 0
        %971 = vmatpush2.bf16.msra.mxu0 0
        %972 = vmatprep.mubr.bf16.mxu0 0
        %973 = vmatmul.mubr.bf16.gmra.mxu0 %v935
        %v974 = vpop.f32.mrf.mxu0
        %v975 = vadd.f32 %v910, %v974
        %v976 = vpop.f32.mrf.mxu0
        %v977 = vadd.f32 %v910, %v976
        %v978 = vpop.f32.mrf.mxu0
        %v979 = vadd.f32 %v914, %v978
        %v980 = vpop.f32.mrf.mxu0
        %v981 = vadd.f32 %v914, %v980
        %982 = vmatprep.mubr.bf16.mxu0 0
        %983 = vmatmul.mubr.bf16.gmra.mxu0 %v938
        %v984 = vpop.f32.mrf.mxu0
        %v985 = vadd.f32 %v918, %v984
        %v986 = vpop.f32.mrf.mxu0
        %v987 = vadd.f32 %v918, %v986
        %v988 = vpop.f32.mrf.mxu0
        %v989 = vadd.f32 %v922, %v988
        %v990 = vpop.f32.mrf.mxu0
        %v991 = vadd.f32 %v922, %v990
        %992 = vdwg.mxu0
        %v993 = vtanh.pop %v975
        %v994 = vtanh.pop %v977
        %v995 = vtanh.pop %v979
        %v996 = vtanh.pop %v981
        %v997 = vtanh.pop %v985
        %v998 = vtanh.pop %v987
        %v999 = vtanh.pop %v989
        %v1000 = vtanh.pop %v991
        %v1001 = vpack.c.bf16 %v995, %v993
        %v1002 = vpack.c.bf16 %v996, %v994
        %v1003 = vpack.c.bf16 %v999, %v997
        %v1004 = vpack.c.bf16 %v1000, %v998
        %v1007 = vunpack.c.l.b16 %v270
        %v1008 = vunpack.c.l.b16 %v271
        %v1009 = vpack.c.b16 %v1008, %v1007
        %v1011 = vsel %vm515, %v1009, 0
        %1013 = vmatprep.subr.bf16.mxu0 0
        %1014 = vmatpush1.bf16.msra.mxu0 0
        %1015 = vmatprep.subr.bf16.mxu0 0
        %1016 = vmatpush1.bf16.msra.mxu0 0
        %1017 = vmatprep.subr.bf16.mxu0 0
        %1018 = vmatpush1.bf16.msra.mxu0 0
        %1019 = vmatprep.subr.bf16.mxu0 0
        %1020 = vmatpush1.bf16.msra.mxu0 0
        %1021 = vmatprep.subr.bf16.mxu0 0
        %1022 = vmatpush1.bf16.msra.mxu0 0
        %1023 = vmatprep.subr.bf16.mxu0 0
        %1024 = vmatpush1.bf16.msra.mxu0 0
        %1025 = vmatprep.subr.bf16.mxu0 %v1004
        %1026 = vmatpush1.bf16.msra.mxu0 %v1003
        %1027 = vmatprep.subr.bf16.mxu0 %v1002
        %1028 = vmatpush1.bf16.msra.mxu0 %v1001
        %1029 = vmatprep.subr.bf16.mxu0 0
        %1030 = vmatpush2.bf16.msra.mxu0 0
        %1031 = vmatprep.subr.bf16.mxu0 0
        %1032 = vmatpush2.bf16.msra.mxu0 0
        %1033 = vmatprep.subr.bf16.mxu0 0
        %1034 = vmatpush2.bf16.msra.mxu0 0
        %1035 = vmatprep.subr.bf16.mxu0 0
        %1036 = vmatpush2.bf16.msra.mxu0 0
        %1037 = vmatprep.subr.bf16.mxu0 0
        %1038 = vmatpush2.bf16.msra.mxu0 0
        %1039 = vmatprep.subr.bf16.mxu0 0
        %1040 = vmatpush2.bf16.msra.mxu0 0
        %1041 = vmatprep.subr.bf16.mxu0 0
        %1042 = vmatpush2.bf16.msra.mxu0 0
        %1043 = vmatprep.subr.bf16.mxu0 0
        %1044 = vmatpush2.bf16.msra.mxu0 0
        %1045 = vmatprep.mubr.bf16.mxu0 0
        %1046 = vmatmul.mubr.bf16.gmra.mxu0 %v1011
        %v1047 = vpop.f32.mrf.mxu0
        %v1048 = vadd.f32 0.0, %v1047
        %v1049 = vpop.f32.mrf.mxu0
        %v1050 = vadd.f32 0.0, %v1049
        %v1051 = vpop.f32.mrf.mxu0
        %v1052 = vpop.f32.mrf.mxu0
        %1053 = vdwg.mxu0
        %v1054 = vstv %s259
        %v1055 = vadd.f32 %v1048, %v1054
        %v1056 = vadd.f32 %v1050, %v1054
        %v1057 = vstv %s253
        %v1058 = vmul.f32 %v764, %v1057
        %v1059 = vmul.f32 %v765, %v1057
        %v1060 = vstv %s254
        %v1061 = vadd.f32 %v1058, %v1060
        %v1062 = vadd.f32 %v1059, %v1060
        %v1063 = vtanh.pop %v1061
        %v1064 = vtanh.pop %v1062
        %v1065 = vstv %s255
        %v1066 = vmul.f32 %v1063, %v1065
        %v1067 = vmul.f32 %v1064, %v1065
        %v1068 = vstv %s256
        %v1069 = vadd.f32 %v1066, %v1068
        %v1070 = vadd.f32 %v1067, %v1068
        %v1071 = vtanh.pop %v1069
        %v1072 = vtanh.pop %v1070
        %v1073 = vstv %s257
        %v1074 = vmul.f32 %v1071, %v1073
        %v1075 = vmul.f32 %v1072, %v1073
        %v1076 = vstv %s258
        %v1077 = vadd.f32 %v1074, %v1076
        %v1078 = vadd.f32 %v1075, %v1076
        %v1081 = vcombine.low %v1055, %v1056
        %v1083 = vunpack.c.l.s4 1966171168
        %v1084 = vunpack.c.0.s8 %v1083
        %v1085 = vlaneseq
        %v1086 = vshrl.u32 %v1085, 7
        %v1087 = vsub.s32 %v1084, %v1086
        %v1088 = vrot.slane %v1081, %v1087
        %v1090 = vunpack.c.l.s4 1966171168
        %v1091 = vunpack.c.0.s8 %v1090
        %v1092 = vlaneseq
        %v1093 = vshrl.u32 %v1092, 7
        %v1094 = vsub.s32 %v1091, %v1093
        %v1095 = vrot.slane %v1088, %v1094
        %v1097 = vsub.f32 %v413, %v1095
        %v1098 = vmul.f32 %v1097, %v1097
        %v1100 = vlaneseq
        %v1101 = vshrl.u32 %v1100, 7
        %v1102 = vsub.s32 0, %v1101
        %v1103 = vrot.slane %v1098, %v1102
        %v1104 = vlaneseq
        %v1105 = vshrl.u32 %v1104, 7
        %v1106 = vsub.s32 1, %v1105
        %v1107 = vrot.slane %v1098, %v1106
        %v1110 = vsel %vm766, %v1103, 0.0
        %v1111 = vsel %vm766, %v1107, 0.0
        %v1112 = vadd.f32 %v1110, %v1111
        %1113 = vadd.xlane.f32.xlu0 %v1112
        %v1114 = vpop.xlane.xlu0 %1113
        %v1115 = vrot.slane %v1114, 4
        %v1116 = vadd.f32 %v1114, %v1115
        %v1117 = vrot.slane %v1116, 2
        %v1118 = vadd.f32 %v1116, %v1117
        %v1119 = vrot.slane %v1118, 1
        %v1120 = vadd.f32 %v1118, %v1119
        %s1121 = vtos %v1120
        %v1122 = vadd.f32 %v737, 1.0
        %v1123 = vadd.f32 %v738, 1.0
        %v1124 = vmul.f32 %v724, %v724
        %v1125 = vmul.f32 %v725, %v725
        %v1128 = vrot.slane %v1124, 7
        %v1129 = vrot.slane %v1125, 7
        %v1132 = vsub.f32 %v1122, %v1128
        %v1133 = vsub.f32 %v1123, %v1129
        %v1134 = vmul.f32 %v742, %v742
        %v1135 = vmul.f32 %v744, %v744
        %v1136 = vsub.f32 %v1132, %v1134
        %v1137 = vsub.f32 %v1133, %v1135
        %v1140 = vrot.slane %v1136, 1
        %v1141 = vrot.slane %v1137, 1
        %v1144 = vsel %vm766, %v1140, 0.0
        %v1145 = vsel %vm766, %v1141, 0.0
        %v1146 = vadd.f32 %v1144, %v1145
        %1147 = vadd.xlane.f32.xlu0 %v1146
        %v1148 = vpop.xlane.xlu0 %1147
        %v1149 = vrot.slane %v1148, 4
        %v1150 = vadd.f32 %v1148, %v1149
        %v1151 = vrot.slane %v1150, 2
        %v1152 = vadd.f32 %v1150, %v1151
        %v1153 = vrot.slane %v1152, 1
        %v1154 = vadd.f32 %v1152, %v1153
        %s1155 = vtos %v1154
        %s1156 = smul.f32 %s1155, -0.5
        %v1157 = vsub.f32 0.0, %v1077
        %v1158 = vsub.f32 0.0, %v1078
        %v1159 = vmax.f32 %v1157, 0.0
        %v1160 = vmax.f32 %v1158, 0.0
        %v1161 = vand.u32 2147483647, %v1157
        %v1162 = vand.u32 2147483647, %v1158
        %v1163 = vsub.f32 0.0, %v1161
        %v1164 = vsub.f32 0.0, %v1162
        %v1165 = vmul.f32 %v1163, 1.442695
        %v1166 = vpow.pop %v1165
        %v1167 = vmul.f32 %v1164, 1.442695
        %v1168 = vpow.pop %v1167
        %v1169 = vadd.f32 %v1166, 1.0
        %v1170 = vadd.f32 %v1168, 1.0
        %v1171 = vlog2.pop %v1169
        %v1172 = vmul.f32 %v1171, 0.6931472
        %v1173 = vlog2.pop %v1170
        %v1174 = vmul.f32 %v1173, 0.6931472
        %v1175 = vadd.f32 %v1159, %v1172
        %v1176 = vadd.f32 %v1160, %v1174
        %v1177 = vsub.f32 0.0, %v1175
        %v1178 = vsub.f32 0.0, %v1176
        %v1179 = vmax.f32 %v1077, 0.0
        %v1180 = vmax.f32 %v1078, 0.0
        %v1181 = vand.u32 2147483647, %v1077
        %v1182 = vand.u32 2147483647, %v1078
        %v1183 = vsub.f32 0.0, %v1181
        %v1184 = vsub.f32 0.0, %v1182
        %v1185 = vmul.f32 %v1183, 1.442695
        %v1186 = vpow.pop %v1185
        %v1187 = vmul.f32 %v1184, 1.442695
        %v1188 = vpow.pop %v1187
        %v1189 = vadd.f32 %v1186, 1.0
        %v1190 = vadd.f32 %v1188, 1.0
        %v1191 = vlog2.pop %v1189
        %v1192 = vmul.f32 %v1191, 0.6931472
        %v1193 = vlog2.pop %v1190
        %v1194 = vmul.f32 %v1193, 0.6931472
        %v1195 = vadd.f32 %v1179, %v1192
        %v1196 = vadd.f32 %v1180, %v1194
        %v1197 = vsub.f32 0.0, %v1195
        %v1198 = vsub.f32 0.0, %v1196
        %v1199 = vmul.f32 %v406, 19.0
        %v1202 = vcombine.low %v1177, %v1178
        %v1204 = vunpack.c.l.s4 1966171168
        %v1205 = vunpack.c.0.s8 %v1204
        %v1206 = vlaneseq
        %v1207 = vshrl.u32 %v1206, 7
        %v1208 = vsub.s32 %v1205, %v1207
        %v1209 = vrot.slane %v1202, %v1208
        %v1211 = vunpack.c.l.s4 1966171168
        %v1212 = vunpack.c.0.s8 %v1211
        %v1213 = vlaneseq
        %v1214 = vshrl.u32 %v1213, 7
        %v1215 = vsub.s32 %v1212, %v1214
        %v1216 = vrot.slane %v1209, %v1215
        %v1218 = vmul.f32 %v1199, %v1216
        %v1221 = vcombine.low %v1197, %v1198
        %v1223 = vunpack.c.l.s4 1966171168
        %v1224 = vunpack.c.0.s8 %v1223
        %v1225 = vlaneseq
        %v1226 = vshrl.u32 %v1225, 7
        %v1227 = vsub.s32 %v1224, %v1226
        %v1228 = vrot.slane %v1221, %v1227
        %v1230 = vunpack.c.l.s4 1966171168
        %v1231 = vunpack.c.0.s8 %v1230
        %v1232 = vlaneseq
        %v1233 = vshrl.u32 %v1232, 7
        %v1234 = vsub.s32 %v1231, %v1233
        %v1235 = vrot.slane %v1228, %v1234
        %v1237 = vmul.f32 %v407, %v1235
        %v1238 = vadd.f32 %v1218, %v1237
        %v1239 = vsub.f32 0.0, %v1238
        %v1241 = vlaneseq
        %v1242 = vshrl.u32 %v1241, 7
        %v1243 = vsub.s32 0, %v1242
        %v1244 = vrot.slane %v1239, %v1243
        %v1245 = vlaneseq
        %v1246 = vshrl.u32 %v1245, 7
        %v1247 = vsub.s32 1, %v1246
        %v1248 = vrot.slane %v1239, %v1247
        %v1251 = vsel %vm766, %v1244, 0.0
        %v1252 = vsel %vm766, %v1248, 0.0
        %v1253 = vadd.f32 %v1251, %v1252
        %1254 = vadd.xlane.f32.xlu0 %v1253
        %v1255 = vpop.xlane.xlu0 %1254
        %v1256 = vrot.slane %v1255, 4
        %v1257 = vadd.f32 %v1255, %v1256
        %v1258 = vrot.slane %v1257, 2
        %v1259 = vadd.f32 %v1257, %v1258
        %v1260 = vrot.slane %v1259, 1
        %v1261 = vadd.f32 %v1259, %v1260
        %s1262 = vtos %v1261
        %v1263 = vlaneseq
        %v1264 = vand.u32 %v1263, 127
        %v1265 = vadd.s32 %v1264, 128
        %vm1266 = vcmp.eq.s32.totalorder %v1264, 0
        %vm1267 = vcmp.eq.s32.totalorder %v1265, 0
        %v1268 = vsel %vm1266, 1, 0
        %v1269 = vsel %vm1267, 1, 0
        %v1270 = vcvt.s32.f32 %v1268
        %v1271 = vcvt.s32.f32 %v1269
        %v1272 = vstv %s1121
        %v1273 = vmul.f32 %v1272, %v1270
        %v1274 = vmul.f32 %v1272, %v1271
        %vm1275 = vcmp.eq.s32.totalorder %v1264, 1
        %vm1276 = vcmp.eq.s32.totalorder %v1265, 1
        %v1277 = vsel %vm1275, 1, 0
        %v1278 = vsel %vm1276, 1, 0
        %v1279 = vcvt.s32.f32 %v1277
        %v1280 = vcvt.s32.f32 %v1278
        %v1281 = vstv %s1156
        %v1282 = vmul.f32 %v1281, %v1279
        %v1283 = vmul.f32 %v1281, %v1280
        %v1284 = vadd.f32 %v1273, %v1282
        %v1285 = vadd.f32 %v1274, %v1283
        %vm1286 = vcmp.eq.s32.totalorder %v1264, 2
        %vm1287 = vcmp.eq.s32.totalorder %v1265, 2
        %v1288 = vsel %vm1286, 1, 0
        %v1289 = vsel %vm1287, 1, 0
        %v1290 = vcvt.s32.f32 %v1288
        %v1291 = vcvt.s32.f32 %v1289
        %v1292 = vstv %s1262
        %v1293 = vmul.f32 %v1292, %v1290
        %v1294 = vmul.f32 %v1292, %v1291
        %v1295 = vadd.f32 %v1284, %v1293
        %v1296 = vadd.f32 %v1285, %v1294
        %v1299 = vrot.slane %v764, 6
        %v1300 = vrot.slane %v765, 6
        %v1305 = vrot.slane %v1077, 5
        %v1306 = vrot.slane %v1078, 5
        %v1310 = vlaneseq
        %v1311 = vshrl.u32 %v1310, 7
        %v1312 = vsub.s32 0, %v1311
        %v1313 = vrot.slane %v406, %v1312
        %v1314 = vlaneseq
        %v1315 = vshrl.u32 %v1314, 7
        %v1316 = vsub.s32 1, %v1315
        %v1317 = vrot.slane %v406, %v1316
        %v1320 = vsel %vm766, %v724, %v737
        %v1321 = vsel %vm766, %v725, %v738
        %vm1322 = vcmask 1041408
        %v1323 = vsel %vm1322, %v1320, %v1299
        %v1324 = vsel %vm1322, %v1321, %v1300
        %vm1325 = vcmask 1042432
        %v1326 = vsel %vm1325, %v1323, %v1305
        %v1327 = vsel %vm1325, %v1324, %v1306
        %vm1328 = vcmask 1043456
        %v1329 = vsel %vm1328, %v1326, %v1313
        %v1330 = vsel %vm1328, %v1327, %v1317
        %vm1331 = vcmask 1044480
        %v1332 = vsel %vm1331, %v1329, %v1295
        %v1333 = vsel %vm1331, %v1330, %v1296
        %vm1334 = vcmask 1045504
        %v1335 = vsel %vm1334, %v1332, 0.0
        %v1336 = vsel %vm1334, %v1333, 0.0
        %1337 = vst [vmem:[%s240] sm:$0xff] %v1335
        %1338 = vst [vmem:[%s240 + $0x8] sm:$0xff] %v1336
        %p1339 = scmp.lt.s32.totalorder %s17, 3
        %s1340 = scalar_select %p1339, %s17, 3
        %s1341 = smul.addr %s1340, 2
        %s1342 = smul.addr %s1341, 8
        %s1343 = scalar_lea.vmem %s5, %s1342
        // Predicated region
        $region45: #{grnvae_forward.3} parent=39 // pred_check
          %p1344 = pneg %p145
        $region46: #{grnvae_forward.3} parent=39 // pred_check_branch
          %1346 = sbr.rel (%p1344) target = $region48
        $region47: #{grnvae_forward.3} parent=39 // pred_region
          _
        $region48: #{grnvae_forward.3} parent=39 // pred_fallthru
          _
      $region40: #{grnvae_forward.3} parent=5 // pred_fallthru
        _
      %p1347 = scmp.le.s32.totalorder 2, %s12
      // Predicated region
      $region49: #{grnvae_forward.3} parent=5 // pred_check
        %p1348 = pneg %p1347
      $region50: #{grnvae_forward.3} parent=5 // pred_check_branch
        %1350 = sbr.rel (%p1348) target = $region52
      $region51: #{grnvae_forward.3} parent=5 // pred_region
        %s1351 = ssub.s32 %s12, 2
        // Predicated region
        $region53: #{grnvae_forward.3} parent=51 // pred_check
          %p1352 = pneg %p151
        $region54: #{grnvae_forward.3} parent=51 // pred_check_branch
          %1354 = sbr.rel (%p1352) target = $region56
        $region55: #{grnvae_forward.3} parent=51 // pred_region
          %p1355 = scmp.lt.s32.totalorder %s18, 3
          %s1356 = scalar_select %p1355, %s18, 3
          %s1357 = smul.addr %s1356, 2
          %s1358 = smul.addr %s1357, 8
          %s1359 = scalar_lea.vmem %s5, %s1358
        $region56: #{grnvae_forward.3} parent=51 // pred_fallthru
          _
      $region52: #{grnvae_forward.3} parent=5 // pred_fallthru
        _
    $region6: #{grnvae_forward.3} parent=1 // loop_footer
      %s16 = sadd.s32 1, %s12
    $region7: #{grnvae_forward.3} parent=1 // loop_footer_branch
      %11 = sbr.rel target = $region3
    $region8: #{grnvae_forward.3} parent=1 // loop_exit
      _
    %1360 = vsyncpa [#allocation3], 1
    %s1361 = scalar_lea.sflag [#allocation3], 1
    %1362 = vsyncpa %s1361, 1

</llo_original>
